<compile_context>
chip_gen: v7x
topology: tpu7x:2x2x1
jax: 0.10.0
libtpu: 0.0.40
codegen_flags: <defaults>
</compile_context>

<pallas_src>
import functools

import jax
import jax.numpy as jnp
from jax.experimental import pallas as pl
from jax.experimental.pallas import tpu as pltpu


def _layernorm(x, gamma, beta, eps=1e-5):
    # x: (N, C) f32, gamma/beta: (1, C) f32
    mu = jnp.mean(x, axis=-1, keepdims=True)
    var = jnp.mean((x - mu) ** 2, axis=-1, keepdims=True)
    return (x - mu) * jax.lax.rsqrt(var + eps) * gamma + beta


def block_kernel(x_ref, wqkv_ref, wo_ref, w1_ref, w2_ref, bias_ref, ln_ref,
                 o_ref, att_ref, *, n_head, compute_dtype):
    f32 = jnp.float32
    cdt = compute_dtype
    approx = jnp.dtype(cdt) != jnp.dtype(jnp.float32)  # exact reciprocal on f32 verify path

    x3 = x_ref[...].astype(f32)            # (Bt, T, C) block of batch rows
    Bt, T, C = x3.shape
    hs = C // n_head
    N = Bt * T

    x = x3.reshape(N, C)                   # merge leading dims (lane dim unchanged, cheap)

    # packed params (f32; they feed VPU math / post-matmul adds)
    b1 = bias_ref[:, 0:4 * C]              # (1, 4C)
    bo = bias_ref[:, 4 * C:5 * C]          # (1, C)
    b2 = bias_ref[:, 5 * C:6 * C]          # (1, C)
    g1, be1 = ln_ref[0:1, :], ln_ref[1:2, :]
    g2, be2 = ln_ref[2:3, :], ln_ref[3:4, :]

    # ---- ln1 + fused QKV projection (one big MXU matmul) ----
    xn = _layernorm(x, g1, be1)                                      # (N, C) f32
    # C**-0.5 is already folded into the Q columns of wqkv (done in f32 in the wrapper).
    qkv = jnp.dot(xn.astype(cdt), wqkv_ref[...],
                  preferred_element_type=f32)                        # (N, 3C) f32 accum
    # single downcast + split of leading dim; halves the live qkv bytes
    qkv = qkv.astype(cdt).reshape(Bt, T, 3 * C)                      # (Bt, T, 3C) cdt

    # ---- attention: static loop over head GROUPS, each batched over Bt ----
    # Group width is a multiple of 128 lanes when hs < 128 -> lane-dense slab stores.
    heads_per_group = 1
    if hs < 128:
        heads_per_group = min(n_head, max(1, 128 // hs))
        while n_head % heads_per_group:
            heads_per_group -= 1
    gw = heads_per_group * hs

    for g in range(n_head // heads_per_group):
        outs = []
        for j in range(heads_per_group):
            c0 = (g * heads_per_group + j) * hs
            q = qkv[:, :, c0:c0 + hs]                     # (Bt, T, hs), already scaled
            k = qkv[:, :, C + c0:C + c0 + hs]
            v = qkv[:, :, 2 * C + c0:2 * C + c0 + hs]

            # batched over Bt: one MXU call per head instead of Bt tiny ones
            s = jnp.einsum('btd,bsd->bts', q, k,
                           preferred_element_type=f32)    # (Bt, T, T) f32
            s = s - jnp.max(s, axis=-1, keepdims=True)
            p = jnp.exp(s)
            p = p * pl.reciprocal(jnp.sum(p, axis=-1, keepdims=True), approx=approx)

            o = jnp.einsum('bts,bsd->btd', p.astype(cdt), v,
                           preferred_element_type=f32)    # (Bt, T, hs) f32 accum
            outs.append(o.astype(cdt))
        grp = outs[0] if heads_per_group == 1 else jnp.concatenate(outs, axis=-1)
        att_ref[:, g * gw:(g + 1) * gw] = grp.reshape(N, gw)   # lane-dense store, cdt slab

    # ---- single fused output projection + residual 1 ----
    sa = jnp.dot(att_ref[...], wo_ref[...], preferred_element_type=f32) + bo   # (N, C) f32
    x = x + sa

    # ---- ln2 + feed-forward + residual 2 ----
    xn2 = _layernorm(x, g2, be2)
    h1 = jnp.dot(xn2.astype(cdt), w1_ref[...], preferred_element_type=f32) + b1
    h1 = jnp.maximum(h1, 0.0).astype(cdt)          # fused ReLU + downcast: (N,4C) f32 dies here
    ff = jnp.dot(h1, w2_ref[...], preferred_element_type=f32) + b2
    x = x + ff

    o_ref[...] = x.reshape(Bt, T, C).astype(o_ref.dtype)


def _vmem_limit_bytes():
    """Generation-aware VMEM request: ~80% of physical (51 MiB v7x, ~102 MiB v5e/v6e)."""
    try:
        cap = int(pltpu.get_tpu_info().vmem_capacity_bytes)
    except Exception:
        cap = 64 * 1024 * 1024          # conservative fallback, safe on every generation
    return max(int(cap * 0.8), 16 * 1024 * 1024)


def transformer_block(x, params, *, compute_dtype=jnp.bfloat16, target_rows=None):
    """params = (wq, wk, wv, wo, bo, w1, b1, w2, b2, g1, be1, g2, be2) — per-head layout."""
    wq, wk, wv, wo, bo, w1, b1, w2, b2, g1, be1, g2, be2 = params
    B, T, C = x.shape
    H, _, hs = wq.shape
    assert H * hs == C

    # --- pack weights: fused QKV (head h occupies columns [h*hs, (h+1)*hs)), MXU dtype ---
    def heads_to_cols(w):                       # (H, C, hs) -> (C, H*hs)
        return jnp.transpose(w, (1, 0, 2)).reshape(C, H * hs)

    scale = C ** (-0.5)                          # matches Head.forward (uses n_embd)
    # fold the softmax scale into the Q columns IN F32, before the compute_dtype cast
    wqkv = jnp.concatenate(
        [heads_to_cols(wq) * scale, heads_to_cols(wk), heads_to_cols(wv)], axis=1
    ).astype(compute_dtype)                                               # (C, 3C)
    wo_c = wo.astype(compute_dtype)                                       # (C, C)
    w1_c = w1.astype(compute_dtype)                                       # (C, 4C)
    w2_c = w2.astype(compute_dtype)                                       # (4C, C)
    biases = jnp.concatenate(
        [b1.reshape(1, 4 * C), bo.reshape(1, C), b2.reshape(1, C)], axis=1
    ).astype(jnp.float32)                                                 # (1, 6C)
    ln = jnp.concatenate(
        [g1.reshape(1, C), be1.reshape(1, C), g2.reshape(1, C), be2.reshape(1, C)],
        axis=0).astype(jnp.float32)                                       # (4, C)

    # --- VMEM-aware choice of bt (batch rows per grid step) ---
    vmem_limit = _vmem_limit_bytes()
    item_c = jnp.dtype(compute_dtype).itemsize
    item_x = jnp.dtype(x.dtype).itemsize
    weight_bytes = 12 * C * C * item_c + 10 * C * 4        # weights (single-buffered) + bias/ln
    avail = vmem_limit - weight_bytes - (4 << 20)          # headroom for compiler scratch
    # rough live bytes per sequence row inside one grid step:
    per_row = (4 * C * item_x        # x in + out, double-buffered activations
               + C * item_c          # attention slab (compute_dtype)
               + 3 * C * item_c      # qkv (compute_dtype)
               + 4 * C * 4           # (N,4C) f32 FFN intermediate (before downcast)
               + 4 * C * 4           # LayerNorm / residual f32 temps
               + 2 * T * 4)          # per-head-group softmax scores
    max_rows = max(T, int(avail // per_row)) if avail > 0 else T
    bt_cap = max(1, max_rows // T)
    if target_rows is not None:
        bt_cap = min(bt_cap, max(1, target_rows // T))
    bt_cap = min(bt_cap, B)
    if B >= 2:
        bt_cap = min(bt_cap, B // 2)   # guarantee >= 2 grid steps (v7x megacore sharding)
    # largest divisor of B not exceeding bt_cap (can degrade to 1 for prime B: perf, not bug)
    bt = next(d for d in range(bt_cap, 0, -1) if B % d == 0)

    kernel = functools.partial(block_kernel, n_head=H, compute_dtype=compute_dtype)

    # advisory cost estimate for XLA's scheduler
    flops = 2 * B * T * 12 * C * C + 4 * B * H * T * T * hs
    transcendentals = B * H * T * T
    bytes_accessed = 2 * B * T * C * item_x + 12 * C * C * item_c + 10 * C * 4
    cost = pl.CostEstimate(flops=int(flops), transcendentals=int(transcendentals),
                           bytes_accessed=int(bytes_accessed))

    def run(single_buffer_weights):
        def const_spec(shape):
            zeros = (0,) * len(shape)
            idx = lambda b: zeros
            if single_buffer_weights:
                # constant-index blocks: single-buffer to halve their VMEM footprint
                return pl.BlockSpec(shape, idx, pipeline_mode=pl.Buffered(1))
            return pl.BlockSpec(shape, idx)

        call = pl.pallas_call(
            kernel,
            out_shape=jax.ShapeDtypeStruct((B, T, C), x.dtype),
            grid=(B // bt,),
            in_specs=[
                pl.BlockSpec((bt, T, C), lambda b: (b, 0, 0)),   # x: bt batch rows per step
                const_spec((C, 3 * C)),                          # fused QKV weight (Q pre-scaled)
                const_spec((C, C)),                              # output projection
                const_spec((C, 4 * C)),                          # ffwd W1
                const_spec((4 * C, C)),                          # ffwd W2
                const_spec((1, 6 * C)),                          # packed biases [b1 | bo | b2]
                const_spec((4, C)),                              # packed LN params [g1;be1;g2;be2]
            ],
            out_specs=pl.BlockSpec((bt, T, C), lambda b: (b, 0, 0)),
            scratch_shapes=[pltpu.VMEM((bt * T, C), compute_dtype)],  # attention slab (cdt)
            compiler_params=pltpu.CompilerParams(
                dimension_semantics=("parallel",),
                vmem_limit_bytes=vmem_limit),
            cost_estimate=cost,
        )
        return call(x, wqkv, wo_c, w1_c, w2_c, biases, ln)

    try:
        return run(single_buffer_weights=True)
    except Exception:
        # fallback if this JAX build rejects pipeline_mode=pl.Buffered(1)
        return run(single_buffer_weights=False)


def ref_block(x, params):
    """Pure-JAX reference (mirrors the PyTorch forward, dropout = identity)."""
    wq, wk, wv, wo, bo, w1, b1, w2, b2, g1, be1, g2, be2 = params

    def ln(y, g, b):
        mu = y.mean(-1, keepdims=True)
        var = ((y - mu) ** 2).mean(-1, keepdims=True)
        return (y - mu) / jnp.sqrt(var + 1e-5) * g + b

    B, T, C = x.shape
    xn = ln(x, g1, be1)
    q = jnp.einsum('btc,hcd->bhtd', xn, wq)
    k = jnp.einsum('btc,hcd->bhtd', xn, wk)
    v = jnp.einsum('btc,hcd->bhtd', xn, wv)
    wei = jnp.einsum('bhtd,bhsd->bhts', q, k) * C ** (-0.5)
    p = jax.nn.softmax(wei, axis=-1)
    o = jnp.einsum('bhts,bhsd->bhtd', p, v)
    o = o.transpose(0, 2, 1, 3).reshape(B, T, C)
    x = x + o @ wo + bo
    xn2 = ln(x, g2, be2)
    x = x + jnp.maximum(xn2 @ w1 + b1, 0.0) @ w2 + b2
    return x


if __name__ == "__main__":
    # small shapes consistent with the module
    B, T = 2, 8
    n_embd, n_head = 32, 4
    head_size = n_embd // n_head

    key = jax.random.PRNGKey(0)
    ks = jax.random.split(key, 16)

    def normal(k, shape, scale=0.02):
        return (scale * jax.random.normal(k, shape)).astype(jnp.float32)

    x = jax.random.normal(ks[0], (B, T, n_embd), dtype=jnp.float32)

    wq = normal(ks[1], (n_head, n_embd, head_size))
    wk = normal(ks[2], (n_head, n_embd, head_size))
    wv = normal(ks[3], (n_head, n_embd, head_size))
    wo = normal(ks[4], (n_embd, n_embd))
    bo = normal(ks[5], (1, n_embd))
    w1 = normal(ks[6], (n_embd, 4 * n_embd))
    b1 = normal(ks[7], (1, 4 * n_embd))
    w2 = normal(ks[8], (4 * n_embd, n_embd))
    b2 = normal(ks[9], (1, n_embd))
    g1 = 1.0 + normal(ks[10], (1, n_embd), 0.1)
    be1 = normal(ks[11], (1, n_embd), 0.1)
    g2 = 1.0 + normal(ks[12], (1, n_embd), 0.1)
    be2 = normal(ks[13], (1, n_embd), 0.1)

    params = (wq, wk, wv, wo, bo, w1, b1, w2, b2, g1, be1, g2, be2)
    ref = ref_block(x, params)

    # 1) strict correctness check: f32 MXU operands, exact reciprocal
    out_f32 = jax.block_until_ready(transformer_block(x, params, compute_dtype=jnp.float32))
    assert out_f32.shape == (B, T, n_embd)
    assert jnp.allclose(out_f32, ref, atol=1e-4, rtol=1e-4), (
        f"f32 path max abs diff {jnp.max(jnp.abs(out_f32 - ref))}")

    # 2) performance path: bf16 MXU operands + approx softmax reciprocal
    #    (LN/softmax/residuals stay f32; softmax rows sum to 1 within ~2^-12)
    out_bf16 = jax.block_until_ready(transformer_block(x, params, compute_dtype=jnp.bfloat16))
    assert out_bf16.shape == (B, T, n_embd)
    assert jnp.allclose(out_bf16, ref, atol=1e-2, rtol=1e-2), (
        f"bf16 path max abs diff {jnp.max(jnp.abs(out_bf16 - ref))}")

    print("KERNEL_OK")
</pallas_src>

<mosaic_0001>
module attributes {stable_mosaic.version = 11 : i64} {
  func.func @block_kernel(%arg0: i32, %arg1: memref<1x8x32xf32, #tpu.memory_space<vmem>>, %arg2: memref<32x96xf32, #tpu.memory_space<vmem>>, %arg3: memref<32x32xf32, #tpu.memory_space<vmem>>, %arg4: memref<32x128xf32, #tpu.memory_space<vmem>>, %arg5: memref<128x32xf32, #tpu.memory_space<vmem>>, %arg6: memref<1x192xf32, #tpu.memory_space<vmem>>, %arg7: memref<4x32xf32, #tpu.memory_space<vmem>>, %arg8: memref<1x8x32xf32, #tpu.memory_space<vmem>>, %arg9: memref<8x32xf32, #tpu.memory_space<vmem>>) attributes {dimension_semantics = [#tpu.dimension_semantics<parallel>], iteration_bounds = array<i64: 2>, scalar_prefetch = 0 : i64, scratch_operands = 1 : i64, tpu.core_type = #tpu.core_type<tc>, window_params = [{transform_indices = @transform_0, window_bounds = array<i64: 1, 8, 32>}, {pipeline_mode = #tpu.pipeline_mode<synchronous>, transform_indices = @transform_1, window_bounds = array<i64: 32, 96>}, {pipeline_mode = #tpu.pipeline_mode<synchronous>, transform_indices = @transform_2, window_bounds = array<i64: 32, 32>}, {pipeline_mode = #tpu.pipeline_mode<synchronous>, transform_indices = @transform_3, window_bounds = array<i64: 32, 128>}, {pipeline_mode = #tpu.pipeline_mode<synchronous>, transform_indices = @transform_4, window_bounds = array<i64: 128, 32>}, {pipeline_mode = #tpu.pipeline_mode<synchronous>, transform_indices = @transform_5, window_bounds = array<i64: 1, 192>}, {pipeline_mode = #tpu.pipeline_mode<synchronous>, transform_indices = @transform_6, window_bounds = array<i64: 4, 32>}, {transform_indices = @transform_7, window_bounds = array<i64: 1, 8, 32>}]} {
    %c0 = arith.constant 0 : index
    %c0_0 = arith.constant 0 : index
    %c0_1 = arith.constant 0 : index
    %0 = vector.load %arg1[%c0, %c0_0, %c0_1] : memref<1x8x32xf32, #tpu.memory_space<vmem>>, vector<1x8x32xf32>
    %1 = vector.shape_cast %0 : vector<1x8x32xf32> to vector<8x32xf32>
    %c0_2 = arith.constant 0 : index
    %c0_3 = arith.constant 0 : index
    %2 = vector.load %arg6[%c0_2, %c0_3] : memref<1x192xf32, #tpu.memory_space<vmem>>, vector<1x128xf32>
    %c0_4 = arith.constant 0 : index
    %c128 = arith.constant 128 : index
    %3 = vector.load %arg6[%c0_4, %c128] : memref<1x192xf32, #tpu.memory_space<vmem>>, vector<1x32xf32>
    %c0_5 = arith.constant 0 : index
    %c160 = arith.constant 160 : index
    %4 = vector.load %arg6[%c0_5, %c160] : memref<1x192xf32, #tpu.memory_space<vmem>>, vector<1x32xf32>
    %c0_6 = arith.constant 0 : index
    %c0_7 = arith.constant 0 : index
    %5 = vector.load %arg7[%c0_6, %c0_7] : memref<4x32xf32, #tpu.memory_space<vmem>>, vector<1x32xf32>
    %c1 = arith.constant 1 : index
    %c0_8 = arith.constant 0 : index
    %6 = vector.load %arg7[%c1, %c0_8] : memref<4x32xf32, #tpu.memory_space<vmem>>, vector<1x32xf32>
    %c2 = arith.constant 2 : index
    %c0_9 = arith.constant 0 : index
    %7 = vector.load %arg7[%c2, %c0_9] : memref<4x32xf32, #tpu.memory_space<vmem>>, vector<1x32xf32>
    %c3 = arith.constant 3 : index
    %c0_10 = arith.constant 0 : index
    %8 = vector.load %arg7[%c3, %c0_10] : memref<4x32xf32, #tpu.memory_space<vmem>>, vector<1x32xf32>
    %cst = arith.constant dense<0.000000e+00> : vector<8xf32>
    %9 = vector.multi_reduction <add>, %1, %cst [1] : vector<8x32xf32> to vector<8xf32>
    %10 = vector.shape_cast %9 : vector<8xf32> to vector<8x1xf32>
    %cst_11 = arith.constant 3.200000e+01 : f32
    %11 = vector.broadcast %cst_11 : f32 to vector<8x1xf32>
    %12 = arith.divf %10, %11 : vector<8x1xf32>
    %13 = vector.broadcast %12 : vector<8x1xf32> to vector<8x32xf32>
    %14 = arith.subf %1, %13 : vector<8x32xf32>
    %15 = arith.mulf %14, %14 : vector<8x32xf32>
    %cst_12 = arith.constant dense<0.000000e+00> : vector<8xf32>
    %16 = vector.multi_reduction <add>, %15, %cst_12 [1] : vector<8x32xf32> to vector<8xf32>
    %17 = vector.shape_cast %16 : vector<8xf32> to vector<8x1xf32>
    %cst_13 = arith.constant 3.200000e+01 : f32
    %18 = vector.broadcast %cst_13 : f32 to vector<8x1xf32>
    %19 = arith.divf %17, %18 : vector<8x1xf32>
    %20 = vector.broadcast %12 : vector<8x1xf32> to vector<8x32xf32>
    %21 = arith.subf %1, %20 : vector<8x32xf32>
    %cst_14 = arith.constant 9.99999974E-6 : f32
    %22 = vector.broadcast %cst_14 : f32 to vector<8x1xf32>
    %23 = arith.addf %19, %22 : vector<8x1xf32>
    %24 = math.rsqrt %23 : vector<8x1xf32>
    %25 = vector.broadcast %24 : vector<8x1xf32> to vector<8x32xf32>
    %26 = arith.mulf %21, %25 : vector<8x32xf32>
    %27 = vector.broadcast %5 : vector<1x32xf32> to vector<8x32xf32>
    %28 = arith.mulf %26, %27 : vector<8x32xf32>
    %29 = vector.broadcast %6 : vector<1x32xf32> to vector<8x32xf32>
    %30 = arith.addf %28, %29 : vector<8x32xf32>
    %c0_15 = arith.constant 0 : index
    %c0_16 = arith.constant 0 : index
    %31 = vector.load %arg2[%c0_15, %c0_16] : memref<32x96xf32, #tpu.memory_space<vmem>>, vector<32x96xf32>
    %cst_17 = arith.constant dense<0.000000e+00> : vector<8x96xf32>
    %32 = tpu.matmul %30, %31, %cst_17 {dimension_numbers = #tpu.dot_dimension_numbers<[1], [0], [0], [1], [0, 0, 1, 1], [], []>} : vector<8x32xf32>, vector<32x96xf32>, vector<8x96xf32> -> vector<8x96xf32>
    %33 = vector.shape_cast %32 : vector<8x96xf32> to vector<1x8x96xf32>
    %34 = vector.extract_strided_slice %33 {offsets = [0, 0, 0], sizes = [1, 8, 8], strides = [1, 1, 1]} : vector<1x8x96xf32> to vector<1x8x8xf32>
    %35 = vector.extract_strided_slice %33 {offsets = [0, 0, 32], sizes = [1, 8, 8], strides = [1, 1, 1]} : vector<1x8x96xf32> to vector<1x8x8xf32>
    %36 = vector.extract_strided_slice %33 {offsets = [0, 0, 64], sizes = [1, 8, 8], strides = [1, 1, 1]} : vector<1x8x96xf32> to vector<1x8x8xf32>
    "tpu.trace_start"() <{level = 10 : i32, message = "btd,bsd->bts"}> : () -> ()
    %cst_18 = arith.constant dense<0.000000e+00> : vector<1x8x8xf32>
    %37 = tpu.matmul %34, %35, %cst_18 {dimension_numbers = #tpu.dot_dimension_numbers<[2], [2], [1], [1], [0, 0, 0, 1, 1, 1], [0], [0]>} : vector<1x8x8xf32>, vector<1x8x8xf32>, vector<1x8x8xf32> -> vector<1x8x8xf32>
    "tpu.trace_stop"() : () -> ()
    %cst_19 = arith.constant dense<0xFF800000> : vector<1x8xf32>
    %38 = vector.multi_reduction <maximumf>, %37, %cst_19 [2] : vector<1x8x8xf32> to vector<1x8xf32>
    %39 = vector.shape_cast %38 : vector<1x8xf32> to vector<1x8x1xf32>
    %40 = vector.broadcast %39 : vector<1x8x1xf32> to vector<1x8x8xf32>
    %41 = arith.subf %37, %40 : vector<1x8x8xf32>
    %42 = math.exp %41 : vector<1x8x8xf32>
    %cst_20 = arith.constant dense<0.000000e+00> : vector<1x8xf32>
    %43 = vector.multi_reduction <add>, %42, %cst_20 [2] : vector<1x8x8xf32> to vector<1x8xf32>
    %44 = vector.shape_cast %43 : vector<1x8xf32> to vector<1x8x1xf32>
    %45 = tpu.reciprocal %44 : vector<1x8x1xf32> -> vector<1x8x1xf32>
    %46 = vector.broadcast %45 : vector<1x8x1xf32> to vector<1x8x8xf32>
    %47 = arith.mulf %42, %46 : vector<1x8x8xf32>
    "tpu.trace_start"() <{level = 10 : i32, message = "bts,bsd->btd"}> : () -> ()
    %cst_21 = arith.constant dense<0.000000e+00> : vector<1x8x8xf32>
    %48 = tpu.matmul %47, %36, %cst_21 {dimension_numbers = #tpu.dot_dimension_numbers<[2], [1], [1], [2], [0, 0, 0, 1, 1, 2], [0], [0]>} : vector<1x8x8xf32>, vector<1x8x8xf32>, vector<1x8x8xf32> -> vector<1x8x8xf32>
    "tpu.trace_stop"() : () -> ()
    %49 = vector.extract_strided_slice %33 {offsets = [0, 0, 8], sizes = [1, 8, 8], strides = [1, 1, 1]} : vector<1x8x96xf32> to vector<1x8x8xf32>
    %50 = vector.extract_strided_slice %33 {offsets = [0, 0, 40], sizes = [1, 8, 8], strides = [1, 1, 1]} : vector<1x8x96xf32> to vector<1x8x8xf32>
    %51 = vector.extract_strided_slice %33 {offsets = [0, 0, 72], sizes = [1, 8, 8], strides = [1, 1, 1]} : vector<1x8x96xf32> to vector<1x8x8xf32>
    "tpu.trace_start"() <{level = 10 : i32, message = "btd,bsd->bts"}> : () -> ()
    %cst_22 = arith.constant dense<0.000000e+00> : vector<1x8x8xf32>
    %52 = tpu.matmul %49, %50, %cst_22 {dimension_numbers = #tpu.dot_dimension_numbers<[2], [2], [1], [1], [0, 0, 0, 1, 1, 1], [0], [0]>} : vector<1x8x8xf32>, vector<1x8x8xf32>, vector<1x8x8xf32> -> vector<1x8x8xf32>
    "tpu.trace_stop"() : () -> ()
    %cst_23 = arith.constant dense<0xFF800000> : vector<1x8xf32>
    %53 = vector.multi_reduction <maximumf>, %52, %cst_23 [2] : vector<1x8x8xf32> to vector<1x8xf32>
    %54 = vector.shape_cast %53 : vector<1x8xf32> to vector<1x8x1xf32>
    %55 = vector.broadcast %54 : vector<1x8x1xf32> to vector<1x8x8xf32>
    %56 = arith.subf %52, %55 : vector<1x8x8xf32>
    %57 = math.exp %56 : vector<1x8x8xf32>
    %cst_24 = arith.constant dense<0.000000e+00> : vector<1x8xf32>
    %58 = vector.multi_reduction <add>, %57, %cst_24 [2] : vector<1x8x8xf32> to vector<1x8xf32>
    %59 = vector.shape_cast %58 : vector<1x8xf32> to vector<1x8x1xf32>
    %60 = tpu.reciprocal %59 : vector<1x8x1xf32> -> vector<1x8x1xf32>
    %61 = vector.broadcast %60 : vector<1x8x1xf32> to vector<1x8x8xf32>
    %62 = arith.mulf %57, %61 : vector<1x8x8xf32>
    "tpu.trace_start"() <{level = 10 : i32, message = "bts,bsd->btd"}> : () -> ()
    %cst_25 = arith.constant dense<0.000000e+00> : vector<1x8x8xf32>
    %63 = tpu.matmul %62, %51, %cst_25 {dimension_numbers = #tpu.dot_dimension_numbers<[2], [1], [1], [2], [0, 0, 0, 1, 1, 2], [0], [0]>} : vector<1x8x8xf32>, vector<1x8x8xf32>, vector<1x8x8xf32> -> vector<1x8x8xf32>
    "tpu.trace_stop"() : () -> ()
    %64 = vector.extract_strided_slice %33 {offsets = [0, 0, 16], sizes = [1, 8, 8], strides = [1, 1, 1]} : vector<1x8x96xf32> to vector<1x8x8xf32>
    %65 = vector.extract_strided_slice %33 {offsets = [0, 0, 48], sizes = [1, 8, 8], strides = [1, 1, 1]} : vector<1x8x96xf32> to vector<1x8x8xf32>
    %66 = vector.extract_strided_slice %33 {offsets = [0, 0, 80], sizes = [1, 8, 8], strides = [1, 1, 1]} : vector<1x8x96xf32> to vector<1x8x8xf32>
    "tpu.trace_start"() <{level = 10 : i32, message = "btd,bsd->bts"}> : () -> ()
    %cst_26 = arith.constant dense<0.000000e+00> : vector<1x8x8xf32>
    %67 = tpu.matmul %64, %65, %cst_26 {dimension_numbers = #tpu.dot_dimension_numbers<[2], [2], [1], [1], [0, 0, 0, 1, 1, 1], [0], [0]>} : vector<1x8x8xf32>, vector<1x8x8xf32>, vector<1x8x8xf32> -> vector<1x8x8xf32>
    "tpu.trace_stop"() : () -> ()
    %cst_27 = arith.constant dense<0xFF800000> : vector<1x8xf32>
    %68 = vector.multi_reduction <maximumf>, %67, %cst_27 [2] : vector<1x8x8xf32> to vector<1x8xf32>
    %69 = vector.shape_cast %68 : vector<1x8xf32> to vector<1x8x1xf32>
    %70 = vector.broadcast %69 : vector<1x8x1xf32> to vector<1x8x8xf32>
    %71 = arith.subf %67, %70 : vector<1x8x8xf32>
    %72 = math.exp %71 : vector<1x8x8xf32>
    %cst_28 = arith.constant dense<0.000000e+00> : vector<1x8xf32>
    %73 = vector.multi_reduction <add>, %72, %cst_28 [2] : vector<1x8x8xf32> to vector<1x8xf32>
    %74 = vector.shape_cast %73 : vector<1x8xf32> to vector<1x8x1xf32>
    %75 = tpu.reciprocal %74 : vector<1x8x1xf32> -> vector<1x8x1xf32>
    %76 = vector.broadcast %75 : vector<1x8x1xf32> to vector<1x8x8xf32>
    %77 = arith.mulf %72, %76 : vector<1x8x8xf32>
    "tpu.trace_start"() <{level = 10 : i32, message = "bts,bsd->btd"}> : () -> ()
    %cst_29 = arith.constant dense<0.000000e+00> : vector<1x8x8xf32>
    %78 = tpu.matmul %77, %66, %cst_29 {dimension_numbers = #tpu.dot_dimension_numbers<[2], [1], [1], [2], [0, 0, 0, 1, 1, 2], [0], [0]>} : vector<1x8x8xf32>, vector<1x8x8xf32>, vector<1x8x8xf32> -> vector<1x8x8xf32>
    "tpu.trace_stop"() : () -> ()
    %79 = vector.extract_strided_slice %33 {offsets = [0, 0, 24], sizes = [1, 8, 8], strides = [1, 1, 1]} : vector<1x8x96xf32> to vector<1x8x8xf32>
    %80 = vector.extract_strided_slice %33 {offsets = [0, 0, 56], sizes = [1, 8, 8], strides = [1, 1, 1]} : vector<1x8x96xf32> to vector<1x8x8xf32>
    %81 = vector.extract_strided_slice %33 {offsets = [0, 0, 88], sizes = [1, 8, 8], strides = [1, 1, 1]} : vector<1x8x96xf32> to vector<1x8x8xf32>
    "tpu.trace_start"() <{level = 10 : i32, message = "btd,bsd->bts"}> : () -> ()
    %cst_30 = arith.constant dense<0.000000e+00> : vector<1x8x8xf32>
    %82 = tpu.matmul %79, %80, %cst_30 {dimension_numbers = #tpu.dot_dimension_numbers<[2], [2], [1], [1], [0, 0, 0, 1, 1, 1], [0], [0]>} : vector<1x8x8xf32>, vector<1x8x8xf32>, vector<1x8x8xf32> -> vector<1x8x8xf32>
    "tpu.trace_stop"() : () -> ()
    %cst_31 = arith.constant dense<0xFF800000> : vector<1x8xf32>
    %83 = vector.multi_reduction <maximumf>, %82, %cst_31 [2] : vector<1x8x8xf32> to vector<1x8xf32>
    %84 = vector.shape_cast %83 : vector<1x8xf32> to vector<1x8x1xf32>
    %85 = vector.broadcast %84 : vector<1x8x1xf32> to vector<1x8x8xf32>
    %86 = arith.subf %82, %85 : vector<1x8x8xf32>
    %87 = math.exp %86 : vector<1x8x8xf32>
    %cst_32 = arith.constant dense<0.000000e+00> : vector<1x8xf32>
    %88 = vector.multi_reduction <add>, %87, %cst_32 [2] : vector<1x8x8xf32> to vector<1x8xf32>
    %89 = vector.shape_cast %88 : vector<1x8xf32> to vector<1x8x1xf32>
    %90 = tpu.reciprocal %89 : vector<1x8x1xf32> -> vector<1x8x1xf32>
    %91 = vector.broadcast %90 : vector<1x8x1xf32> to vector<1x8x8xf32>
    %92 = arith.mulf %87, %91 : vector<1x8x8xf32>
    "tpu.trace_start"() <{level = 10 : i32, message = "bts,bsd->btd"}> : () -> ()
    %cst_33 = arith.constant dense<0.000000e+00> : vector<1x8x8xf32>
    %93 = tpu.matmul %92, %81, %cst_33 {dimension_numbers = #tpu.dot_dimension_numbers<[2], [1], [1], [2], [0, 0, 0, 1, 1, 2], [0], [0]>} : vector<1x8x8xf32>, vector<1x8x8xf32>, vector<1x8x8xf32> -> vector<1x8x8xf32>
    "tpu.trace_stop"() : () -> ()
    %94 = tpu.concatenate %48, %63, %78, %93 in 2 : vector<1x8x8xf32>, vector<1x8x8xf32>, vector<1x8x8xf32>, vector<1x8x8xf32> -> vector<1x8x32xf32>
    %95 = vector.shape_cast %94 : vector<1x8x32xf32> to vector<8x32xf32>
    %c0_34 = arith.constant 0 : index
    %c0_35 = arith.constant 0 : index
    %96 = vector.load %arg9[%c0_34, %c0_35] : memref<8x32xf32, #tpu.memory_space<vmem>>, vector<8x32xf32>
    tpu.vector_store %arg9[%c0_34, %c0_35], %95 {strides = array<i32>} : memref<8x32xf32, #tpu.memory_space<vmem>>, vector<8x32xf32>,
    %c0_36 = arith.constant 0 : index
    %c0_37 = arith.constant 0 : index
    %97 = vector.load %arg9[%c0_36, %c0_37] : memref<8x32xf32, #tpu.memory_space<vmem>>, vector<8x32xf32>
    %c0_38 = arith.constant 0 : index
    %c0_39 = arith.constant 0 : index
    %98 = vector.load %arg3[%c0_38, %c0_39] : memref<32x32xf32, #tpu.memory_space<vmem>>, vector<32x32xf32>
    %cst_40 = arith.constant dense<0.000000e+00> : vector<8x32xf32>
    %99 = tpu.matmul %97, %98, %cst_40 {dimension_numbers = #tpu.dot_dimension_numbers<[1], [0], [0], [1], [0, 0, 1, 1], [], []>} : vector<8x32xf32>, vector<32x32xf32>, vector<8x32xf32> -> vector<8x32xf32>
    %100 = vector.broadcast %3 : vector<1x32xf32> to vector<8x32xf32>
    %101 = arith.addf %99, %100 : vector<8x32xf32>
    %102 = arith.addf %1, %101 : vector<8x32xf32>
    %cst_41 = arith.constant dense<0.000000e+00> : vector<8xf32>
    %103 = vector.multi_reduction <add>, %102, %cst_41 [1] : vector<8x32xf32> to vector<8xf32>
    %104 = vector.shape_cast %103 : vector<8xf32> to vector<8x1xf32>
    %cst_42 = arith.constant 3.200000e+01 : f32
    %105 = vector.broadcast %cst_42 : f32 to vector<8x1xf32>
    %106 = arith.divf %104, %105 : vector<8x1xf32>
    %107 = vector.broadcast %106 : vector<8x1xf32> to vector<8x32xf32>
    %108 = arith.subf %102, %107 : vector<8x32xf32>
    %109 = arith.mulf %108, %108 : vector<8x32xf32>
    %cst_43 = arith.constant dense<0.000000e+00> : vector<8xf32>
    %110 = vector.multi_reduction <add>, %109, %cst_43 [1] : vector<8x32xf32> to vector<8xf32>
    %111 = vector.shape_cast %110 : vector<8xf32> to vector<8x1xf32>
    %cst_44 = arith.constant 3.200000e+01 : f32
    %112 = vector.broadcast %cst_44 : f32 to vector<8x1xf32>
    %113 = arith.divf %111, %112 : vector<8x1xf32>
    %114 = vector.broadcast %106 : vector<8x1xf32> to vector<8x32xf32>
    %115 = arith.subf %102, %114 : vector<8x32xf32>
    %cst_45 = arith.constant 9.99999974E-6 : f32
    %116 = vector.broadcast %cst_45 : f32 to vector<8x1xf32>
    %117 = arith.addf %113, %116 : vector<8x1xf32>
    %118 = math.rsqrt %117 : vector<8x1xf32>
    %119 = vector.broadcast %118 : vector<8x1xf32> to vector<8x32xf32>
    %120 = arith.mulf %115, %119 : vector<8x32xf32>
    %121 = vector.broadcast %7 : vector<1x32xf32> to vector<8x32xf32>
    %122 = arith.mulf %120, %121 : vector<8x32xf32>
    %123 = vector.broadcast %8 : vector<1x32xf32> to vector<8x32xf32>
    %124 = arith.addf %122, %123 : vector<8x32xf32>
    %c0_46 = arith.constant 0 : index
    %c0_47 = arith.constant 0 : index
    %125 = vector.load %arg4[%c0_46, %c0_47] : memref<32x128xf32, #tpu.memory_space<vmem>>, vector<32x128xf32>
    %cst_48 = arith.constant dense<0.000000e+00> : vector<8x128xf32>
    %126 = tpu.matmul %124, %125, %cst_48 {dimension_numbers = #tpu.dot_dimension_numbers<[1], [0], [0], [1], [0, 0, 1, 1], [], []>} : vector<8x32xf32>, vector<32x128xf32>, vector<8x128xf32> -> vector<8x128xf32>
    %127 = vector.broadcast %2 : vector<1x128xf32> to vector<8x128xf32>
    %128 = arith.addf %126, %127 : vector<8x128xf32>
    %cst_49 = arith.constant 0.000000e+00 : f32
    %129 = vector.broadcast %cst_49 : f32 to vector<8x128xf32>
    %130 = arith.maximumf %128, %129 : vector<8x128xf32>
    %c0_50 = arith.constant 0 : index
    %c0_51 = arith.constant 0 : index
    %131 = vector.load %arg5[%c0_50, %c0_51] : memref<128x32xf32, #tpu.memory_space<vmem>>, vector<128x32xf32>
    %cst_52 = arith.constant dense<0.000000e+00> : vector<8x32xf32>
    %132 = tpu.matmul %130, %131, %cst_52 {dimension_numbers = #tpu.dot_dimension_numbers<[1], [0], [0], [1], [0, 0, 1, 1], [], []>} : vector<8x128xf32>, vector<128x32xf32>, vector<8x32xf32> -> vector<8x32xf32>
    %133 = vector.broadcast %4 : vector<1x32xf32> to vector<8x32xf32>
    %134 = arith.addf %132, %133 : vector<8x32xf32>
    %135 = arith.addf %102, %134 : vector<8x32xf32>
    %136 = vector.shape_cast %135 : vector<8x32xf32> to vector<1x8x32xf32>
    %c0_53 = arith.constant 0 : index
    %c0_54 = arith.constant 0 : index
    %c0_55 = arith.constant 0 : index
    %137 = vector.load %arg8[%c0_53, %c0_54, %c0_55] : memref<1x8x32xf32, #tpu.memory_space<vmem>>, vector<1x8x32xf32>
    tpu.vector_store %arg8[%c0_53, %c0_54, %c0_55], %136 {strides = array<i32>} : memref<1x8x32xf32, #tpu.memory_space<vmem>>, vector<1x8x32xf32>,
    return
  }
  func.func @transform_0(%arg0: i32) -> (i32, i32, i32) {
    %c0_i32 = arith.constant 0 : i32
    %c0_i32_0 = arith.constant 0 : i32
    %c0_i32_1 = arith.constant 0 : i32
    return %arg0, %c0_i32, %c0_i32_0 : i32, i32, i32
  }
  func.func @transform_1(%arg0: i32) -> (i32, i32) {
    %c0_i32 = arith.constant 0 : i32
    %c0_i32_0 = arith.constant 0 : i32
    %c0_i32_1 = arith.constant 0 : i32
    return %c0_i32, %c0_i32_0 : i32, i32
  }
  func.func @transform_2(%arg0: i32) -> (i32, i32) {
    %c0_i32 = arith.constant 0 : i32
    %c0_i32_0 = arith.constant 0 : i32
    %c0_i32_1 = arith.constant 0 : i32
    return %c0_i32, %c0_i32_0 : i32, i32
  }
  func.func @transform_3(%arg0: i32) -> (i32, i32) {
    %c0_i32 = arith.constant 0 : i32
    %c0_i32_0 = arith.constant 0 : i32
    %c0_i32_1 = arith.constant 0 : i32
    return %c0_i32, %c0_i32_0 : i32, i32
  }
  func.func @transform_4(%arg0: i32) -> (i32, i32) {
    %c0_i32 = arith.constant 0 : i32
    %c0_i32_0 = arith.constant 0 : i32
    %c0_i32_1 = arith.constant 0 : i32
    return %c0_i32, %c0_i32_0 : i32, i32
  }
  func.func @transform_5(%arg0: i32) -> (i32, i32) {
    %c0_i32 = arith.constant 0 : i32
    %c0_i32_0 = arith.constant 0 : i32
    %c0_i32_1 = arith.constant 0 : i32
    return %c0_i32, %c0_i32_0 : i32, i32
  }
  func.func @transform_6(%arg0: i32) -> (i32, i32) {
    %c0_i32 = arith.constant 0 : i32
    %c0_i32_0 = arith.constant 0 : i32
    %c0_i32_1 = arith.constant 0 : i32
    return %c0_i32, %c0_i32_0 : i32, i32
  }
  func.func @transform_7(%arg0: i32) -> (i32, i32, i32) {
    %c0_i32 = arith.constant 0 : i32
    %c0_i32_0 = arith.constant 0 : i32
    %c0_i32_1 = arith.constant 0 : i32
    return %arg0, %c0_i32, %c0_i32_0 : i32, i32, i32
  }
}

module attributes {stable_mosaic.version = 11 : i64} {
  func.func @block_kernel(%arg0: i32, %arg1: memref<1x8x32xf32, #tpu.memory_space<vmem>>, %arg2: memref<32x96xf32, #tpu.memory_space<vmem>>, %arg3: memref<32x32xf32, #tpu.memory_space<vmem>>, %arg4: memref<32x128xf32, #tpu.memory_space<vmem>>, %arg5: memref<128x32xf32, #tpu.memory_space<vmem>>, %arg6: memref<1x192xf32, #tpu.memory_space<vmem>>, %arg7: memref<4x32xf32, #tpu.memory_space<vmem>>, %arg8: memref<1x8x32xf32, #tpu.memory_space<vmem>>, %arg9: memref<8x32xf32, #tpu.memory_space<vmem>>) attributes {dimension_semantics = [#tpu.dimension_semantics<parallel>], iteration_bounds = array<i64: 2>, scalar_prefetch = 0 : i64, scratch_operands = 1 : i64, tpu.core_type = #tpu.core_type<tc>, window_params = [{transform_indices = @transform_0, window_bounds = array<i64: 1, 8, 32>}, {pipeline_mode = #tpu.pipeline_mode<synchronous>, transform_indices = @transform_1, window_bounds = array<i64: 32, 96>}, {pipeline_mode = #tpu.pipeline_mode<synchronous>, transform_indices = @transform_2, window_bounds = array<i64: 32, 32>}, {pipeline_mode = #tpu.pipeline_mode<synchronous>, transform_indices = @transform_3, window_bounds = array<i64: 32, 128>}, {pipeline_mode = #tpu.pipeline_mode<synchronous>, transform_indices = @transform_4, window_bounds = array<i64: 128, 32>}, {pipeline_mode = #tpu.pipeline_mode<synchronous>, transform_indices = @transform_5, window_bounds = array<i64: 1, 192>}, {pipeline_mode = #tpu.pipeline_mode<synchronous>, transform_indices = @transform_6, window_bounds = array<i64: 4, 32>}, {transform_indices = @transform_7, window_bounds = array<i64: 1, 8, 32>}]} {
    %c0 = arith.constant 0 : index
    %c0_0 = arith.constant 0 : index
    %c0_1 = arith.constant 0 : index
    %0 = vector.load %arg1[%c0, %c0_0, %c0_1] : memref<1x8x32xf32, #tpu.memory_space<vmem>>, vector<1x8x32xf32>
    %1 = vector.shape_cast %0 : vector<1x8x32xf32> to vector<8x32xf32>
    %c0_2 = arith.constant 0 : index
    %c0_3 = arith.constant 0 : index
    %2 = vector.load %arg6[%c0_2, %c0_3] : memref<1x192xf32, #tpu.memory_space<vmem>>, vector<1x128xf32>
    %c0_4 = arith.constant 0 : index
    %c128 = arith.constant 128 : index
    %3 = vector.load %arg6[%c0_4, %c128] : memref<1x192xf32, #tpu.memory_space<vmem>>, vector<1x32xf32>
    %c0_5 = arith.constant 0 : index
    %c160 = arith.constant 160 : index
    %4 = vector.load %arg6[%c0_5, %c160] : memref<1x192xf32, #tpu.memory_space<vmem>>, vector<1x32xf32>
    %c0_6 = arith.constant 0 : index
    %c0_7 = arith.constant 0 : index
    %5 = vector.load %arg7[%c0_6, %c0_7] : memref<4x32xf32, #tpu.memory_space<vmem>>, vector<1x32xf32>
    %c1 = arith.constant 1 : index
    %c0_8 = arith.constant 0 : index
    %6 = vector.load %arg7[%c1, %c0_8] : memref<4x32xf32, #tpu.memory_space<vmem>>, vector<1x32xf32>
    %c2 = arith.constant 2 : index
    %c0_9 = arith.constant 0 : index
    %7 = vector.load %arg7[%c2, %c0_9] : memref<4x32xf32, #tpu.memory_space<vmem>>, vector<1x32xf32>
    %c3 = arith.constant 3 : index
    %c0_10 = arith.constant 0 : index
    %8 = vector.load %arg7[%c3, %c0_10] : memref<4x32xf32, #tpu.memory_space<vmem>>, vector<1x32xf32>
    %cst = arith.constant dense<0.000000e+00> : vector<8xf32>
    %9 = vector.multi_reduction <add>, %1, %cst [1] : vector<8x32xf32> to vector<8xf32>
    %10 = vector.shape_cast %9 : vector<8xf32> to vector<8x1xf32>
    %cst_11 = arith.constant 3.200000e+01 : f32
    %11 = vector.broadcast %cst_11 : f32 to vector<8x1xf32>
    %12 = arith.divf %10, %11 : vector<8x1xf32>
    %13 = vector.broadcast %12 : vector<8x1xf32> to vector<8x32xf32>
    %14 = arith.subf %1, %13 : vector<8x32xf32>
    %15 = arith.mulf %14, %14 : vector<8x32xf32>
    %cst_12 = arith.constant dense<0.000000e+00> : vector<8xf32>
    %16 = vector.multi_reduction <add>, %15, %cst_12 [1] : vector<8x32xf32> to vector<8xf32>
    %17 = vector.shape_cast %16 : vector<8xf32> to vector<8x1xf32>
    %cst_13 = arith.constant 3.200000e+01 : f32
    %18 = vector.broadcast %cst_13 : f32 to vector<8x1xf32>
    %19 = arith.divf %17, %18 : vector<8x1xf32>
    %20 = vector.broadcast %12 : vector<8x1xf32> to vector<8x32xf32>
    %21 = arith.subf %1, %20 : vector<8x32xf32>
    %cst_14 = arith.constant 9.99999974E-6 : f32
    %22 = vector.broadcast %cst_14 : f32 to vector<8x1xf32>
    %23 = arith.addf %19, %22 : vector<8x1xf32>
    %24 = math.rsqrt %23 : vector<8x1xf32>
    %25 = vector.broadcast %24 : vector<8x1xf32> to vector<8x32xf32>
    %26 = arith.mulf %21, %25 : vector<8x32xf32>
    %27 = vector.broadcast %5 : vector<1x32xf32> to vector<8x32xf32>
    %28 = arith.mulf %26, %27 : vector<8x32xf32>
    %29 = vector.broadcast %6 : vector<1x32xf32> to vector<8x32xf32>
    %30 = arith.addf %28, %29 : vector<8x32xf32>
    %c0_15 = arith.constant 0 : index
    %c0_16 = arith.constant 0 : index
    %31 = vector.load %arg2[%c0_15, %c0_16] : memref<32x96xf32, #tpu.memory_space<vmem>>, vector<32x96xf32>
    %cst_17 = arith.constant dense<0.000000e+00> : vector<8x96xf32>
    %32 = tpu.matmul %30, %31, %cst_17 {dimension_numbers = #tpu.dot_dimension_numbers<[1], [0], [0], [1], [0, 0, 1, 1], [], []>} : vector<8x32xf32>, vector<32x96xf32>, vector<8x96xf32> -> vector<8x96xf32>
    %33 = vector.shape_cast %32 : vector<8x96xf32> to vector<1x8x96xf32>
    %34 = vector.extract_strided_slice %33 {offsets = [0, 0, 0], sizes = [1, 8, 8], strides = [1, 1, 1]} : vector<1x8x96xf32> to vector<1x8x8xf32>
    %35 = vector.extract_strided_slice %33 {offsets = [0, 0, 32], sizes = [1, 8, 8], strides = [1, 1, 1]} : vector<1x8x96xf32> to vector<1x8x8xf32>
    %36 = vector.extract_strided_slice %33 {offsets = [0, 0, 64], sizes = [1, 8, 8], strides = [1, 1, 1]} : vector<1x8x96xf32> to vector<1x8x8xf32>
    "tpu.trace_start"() <{level = 10 : i32, message = "btd,bsd->bts"}> : () -> ()
    %cst_18 = arith.constant dense<0.000000e+00> : vector<1x8x8xf32>
    %37 = tpu.matmul %34, %35, %cst_18 {dimension_numbers = #tpu.dot_dimension_numbers<[2], [2], [1], [1], [0, 0, 0, 1, 1, 1], [0], [0]>} : vector<1x8x8xf32>, vector<1x8x8xf32>, vector<1x8x8xf32> -> vector<1x8x8xf32>
    "tpu.trace_stop"() : () -> ()
    %cst_19 = arith.constant dense<0xFF800000> : vector<1x8xf32>
    %38 = vector.multi_reduction <maximumf>, %37, %cst_19 [2] : vector<1x8x8xf32> to vector<1x8xf32>
    %39 = vector.shape_cast %38 : vector<1x8xf32> to vector<1x8x1xf32>
    %40 = vector.broadcast %39 : vector<1x8x1xf32> to vector<1x8x8xf32>
    %41 = arith.subf %37, %40 : vector<1x8x8xf32>
    %42 = math.exp %41 : vector<1x8x8xf32>
    %cst_20 = arith.constant dense<0.000000e+00> : vector<1x8xf32>
    %43 = vector.multi_reduction <add>, %42, %cst_20 [2] : vector<1x8x8xf32> to vector<1x8xf32>
    %44 = vector.shape_cast %43 : vector<1x8xf32> to vector<1x8x1xf32>
    %45 = tpu.reciprocal %44 : vector<1x8x1xf32> -> vector<1x8x1xf32>
    %46 = vector.broadcast %45 : vector<1x8x1xf32> to vector<1x8x8xf32>
    %47 = arith.mulf %42, %46 : vector<1x8x8xf32>
    "tpu.trace_start"() <{level = 10 : i32, message = "bts,bsd->btd"}> : () -> ()
    %cst_21 = arith.constant dense<0.000000e+00> : vector<1x8x8xf32>
    %48 = tpu.matmul %47, %36, %cst_21 {dimension_numbers = #tpu.dot_dimension_numbers<[2], [1], [1], [2], [0, 0, 0, 1, 1, 2], [0], [0]>} : vector<1x8x8xf32>, vector<1x8x8xf32>, vector<1x8x8xf32> -> vector<1x8x8xf32>
    "tpu.trace_stop"() : () -> ()
    %49 = vector.extract_strided_slice %33 {offsets = [0, 0, 8], sizes = [1, 8, 8], strides = [1, 1, 1]} : vector<1x8x96xf32> to vector<1x8x8xf32>
    %50 = vector.extract_strided_slice %33 {offsets = [0, 0, 40], sizes = [1, 8, 8], strides = [1, 1, 1]} : vector<1x8x96xf32> to vector<1x8x8xf32>
    %51 = vector.extract_strided_slice %33 {offsets = [0, 0, 72], sizes = [1, 8, 8], strides = [1, 1, 1]} : vector<1x8x96xf32> to vector<1x8x8xf32>
    "tpu.trace_start"() <{level = 10 : i32, message = "btd,bsd->bts"}> : () -> ()
    %cst_22 = arith.constant dense<0.000000e+00> : vector<1x8x8xf32>
    %52 = tpu.matmul %49, %50, %cst_22 {dimension_numbers = #tpu.dot_dimension_numbers<[2], [2], [1], [1], [0, 0, 0, 1, 1, 1], [0], [0]>} : vector<1x8x8xf32>, vector<1x8x8xf32>, vector<1x8x8xf32> -> vector<1x8x8xf32>
    "tpu.trace_stop"() : () -> ()
    %cst_23 = arith.constant dense<0xFF800000> : vector<1x8xf32>
    %53 = vector.multi_reduction <maximumf>, %52, %cst_23 [2] : vector<1x8x8xf32> to vector<1x8xf32>
    %54 = vector.shape_cast %53 : vector<1x8xf32> to vector<1x8x1xf32>
    %55 = vector.broadcast %54 : vector<1x8x1xf32> to vector<1x8x8xf32>
    %56 = arith.subf %52, %55 : vector<1x8x8xf32>
    %57 = math.exp %56 : vector<1x8x8xf32>
    %cst_24 = arith.constant dense<0.000000e+00> : vector<1x8xf32>
    %58 = vector.multi_reduction <add>, %57, %cst_24 [2] : vector<1x8x8xf32> to vector<1x8xf32>
    %59 = vector.shape_cast %58 : vector<1x8xf32> to vector<1x8x1xf32>
    %60 = tpu.reciprocal %59 : vector<1x8x1xf32> -> vector<1x8x1xf32>
    %61 = vector.broadcast %60 : vector<1x8x1xf32> to vector<1x8x8xf32>
    %62 = arith.mulf %57, %61 : vector<1x8x8xf32>
    "tpu.trace_start"() <{level = 10 : i32, message = "bts,bsd->btd"}> : () -> ()
    %cst_25 = arith.constant dense<0.000000e+00> : vector<1x8x8xf32>
    %63 = tpu.matmul %62, %51, %cst_25 {dimension_numbers = #tpu.dot_dimension_numbers<[2], [1], [1], [2], [0, 0, 0, 1, 1, 2], [0], [0]>} : vector<1x8x8xf32>, vector<1x8x8xf32>, vector<1x8x8xf32> -> vector<1x8x8xf32>
    "tpu.trace_stop"() : () -> ()
    %64 = vector.extract_strided_slice %33 {offsets = [0, 0, 16], sizes = [1, 8, 8], strides = [1, 1, 1]} : vector<1x8x96xf32> to vector<1x8x8xf32>
    %65 = vector.extract_strided_slice %33 {offsets = [0, 0, 48], sizes = [1, 8, 8], strides = [1, 1, 1]} : vector<1x8x96xf32> to vector<1x8x8xf32>
    %66 = vector.extract_strided_slice %33 {offsets = [0, 0, 80], sizes = [1, 8, 8], strides = [1, 1, 1]} : vector<1x8x96xf32> to vector<1x8x8xf32>
    "tpu.trace_start"() <{level = 10 : i32, message = "btd,bsd->bts"}> : () -> ()
    %cst_26 = arith.constant dense<0.000000e+00> : vector<1x8x8xf32>
    %67 = tpu.matmul %64, %65, %cst_26 {dimension_numbers = #tpu.dot_dimension_numbers<[2], [2], [1], [1], [0, 0, 0, 1, 1, 1], [0], [0]>} : vector<1x8x8xf32>, vector<1x8x8xf32>, vector<1x8x8xf32> -> vector<1x8x8xf32>
    "tpu.trace_stop"() : () -> ()
    %cst_27 = arith.constant dense<0xFF800000> : vector<1x8xf32>
    %68 = vector.multi_reduction <maximumf>, %67, %cst_27 [2] : vector<1x8x8xf32> to vector<1x8xf32>
    %69 = vector.shape_cast %68 : vector<1x8xf32> to vector<1x8x1xf32>
    %70 = vector.broadcast %69 : vector<1x8x1xf32> to vector<1x8x8xf32>
    %71 = arith.subf %67, %70 : vector<1x8x8xf32>
    %72 = math.exp %71 : vector<1x8x8xf32>
    %cst_28 = arith.constant dense<0.000000e+00> : vector<1x8xf32>
    %73 = vector.multi_reduction <add>, %72, %cst_28 [2] : vector<1x8x8xf32> to vector<1x8xf32>
    %74 = vector.shape_cast %73 : vector<1x8xf32> to vector<1x8x1xf32>
    %75 = tpu.reciprocal %74 : vector<1x8x1xf32> -> vector<1x8x1xf32>
    %76 = vector.broadcast %75 : vector<1x8x1xf32> to vector<1x8x8xf32>
    %77 = arith.mulf %72, %76 : vector<1x8x8xf32>
    "tpu.trace_start"() <{level = 10 : i32, message = "bts,bsd->btd"}> : () -> ()
    %cst_29 = arith.constant dense<0.000000e+00> : vector<1x8x8xf32>
    %78 = tpu.matmul %77, %66, %cst_29 {dimension_numbers = #tpu.dot_dimension_numbers<[2], [1], [1], [2], [0, 0, 0, 1, 1, 2], [0], [0]>} : vector<1x8x8xf32>, vector<1x8x8xf32>, vector<1x8x8xf32> -> vector<1x8x8xf32>
    "tpu.trace_stop"() : () -> ()
    %79 = vector.extract_strided_slice %33 {offsets = [0, 0, 24], sizes = [1, 8, 8], strides = [1, 1, 1]} : vector<1x8x96xf32> to vector<1x8x8xf32>
    %80 = vector.extract_strided_slice %33 {offsets = [0, 0, 56], sizes = [1, 8, 8], strides = [1, 1, 1]} : vector<1x8x96xf32> to vector<1x8x8xf32>
    %81 = vector.extract_strided_slice %33 {offsets = [0, 0, 88], sizes = [1, 8, 8], strides = [1, 1, 1]} : vector<1x8x96xf32> to vector<1x8x8xf32>
    "tpu.trace_start"() <{level = 10 : i32, message = "btd,bsd->bts"}> : () -> ()
    %cst_30 = arith.constant dense<0.000000e+00> : vector<1x8x8xf32>
    %82 = tpu.matmul %79, %80, %cst_30 {dimension_numbers = #tpu.dot_dimension_numbers<[2], [2], [1], [1], [0, 0, 0, 1, 1, 1], [0], [0]>} : vector<1x8x8xf32>, vector<1x8x8xf32>, vector<1x8x8xf32> -> vector<1x8x8xf32>
    "tpu.trace_stop"() : () -> ()
    %cst_31 = arith.constant dense<0xFF800000> : vector<1x8xf32>
    %83 = vector.multi_reduction <maximumf>, %82, %cst_31 [2] : vector<1x8x8xf32> to vector<1x8xf32>
    %84 = vector.shape_cast %83 : vector<1x8xf32> to vector<1x8x1xf32>
    %85 = vector.broadcast %84 : vector<1x8x1xf32> to vector<1x8x8xf32>
    %86 = arith.subf %82, %85 : vector<1x8x8xf32>
    %87 = math.exp %86 : vector<1x8x8xf32>
    %cst_32 = arith.constant dense<0.000000e+00> : vector<1x8xf32>
    %88 = vector.multi_reduction <add>, %87, %cst_32 [2] : vector<1x8x8xf32> to vector<1x8xf32>
    %89 = vector.shape_cast %88 : vector<1x8xf32> to vector<1x8x1xf32>
    %90 = tpu.reciprocal %89 : vector<1x8x1xf32> -> vector<1x8x1xf32>
    %91 = vector.broadcast %90 : vector<1x8x1xf32> to vector<1x8x8xf32>
    %92 = arith.mulf %87, %91 : vector<1x8x8xf32>
    "tpu.trace_start"() <{level = 10 : i32, message = "bts,bsd->btd"}> : () -> ()
    %cst_33 = arith.constant dense<0.000000e+00> : vector<1x8x8xf32>
    %93 = tpu.matmul %92, %81, %cst_33 {dimension_numbers = #tpu.dot_dimension_numbers<[2], [1], [1], [2], [0, 0, 0, 1, 1, 2], [0], [0]>} : vector<1x8x8xf32>, vector<1x8x8xf32>, vector<1x8x8xf32> -> vector<1x8x8xf32>
    "tpu.trace_stop"() : () -> ()
    %94 = tpu.concatenate %48, %63, %78, %93 in 2 : vector<1x8x8xf32>, vector<1x8x8xf32>, vector<1x8x8xf32>, vector<1x8x8xf32> -> vector<1x8x32xf32>
    %95 = vector.shape_cast %94 : vector<1x8x32xf32> to vector<8x32xf32>
    %c0_34 = arith.constant 0 : index
    %c0_35 = arith.constant 0 : index
    %96 = vector.load %arg9[%c0_34, %c0_35] : memref<8x32xf32, #tpu.memory_space<vmem>>, vector<8x32xf32>
    tpu.vector_store %arg9[%c0_34, %c0_35], %95 {strides = array<i32>} : memref<8x32xf32, #tpu.memory_space<vmem>>, vector<8x32xf32>,
    %c0_36 = arith.constant 0 : index
    %c0_37 = arith.constant 0 : index
    %97 = vector.load %arg9[%c0_36, %c0_37] : memref<8x32xf32, #tpu.memory_space<vmem>>, vector<8x32xf32>
    %c0_38 = arith.constant 0 : index
    %c0_39 = arith.constant 0 : index
    %98 = vector.load %arg3[%c0_38, %c0_39] : memref<32x32xf32, #tpu.memory_space<vmem>>, vector<32x32xf32>
    %cst_40 = arith.constant dense<0.000000e+00> : vector<8x32xf32>
    %99 = tpu.matmul %97, %98, %cst_40 {dimension_numbers = #tpu.dot_dimension_numbers<[1], [0], [0], [1], [0, 0, 1, 1], [], []>} : vector<8x32xf32>, vector<32x32xf32>, vector<8x32xf32> -> vector<8x32xf32>
    %100 = vector.broadcast %3 : vector<1x32xf32> to vector<8x32xf32>
    %101 = arith.addf %99, %100 : vector<8x32xf32>
    %102 = arith.addf %1, %101 : vector<8x32xf32>
    %cst_41 = arith.constant dense<0.000000e+00> : vector<8xf32>
    %103 = vector.multi_reduction <add>, %102, %cst_41 [1] : vector<8x32xf32> to vector<8xf32>
    %104 = vector.shape_cast %103 : vector<8xf32> to vector<8x1xf32>
    %cst_42 = arith.constant 3.200000e+01 : f32
    %105 = vector.broadcast %cst_42 : f32 to vector<8x1xf32>
    %106 = arith.divf %104, %105 : vector<8x1xf32>
    %107 = vector.broadcast %106 : vector<8x1xf32> to vector<8x32xf32>
    %108 = arith.subf %102, %107 : vector<8x32xf32>
    %109 = arith.mulf %108, %108 : vector<8x32xf32>
    %cst_43 = arith.constant dense<0.000000e+00> : vector<8xf32>
    %110 = vector.multi_reduction <add>, %109, %cst_43 [1] : vector<8x32xf32> to vector<8xf32>
    %111 = vector.shape_cast %110 : vector<8xf32> to vector<8x1xf32>
    %cst_44 = arith.constant 3.200000e+01 : f32
    %112 = vector.broadcast %cst_44 : f32 to vector<8x1xf32>
    %113 = arith.divf %111, %112 : vector<8x1xf32>
    %114 = vector.broadcast %106 : vector<8x1xf32> to vector<8x32xf32>
    %115 = arith.subf %102, %114 : vector<8x32xf32>
    %cst_45 = arith.constant 9.99999974E-6 : f32
    %116 = vector.broadcast %cst_45 : f32 to vector<8x1xf32>
    %117 = arith.addf %113, %116 : vector<8x1xf32>
    %118 = math.rsqrt %117 : vector<8x1xf32>
    %119 = vector.broadcast %118 : vector<8x1xf32> to vector<8x32xf32>
    %120 = arith.mulf %115, %119 : vector<8x32xf32>
    %121 = vector.broadcast %7 : vector<1x32xf32> to vector<8x32xf32>
    %122 = arith.mulf %120, %121 : vector<8x32xf32>
    %123 = vector.broadcast %8 : vector<1x32xf32> to vector<8x32xf32>
    %124 = arith.addf %122, %123 : vector<8x32xf32>
    %c0_46 = arith.constant 0 : index
    %c0_47 = arith.constant 0 : index
    %125 = vector.load %arg4[%c0_46, %c0_47] : memref<32x128xf32, #tpu.memory_space<vmem>>, vector<32x128xf32>
    %cst_48 = arith.constant dense<0.000000e+00> : vector<8x128xf32>
    %126 = tpu.matmul %124, %125, %cst_48 {dimension_numbers = #tpu.dot_dimension_numbers<[1], [0], [0], [1], [0, 0, 1, 1], [], []>} : vector<8x32xf32>, vector<32x128xf32>, vector<8x128xf32> -> vector<8x128xf32>
    %127 = vector.broadcast %2 : vector<1x128xf32> to vector<8x128xf32>
    %128 = arith.addf %126, %127 : vector<8x128xf32>
    %cst_49 = arith.constant 0.000000e+00 : f32
    %129 = vector.broadcast %cst_49 : f32 to vector<8x128xf32>
    %130 = arith.maximumf %128, %129 : vector<8x128xf32>
    %c0_50 = arith.constant 0 : index
    %c0_51 = arith.constant 0 : index
    %131 = vector.load %arg5[%c0_50, %c0_51] : memref<128x32xf32, #tpu.memory_space<vmem>>, vector<128x32xf32>
    %cst_52 = arith.constant dense<0.000000e+00> : vector<8x32xf32>
    %132 = tpu.matmul %130, %131, %cst_52 {dimension_numbers = #tpu.dot_dimension_numbers<[1], [0], [0], [1], [0, 0, 1, 1], [], []>} : vector<8x128xf32>, vector<128x32xf32>, vector<8x32xf32> -> vector<8x32xf32>
    %133 = vector.broadcast %4 : vector<1x32xf32> to vector<8x32xf32>
    %134 = arith.addf %132, %133 : vector<8x32xf32>
    %135 = arith.addf %102, %134 : vector<8x32xf32>
    %136 = vector.shape_cast %135 : vector<8x32xf32> to vector<1x8x32xf32>
    %c0_53 = arith.constant 0 : index
    %c0_54 = arith.constant 0 : index
    %c0_55 = arith.constant 0 : index
    %137 = vector.load %arg8[%c0_53, %c0_54, %c0_55] : memref<1x8x32xf32, #tpu.memory_space<vmem>>, vector<1x8x32xf32>
    tpu.vector_store %arg8[%c0_53, %c0_54, %c0_55], %136 {strides = array<i32>} : memref<1x8x32xf32, #tpu.memory_space<vmem>>, vector<1x8x32xf32>,
    return
  }
  func.func @transform_0(%arg0: i32) -> (i32, i32, i32) {
    %c0_i32 = arith.constant 0 : i32
    %c0_i32_0 = arith.constant 0 : i32
    %c0_i32_1 = arith.constant 0 : i32
    return %arg0, %c0_i32, %c0_i32_0 : i32, i32, i32
  }
  func.func @transform_1(%arg0: i32) -> (i32, i32) {
    %c0_i32 = arith.constant 0 : i32
    %c0_i32_0 = arith.constant 0 : i32
    %c0_i32_1 = arith.constant 0 : i32
    return %c0_i32, %c0_i32_0 : i32, i32
  }
  func.func @transform_2(%arg0: i32) -> (i32, i32) {
    %c0_i32 = arith.constant 0 : i32
    %c0_i32_0 = arith.constant 0 : i32
    %c0_i32_1 = arith.constant 0 : i32
    return %c0_i32, %c0_i32_0 : i32, i32
  }
  func.func @transform_3(%arg0: i32) -> (i32, i32) {
    %c0_i32 = arith.constant 0 : i32
    %c0_i32_0 = arith.constant 0 : i32
    %c0_i32_1 = arith.constant 0 : i32
    return %c0_i32, %c0_i32_0 : i32, i32
  }
  func.func @transform_4(%arg0: i32) -> (i32, i32) {
    %c0_i32 = arith.constant 0 : i32
    %c0_i32_0 = arith.constant 0 : i32
    %c0_i32_1 = arith.constant 0 : i32
    return %c0_i32, %c0_i32_0 : i32, i32
  }
  func.func @transform_5(%arg0: i32) -> (i32, i32) {
    %c0_i32 = arith.constant 0 : i32
    %c0_i32_0 = arith.constant 0 : i32
    %c0_i32_1 = arith.constant 0 : i32
    return %c0_i32, %c0_i32_0 : i32, i32
  }
  func.func @transform_6(%arg0: i32) -> (i32, i32) {
    %c0_i32 = arith.constant 0 : i32
    %c0_i32_0 = arith.constant 0 : i32
    %c0_i32_1 = arith.constant 0 : i32
    return %c0_i32, %c0_i32_0 : i32, i32
  }
  func.func @transform_7(%arg0: i32) -> (i32, i32, i32) {
    %c0_i32 = arith.constant 0 : i32
    %c0_i32_0 = arith.constant 0 : i32
    %c0_i32_1 = arith.constant 0 : i32
    return %arg0, %c0_i32, %c0_i32_0 : i32, i32, i32
  }
}

</mosaic_0001>

<llo_original>
// kernel: tpu_custom_call.1
$region0: #{tpu_custom_call.1}
  #allocation0 [shape = 'u32[]', space=smem, size = 0x4, offset = 0x4, fixed_abs, tag = 'smem constant byte address 0x4 - core index']
  #allocation1 [shape = 'u32[144,128]{1,0:T(1,128)}', space=vmem, size = 0x12000, scoped, tag = 'internal scratch']
  #allocation2 [shape = 'f32[8,32]{1,0:T(8,128)}', space=vmem, size = 0x1000, scoped, tag = 'scratch operand']
  %s0 = inlined_call_operand.vmem [shape: f32[2,8,32], index: 0, kind: input, shape index: {}]
  %s1 = inlined_call_operand.vmem [shape: f32[32,96], index: 1, kind: input, shape index: {}]
  %s2 = inlined_call_operand.vmem [shape: f32[32,32], index: 2, kind: input, shape index: {}]
  %s3 = inlined_call_operand.vmem [shape: f32[32,128], index: 3, kind: input, shape index: {}]
  %s4 = inlined_call_operand.vmem [shape: f32[128,32], index: 4, kind: input, shape index: {}]
  %s5 = inlined_call_operand.vmem [shape: f32[1,192], index: 5, kind: input, shape index: {}]
  %s6 = inlined_call_operand.vmem [shape: f32[4,32], index: 6, kind: input, shape index: {}]
  %s7 = inlined_call_operand.hbm [shape: f32[2,8,32], index: 7, kind: output, shape index: {}]
  %s8 = sld [smem:[#allocation0]]
  $region61: #{tpu_custom_call.1} parent=0
    _
  %s10 = ssub.s32 1, %s8
  %s11 = scalar_select 0, %s10, %s8
  $region1: #{tpu_custom_call.1} parent=0
    #allocation3 [shape = 'u8[8192]{0}', space=vmem, size = 0x2000, scoped, tag = 'output window, operand 0']
    #allocation4 [shape = 's32[2]{0}', space=sflag, size = 0x8, scoped, tag = 'scoped memory for tpu_custom_call.1']
    %12 = vsyncpa [#allocation4], 0
    %s13 = scalar_lea.sflag [#allocation4], 1
    %14 = vsyncpa %s13, 0
    loop: start=0, step=1, limit=4
    $region2: #{tpu_custom_call.1} parent=1 // loop_pre_header
      _
    $region3: #{tpu_custom_call.1} parent=1 // loop_header
      %s16 = sphi 0, %s20
      %p17 = scmp.ge.s32.totalorder %s16, 4
      %s26 = sphi 0, %s28
      %s29 = sphi 0, %s26
      %s30 = sphi 0, %s29
      %s46 = sphi 0, %s30
      %s50 = sphi 0, %s50
      %s52 = sphi 0, %s50
      %s53 = sphi 0, %s52
      %s67 = sphi 0, %s53
      %s71 = sphi 0, %s71
      %s73 = sphi 0, %s71
      %s74 = sphi 0, %s73
      %s88 = sphi 0, %s74
      %s92 = sphi 0, %s92
      %s94 = sphi 0, %s92
      %s95 = sphi 0, %s94
      %s109 = sphi 0, %s95
      %s113 = sphi 0, %s113
      %s115 = sphi 0, %s113
      %s116 = sphi 0, %s115
      %s130 = sphi 0, %s116
      %s134 = sphi 0, %s134
      %s136 = sphi 0, %s134
      %s137 = sphi 0, %s136
      %s151 = sphi 0, %s137
      %s155 = sphi 0, %s155
      %s157 = sphi 0, %s155
      %s158 = sphi 0, %s157
      %s172 = sphi 0, %s158
      %s178 = sphi 0, %s180
      %s181 = sphi 0, %s178
      %s182 = sphi 0, %s181
      %s198 = sphi 0, %s182
    $region4: #{tpu_custom_call.1} parent=1 // loop_header_branch
      %19 = sbr.rel (%p17) target = $region8
    $region5: #{tpu_custom_call.1} parent=1 // loop_body
      %s21 = ssub.s32 %s16, 1
      %s22 = ssub.s32 %s16, 2
      %s23 = sadd.s32 %s16, 1
      %s24 = ssub.s32 %s16, %s23
      %p25 = scmp.eq.s32.totalorder %s24, 0
      %s27 = sadd.s32 %s26, 1
      %s28 = scalar_select %p25, %s26, %s27
      %p31 = pneg %p25
      %p32 = scmp.eq.s32.totalorder %s16, 1
      %p33 = por %p31, %p32
      %p34 = scmp.ne.s32.totalorder %s26, %s29
      %p35 = scmp.eq.s32.totalorder %s16, 0
      %p36 = por %p34, %p35
      %p37 = scmp.ne.s32.totalorder %s26, %s29
      %p38 = scmp.eq.s32.totalorder %s21, 1
      %p39 = por %p37, %p38
      %p40 = scmp.ne.s32.totalorder %s29, %s30
      %p41 = scmp.eq.s32.totalorder %s21, 0
      %p42 = por %p40, %p41
      %p43 = scmp.ne.s32.totalorder %s29, %s30
      %p44 = scmp.eq.s32.totalorder %s22, 1
      %p45 = por %p43, %p44
      %p47 = scmp.ne.s32.totalorder %s30, %s46
      %p48 = scmp.eq.s32.totalorder %s22, 0
      %p49 = por %p47, %p48
      %s51 = sadd.s32 %s50, 1
      %p54 = scmp.eq.s32.totalorder %s16, 1
      %p55 = scmp.ne.s32.totalorder %s50, %s52
      %p56 = scmp.eq.s32.totalorder %s16, 0
      %p57 = por %p55, %p56
      %p58 = scmp.ne.s32.totalorder %s50, %s52
      %p59 = scmp.eq.s32.totalorder %s21, 1
      %p60 = por %p58, %p59
      %p61 = scmp.ne.s32.totalorder %s52, %s53
      %p62 = scmp.eq.s32.totalorder %s21, 0
      %p63 = por %p61, %p62
      %p64 = scmp.ne.s32.totalorder %s52, %s53
      %p65 = scmp.eq.s32.totalorder %s22, 1
      %p66 = por %p64, %p65
      %p68 = scmp.ne.s32.totalorder %s53, %s67
      %p69 = scmp.eq.s32.totalorder %s22, 0
      %p70 = por %p68, %p69
      %s72 = sadd.s32 %s71, 1
      %p75 = scmp.eq.s32.totalorder %s16, 1
      %p76 = scmp.ne.s32.totalorder %s71, %s73
      %p77 = scmp.eq.s32.totalorder %s16, 0
      %p78 = por %p76, %p77
      %p79 = scmp.ne.s32.totalorder %s71, %s73
      %p80 = scmp.eq.s32.totalorder %s21, 1
      %p81 = por %p79, %p80
      %p82 = scmp.ne.s32.totalorder %s73, %s74
      %p83 = scmp.eq.s32.totalorder %s21, 0
      %p84 = por %p82, %p83
      %p85 = scmp.ne.s32.totalorder %s73, %s74
      %p86 = scmp.eq.s32.totalorder %s22, 1
      %p87 = por %p85, %p86
      %p89 = scmp.ne.s32.totalorder %s74, %s88
      %p90 = scmp.eq.s32.totalorder %s22, 0
      %p91 = por %p89, %p90
      %s93 = sadd.s32 %s92, 1
      %p96 = scmp.eq.s32.totalorder %s16, 1
      %p97 = scmp.ne.s32.totalorder %s92, %s94
      %p98 = scmp.eq.s32.totalorder %s16, 0
      %p99 = por %p97, %p98
      %p100 = scmp.ne.s32.totalorder %s92, %s94
      %p101 = scmp.eq.s32.totalorder %s21, 1
      %p102 = por %p100, %p101
      %p103 = scmp.ne.s32.totalorder %s94, %s95
      %p104 = scmp.eq.s32.totalorder %s21, 0
      %p105 = por %p103, %p104
      %p106 = scmp.ne.s32.totalorder %s94, %s95
      %p107 = scmp.eq.s32.totalorder %s22, 1
      %p108 = por %p106, %p107
      %p110 = scmp.ne.s32.totalorder %s95, %s109
      %p111 = scmp.eq.s32.totalorder %s22, 0
      %p112 = por %p110, %p111
      %s114 = sadd.s32 %s113, 1
      %p117 = scmp.eq.s32.totalorder %s16, 1
      %p118 = scmp.ne.s32.totalorder %s113, %s115
      %p119 = scmp.eq.s32.totalorder %s16, 0
      %p120 = por %p118, %p119
      %p121 = scmp.ne.s32.totalorder %s113, %s115
      %p122 = scmp.eq.s32.totalorder %s21, 1
      %p123 = por %p121, %p122
      %p124 = scmp.ne.s32.totalorder %s115, %s116
      %p125 = scmp.eq.s32.totalorder %s21, 0
      %p126 = por %p124, %p125
      %p127 = scmp.ne.s32.totalorder %s115, %s116
      %p128 = scmp.eq.s32.totalorder %s22, 1
      %p129 = por %p127, %p128
      %p131 = scmp.ne.s32.totalorder %s116, %s130
      %p132 = scmp.eq.s32.totalorder %s22, 0
      %p133 = por %p131, %p132
      %s135 = sadd.s32 %s134, 1
      %p138 = scmp.eq.s32.totalorder %s16, 1
      %p139 = scmp.ne.s32.totalorder %s134, %s136
      %p140 = scmp.eq.s32.totalorder %s16, 0
      %p141 = por %p139, %p140
      %p142 = scmp.ne.s32.totalorder %s134, %s136
      %p143 = scmp.eq.s32.totalorder %s21, 1
      %p144 = por %p142, %p143
      %p145 = scmp.ne.s32.totalorder %s136, %s137
      %p146 = scmp.eq.s32.totalorder %s21, 0
      %p147 = por %p145, %p146
      %p148 = scmp.ne.s32.totalorder %s136, %s137
      %p149 = scmp.eq.s32.totalorder %s22, 1
      %p150 = por %p148, %p149
      %p152 = scmp.ne.s32.totalorder %s137, %s151
      %p153 = scmp.eq.s32.totalorder %s22, 0
      %p154 = por %p152, %p153
      %s156 = sadd.s32 %s155, 1
      %p159 = scmp.eq.s32.totalorder %s16, 1
      %p160 = scmp.ne.s32.totalorder %s155, %s157
      %p161 = scmp.eq.s32.totalorder %s16, 0
      %p162 = por %p160, %p161
      %p163 = scmp.ne.s32.totalorder %s155, %s157
      %p164 = scmp.eq.s32.totalorder %s21, 1
      %p165 = por %p163, %p164
      %p166 = scmp.ne.s32.totalorder %s157, %s158
      %p167 = scmp.eq.s32.totalorder %s21, 0
      %p168 = por %p166, %p167
      %p169 = scmp.ne.s32.totalorder %s157, %s158
      %p170 = scmp.eq.s32.totalorder %s22, 1
      %p171 = por %p169, %p170
      %p173 = scmp.ne.s32.totalorder %s158, %s172
      %p174 = scmp.eq.s32.totalorder %s22, 0
      %p175 = por %p173, %p174
      %s176 = ssub.s32 %s16, %s23
      %p177 = scmp.eq.s32.totalorder %s176, 0
      %s179 = sadd.s32 %s178, 1
      %s180 = scalar_select %p177, %s178, %s179
      %p183 = pneg %p177
      %p184 = scmp.eq.s32.totalorder %s16, 1
      %p185 = por %p183, %p184
      %p186 = scmp.ne.s32.totalorder %s178, %s181
      %p187 = scmp.eq.s32.totalorder %s16, 0
      %p188 = por %p186, %p187
      %p189 = scmp.ne.s32.totalorder %s178, %s181
      %p190 = scmp.eq.s32.totalorder %s21, 1
      %p191 = por %p189, %p190
      %p192 = scmp.ne.s32.totalorder %s181, %s182
      %p193 = scmp.eq.s32.totalorder %s21, 0
      %p194 = por %p192, %p193
      %p195 = scmp.ne.s32.totalorder %s181, %s182
      %p196 = scmp.eq.s32.totalorder %s22, 1
      %p197 = por %p195, %p196
      %p199 = scmp.ne.s32.totalorder %s182, %s198
      %p200 = scmp.eq.s32.totalorder %s22, 0
      %p201 = por %p199, %p200
      %p202 = scmp.le.s32.totalorder 1, %s16
      %p203 = scmp.lt.s32.totalorder %s16, 3
      %p204 = pnand %p202, %p203
      %p205 = pneg %p204
      // Predicated region
      $region9: #{tpu_custom_call.1} parent=5 // pred_check
        _
      $region10: #{tpu_custom_call.1} parent=5 // pred_check_branch
        %207 = sbr.rel (%p204) target = $region12
      $region11: #{tpu_custom_call.1} parent=5 // pred_region
        %s208 = ssub.s32 %s16, 1
        // Predicated region
        $region13: #{tpu_custom_call.1} parent=11 // pred_check
          %p209 = pneg %p63
        $region14: #{tpu_custom_call.1} parent=11 // pred_check_branch
          %211 = sbr.rel (%p209) target = $region16
        $region15: #{tpu_custom_call.1} parent=11 // pred_region
          _
        $region16: #{tpu_custom_call.1} parent=11 // pred_fallthru
          _
        // Predicated region
        $region17: #{tpu_custom_call.1} parent=11 // pred_check
          %p212 = pneg %p84
        $region18: #{tpu_custom_call.1} parent=11 // pred_check_branch
          %214 = sbr.rel (%p212) target = $region20
        $region19: #{tpu_custom_call.1} parent=11 // pred_region
          _
        $region20: #{tpu_custom_call.1} parent=11 // pred_fallthru
          _
        // Predicated region
        $region21: #{tpu_custom_call.1} parent=11 // pred_check
          %p215 = pneg %p105
        $region22: #{tpu_custom_call.1} parent=11 // pred_check_branch
          %217 = sbr.rel (%p215) target = $region24
        $region23: #{tpu_custom_call.1} parent=11 // pred_region
          _
        $region24: #{tpu_custom_call.1} parent=11 // pred_fallthru
          _
        // Predicated region
        $region25: #{tpu_custom_call.1} parent=11 // pred_check
          %p218 = pneg %p126
        $region26: #{tpu_custom_call.1} parent=11 // pred_check_branch
          %220 = sbr.rel (%p218) target = $region28
        $region27: #{tpu_custom_call.1} parent=11 // pred_region
          _
        $region28: #{tpu_custom_call.1} parent=11 // pred_fallthru
          _
        // Predicated region
        $region29: #{tpu_custom_call.1} parent=11 // pred_check
          %p221 = pneg %p147
        $region30: #{tpu_custom_call.1} parent=11 // pred_check_branch
          %223 = sbr.rel (%p221) target = $region32
        $region31: #{tpu_custom_call.1} parent=11 // pred_region
          _
        $region32: #{tpu_custom_call.1} parent=11 // pred_fallthru
          _
        // Predicated region
        $region33: #{tpu_custom_call.1} parent=11 // pred_check
          %p224 = pneg %p168
        $region34: #{tpu_custom_call.1} parent=11 // pred_check_branch
          %226 = sbr.rel (%p224) target = $region36
        $region35: #{tpu_custom_call.1} parent=11 // pred_region
          _
        $region36: #{tpu_custom_call.1} parent=11 // pred_fallthru
          _
      $region12: #{tpu_custom_call.1} parent=5 // pred_fallthru
        _
      %p227 = scmp.lt.s32.totalorder %s16, 2
      // Predicated region
      $region37: #{tpu_custom_call.1} parent=5 // pred_check
        %p228 = pneg %p227
      $region38: #{tpu_custom_call.1} parent=5 // pred_check_branch
        %230 = sbr.rel (%p228) target = $region40
      $region39: #{tpu_custom_call.1} parent=5 // pred_region
        // Predicated region
        $region41: #{tpu_custom_call.1} parent=39 // pred_check
          %p231 = pneg %p36
        $region42: #{tpu_custom_call.1} parent=39 // pred_check_branch
          %233 = sbr.rel (%p231) target = $region44
        $region43: #{tpu_custom_call.1} parent=39 // pred_region
          %p234 = scmp.lt.s32.totalorder %s16, 1
          %s235 = scalar_select %p234, %s16, 1
          %s236 = smul.addr %s235, 8
          %s237 = scalar_lea.vmem %s0, %s236
        $region44: #{tpu_custom_call.1} parent=39 // pred_fallthru
          _
      $region40: #{tpu_custom_call.1} parent=5 // pred_fallthru
        _
      %p238 = scmp.le.s32.totalorder 1, %s16
      %p239 = scmp.lt.s32.totalorder %s16, 3
      %p240 = pnand %p238, %p239
      %p241 = pneg %p240
      // Predicated region
      $region45: #{tpu_custom_call.1} parent=5 // pred_check
        _
      $region46: #{tpu_custom_call.1} parent=5 // pred_check_branch
        %243 = sbr.rel (%p240) target = $region48
      $region47: #{tpu_custom_call.1} parent=5 // pred_region
        %s244 = ssub.s32 %s16, 1
        %p245 = scmp.lt.s32.totalorder %s21, 1
        %s246 = scalar_select %p245, %s21, 1
        %s247 = smul.addr %s246, 8
        %s248 = scalar_lea.vmem %s0, %s247
        %p249 = pneg %p42
        %p250 = pneg %p39
        %p251 = pneg %p63
        %p252 = pneg %p60
        %p253 = pneg %p84
        %p254 = pneg %p81
        %p255 = pneg %p105
        %p256 = pneg %p102
        %p257 = pneg %p126
        %p258 = pneg %p123
        %p259 = pneg %p147
        %p260 = pneg %p144
        %p261 = pneg %p168
        %p262 = pneg %p165
        %p263 = pneg %p194
        %p264 = pneg %p191
        %s265 = sand.u32 %s181, 1
        %s266 = scalar_lea.sflag [#allocation4], %s265
        %s267 = sand.u32 %s181, 1
        %s268 = smul.addr %s267, 8
        %s269 = scalar_lea.vmem [#allocation3], %s268
        %p270 = scmp.lt.s32.totalorder %s21, 1
        %s271 = scalar_select %p270, %s21, 1
        %s272 = smul.addr %s271, 8
        %s273 = scalar_lea.vmem %s0, %s272
        %v274 = vld [vmem:[%s273] sm:$0xff]
        %v275 = vld [vmem:[%s5] sm:$0x1]
        %v276 = vld [vmem:[%s5 + $0x1] sm:$0x1]
        %v277 = vld [vmem:[%s6] sm:$0x1]
        %v278 = vld [vmem:[%s6 + $0x1] sm:$0x1]
        %v279 = vld [vmem:[%s6 + $0x2] sm:$0x1]
        %v280 = vld [vmem:[%s6 + $0x3] sm:$0x1]
        %vm281 = vcmask 261120
        %v282 = vsel %vm281, %v274, 0.0
        %283 = vadd.xlane.f32.xlu0 %v282
        %v284 = vpop.xlane.xlu0 %283
        %v285 = vrcp.pop 32.0
        %v286 = vmul.f32 %v284, %v285
        %v287 = vsub.f32 %v274, %v286
        %v288 = vmul.f32 %v287, %v287
        %v289 = vsel %vm281, %v288, 0.0
        %290 = vadd.xlane.f32.xlu0 %v289
        %v291 = vpop.xlane.xlu0 %290
        %v292 = vmul.f32 %v291, %v285
        %v293 = vadd.f32 %v292, 1e-05
        %v294 = vrsqrt.pop %v293
        %v295 = vmul.f32 %v287, %v294
        %v296 = vlaneseq
        %v297 = vshrl.u32 %v296, 7
        %v298 = vsub.s32 0, %v297
        %v299 = vrot.slane %v277, %v298
        %v300 = vmul.f32 %v295, %v299
        %v301 = vlaneseq
        %v302 = vshrl.u32 %v301, 7
        %v303 = vsub.s32 0, %v302
        %v304 = vrot.slane %v278, %v303
        %v305 = vadd.f32 %v300, %v304
        %v306 = vld [vmem:[%s1] sm:$0xff]
        %v307 = vld [vmem:[%s1 + $0x8] sm:$0xff]
        %v308 = vld [vmem:[%s1 + $0x10] sm:$0xff]
        %v309 = vld [vmem:[%s1 + $0x18] sm:$0xff]
        %v311 = vsel %vm281, %v305, 0
        %313 = vmatprep.subr.mxu0 0.0
        %314 = vmatpush1.msra.mxu0 %v306
        %315 = vmatprep.subr.mxu0 0.0
        %316 = vmatpush1.msra.mxu0 %v307
        %317 = vmatprep.subr.mxu0 0.0
        %318 = vmatpush1.msra.mxu0 %v308
        %319 = vmatprep.subr.mxu0 0.0
        %320 = vmatpush1.msra.mxu0 %v309
        %321 = vmatprep.subr.mxu0 0.0
        %322 = vmatpush1.msra.mxu0 0.0
        %323 = vmatprep.subr.mxu0 0.0
        %324 = vmatpush1.msra.mxu0 0.0
        %325 = vmatprep.subr.mxu0 0.0
        %326 = vmatpush1.msra.mxu0 0.0
        %327 = vmatprep.subr.mxu0 0.0
        %328 = vmatpush1.msra.mxu0 0.0
        %329 = vmatprep.subr.mxu0 0.0
        %330 = vmatpush1.msra.mxu0 0.0
        %331 = vmatprep.subr.mxu0 0.0
        %332 = vmatpush1.msra.mxu0 0.0
        %333 = vmatprep.subr.mxu0 0.0
        %334 = vmatpush1.msra.mxu0 0.0
        %335 = vmatprep.subr.mxu0 0.0
        %336 = vmatpush1.msra.mxu0 0.0
        %337 = vmatprep.subr.mxu0 0.0
        %338 = vmatpush1.msra.mxu0 0.0
        %339 = vmatprep.subr.mxu0 0.0
        %340 = vmatpush1.msra.mxu0 0.0
        %341 = vmatprep.subr.mxu0 0.0
        %342 = vmatpush1.msra.mxu0 0.0
        %343 = vmatprep.subr.mxu0 0.0
        %344 = vmatpush1.msra.mxu0 0.0
        %345 = vmatprep.subr.mxu0 0.0
        %346 = vmatpush1.msra.mxu0 0.0
        %347 = vmatprep.subr.mxu0 0.0
        %348 = vmatpush1.msra.mxu0 0.0
        %349 = vmatprep.subr.mxu0 0.0
        %350 = vmatpush1.msra.mxu0 0.0
        %351 = vmatprep.subr.mxu0 0.0
        %352 = vmatpush1.msra.mxu0 0.0
        %353 = vmatprep.subr.mxu0 0.0
        %354 = vmatpush1.msra.mxu0 0.0
        %355 = vmatprep.subr.mxu0 0.0
        %356 = vmatpush1.msra.mxu0 0.0
        %357 = vmatprep.subr.mxu0 0.0
        %358 = vmatpush1.msra.mxu0 0.0
        %359 = vmatprep.subr.mxu0 0.0
        %360 = vmatpush1.msra.mxu0 0.0
        %361 = vmatprep.subr.mxu0 0.0
        %362 = vmatpush1.msra.mxu0 0.0
        %363 = vmatprep.subr.mxu0 0.0
        %364 = vmatpush1.msra.mxu0 0.0
        %365 = vmatprep.subr.mxu0 0.0
        %366 = vmatpush1.msra.mxu0 0.0
        %367 = vmatprep.subr.mxu0 0.0
        %368 = vmatpush1.msra.mxu0 0.0
        %369 = vmatprep.subr.mxu0 0.0
        %370 = vmatpush1.msra.mxu0 0.0
        %371 = vmatprep.subr.mxu0 0.0
        %372 = vmatpush1.msra.mxu0 0.0
        %373 = vmatprep.subr.mxu0 0.0
        %374 = vmatpush1.msra.mxu0 0.0
        %375 = vmatprep.subr.mxu0 0.0
        %376 = vmatpush1.msra.mxu0 0.0
        %377 = vmatprep.mubr.f32.mxu0 0.0
        %378 = vmatmul.mubr.f32.gmra.mrb[0].mxu0 %v311
        %v379 = vpop.f32.mrb[0].mxu0
        %v380 = vadd.f32 0.0, %v379
        %v381 = vpop.f32.mrb[0].mxu0
        %382 = vdwg.mxu0
        %384 = vrot.lane.b32.xlu0 %v380, 96
        %v385 = vpop.permute.xlu0 %384
        %vm386 = vcmask 64512
        %v387 = vsel %vm386, %v380, 0
        %v389 = vsel %vm386, %v385, 0
        %391 = vmatprep.subr.mxu0 0.0
        %392 = vmatpush1.xpose.msra.mxu0 %v389
        %393 = vmatprep.subr.mxu0 0.0
        %394 = vmatpush1.xpose.msra.mxu0 0.0
        %395 = vmatprep.subr.mxu0 0.0
        %396 = vmatpush1.xpose.msra.mxu0 0.0
        %397 = vmatprep.subr.mxu0 0.0
        %398 = vmatpush1.xpose.msra.mxu0 0.0
        %399 = vmatprep.subr.mxu0 0.0
        %400 = vmatpush1.xpose.msra.mxu0 0.0
        %401 = vmatprep.subr.mxu0 0.0
        %402 = vmatpush1.xpose.msra.mxu0 0.0
        %403 = vmatprep.subr.mxu0 0.0
        %404 = vmatpush1.xpose.msra.mxu0 0.0
        %405 = vmatprep.subr.mxu0 0.0
        %406 = vmatpush1.xpose.msra.mxu0 0.0
        %407 = vmatprep.subr.mxu0 0.0
        %408 = vmatpush1.xpose.msra.mxu0 0.0
        %409 = vmatprep.subr.mxu0 0.0
        %410 = vmatpush1.xpose.msra.mxu0 0.0
        %411 = vmatprep.subr.mxu0 0.0
        %412 = vmatpush1.xpose.msra.mxu0 0.0
        %413 = vmatprep.subr.mxu0 0.0
        %414 = vmatpush1.xpose.msra.mxu0 0.0
        %415 = vmatprep.subr.mxu0 0.0
        %416 = vmatpush1.xpose.msra.mxu0 0.0
        %417 = vmatprep.subr.mxu0 0.0
        %418 = vmatpush1.xpose.msra.mxu0 0.0
        %419 = vmatprep.subr.mxu0 0.0
        %420 = vmatpush1.xpose.msra.mxu0 0.0
        %421 = vmatprep.subr.mxu0 0.0
        %422 = vmatpush1.xpose.msra.mxu0 0.0
        %423 = vmatprep.subr.mxu0 0.0
        %424 = vmatpush1.xpose.msra.mxu0 0.0
        %425 = vmatprep.subr.mxu0 0.0
        %426 = vmatpush1.xpose.msra.mxu0 0.0
        %427 = vmatprep.subr.mxu0 0.0
        %428 = vmatpush1.xpose.msra.mxu0 0.0
        %429 = vmatprep.subr.mxu0 0.0
        %430 = vmatpush1.xpose.msra.mxu0 0.0
        %431 = vmatprep.subr.mxu0 0.0
        %432 = vmatpush1.xpose.msra.mxu0 0.0
        %433 = vmatprep.subr.mxu0 0.0
        %434 = vmatpush1.xpose.msra.mxu0 0.0
        %435 = vmatprep.subr.mxu0 0.0
        %436 = vmatpush1.xpose.msra.mxu0 0.0
        %437 = vmatprep.subr.mxu0 0.0
        %438 = vmatpush1.xpose.msra.mxu0 0.0
        %439 = vmatprep.subr.mxu0 0.0
        %440 = vmatpush1.xpose.msra.mxu0 0.0
        %441 = vmatprep.subr.mxu0 0.0
        %442 = vmatpush1.xpose.msra.mxu0 0.0
        %443 = vmatprep.subr.mxu0 0.0
        %444 = vmatpush1.xpose.msra.mxu0 0.0
        %445 = vmatprep.subr.mxu0 0.0
        %446 = vmatpush1.xpose.msra.mxu0 0.0
        %447 = vmatprep.subr.mxu0 0.0
        %448 = vmatpush1.xpose.msra.mxu0 0.0
        %449 = vmatprep.subr.mxu0 0.0
        %450 = vmatpush1.xpose.msra.mxu0 0.0
        %451 = vmatprep.subr.mxu0 0.0
        %452 = vmatpush1.xpose.msra.mxu0 0.0
        %453 = vmatprep.subr.mxu0 0.0
        %454 = vmatpush1.xpose.msra.mxu0 0.0
        %455 = vmatprep.mubr.f32.mxu0 0.0
        %456 = vmatmul.mubr.f32.gmra.mrb[0].mxu0 %v387
        %v457 = vpop.f32.mrb[0].mxu0
        %v458 = vadd.f32 0.0, %v457
        %v459 = vpop.f32.mrb[0].mxu0
        %460 = vdwg.mxu0
        %v461 = vsel %vm386, %v458, -inf
        %462 = vmax.xlane.f32.xlu0 %v461
        %v463 = vpop.xlane.xlu0 %462
        %v464 = vsub.f32 %v458, %v463
        %v465 = vmul.f32 %v464, 1.442695
        %v466 = vpow.pop %v465
        %v467 = vsel %vm386, %v466, 0.0
        %468 = vadd.xlane.f32.xlu0 %v467
        %v469 = vpop.xlane.xlu0 %468
        %v470 = vrcp.pop %v469
        %v471 = vmul.f32 %v466, %v470
        %472 = vrot.lane.b32.xlu0 %v380, 64
        %v473 = vpop.permute.xlu0 %472
        %v476 = vsel %vm386, %v471, 0
        %478 = vmatprep.subr.mxu0 0.0
        %479 = vmatpush1.msra.mxu0 %v473
        %480 = vmatprep.subr.mxu0 0.0
        %481 = vmatpush1.msra.mxu0 0.0
        %482 = vmatprep.subr.mxu0 0.0
        %483 = vmatpush1.msra.mxu0 0.0
        %484 = vmatprep.subr.mxu0 0.0
        %485 = vmatpush1.msra.mxu0 0.0
        %486 = vmatprep.subr.mxu0 0.0
        %487 = vmatpush1.msra.mxu0 0.0
        %488 = vmatprep.subr.mxu0 0.0
        %489 = vmatpush1.msra.mxu0 0.0
        %490 = vmatprep.subr.mxu0 0.0
        %491 = vmatpush1.msra.mxu0 0.0
        %492 = vmatprep.subr.mxu0 0.0
        %493 = vmatpush1.msra.mxu0 0.0
        %494 = vmatprep.subr.mxu0 0.0
        %495 = vmatpush1.msra.mxu0 0.0
        %496 = vmatprep.subr.mxu0 0.0
        %497 = vmatpush1.msra.mxu0 0.0
        %498 = vmatprep.subr.mxu0 0.0
        %499 = vmatpush1.msra.mxu0 0.0
        %500 = vmatprep.subr.mxu0 0.0
        %501 = vmatpush1.msra.mxu0 0.0
        %502 = vmatprep.subr.mxu0 0.0
        %503 = vmatpush1.msra.mxu0 0.0
        %504 = vmatprep.subr.mxu0 0.0
        %505 = vmatpush1.msra.mxu0 0.0
        %506 = vmatprep.subr.mxu0 0.0
        %507 = vmatpush1.msra.mxu0 0.0
        %508 = vmatprep.subr.mxu0 0.0
        %509 = vmatpush1.msra.mxu0 0.0
        %510 = vmatprep.subr.mxu0 0.0
        %511 = vmatpush1.msra.mxu0 0.0
        %512 = vmatprep.subr.mxu0 0.0
        %513 = vmatpush1.msra.mxu0 0.0
        %514 = vmatprep.subr.mxu0 0.0
        %515 = vmatpush1.msra.mxu0 0.0
        %516 = vmatprep.subr.mxu0 0.0
        %517 = vmatpush1.msra.mxu0 0.0
        %518 = vmatprep.subr.mxu0 0.0
        %519 = vmatpush1.msra.mxu0 0.0
        %520 = vmatprep.subr.mxu0 0.0
        %521 = vmatpush1.msra.mxu0 0.0
        %522 = vmatprep.subr.mxu0 0.0
        %523 = vmatpush1.msra.mxu0 0.0
        %524 = vmatprep.subr.mxu0 0.0
        %525 = vmatpush1.msra.mxu0 0.0
        %526 = vmatprep.subr.mxu0 0.0
        %527 = vmatpush1.msra.mxu0 0.0
        %528 = vmatprep.subr.mxu0 0.0
        %529 = vmatpush1.msra.mxu0 0.0
        %530 = vmatprep.subr.mxu0 0.0
        %531 = vmatpush1.msra.mxu0 0.0
        %532 = vmatprep.subr.mxu0 0.0
        %533 = vmatpush1.msra.mxu0 0.0
        %534 = vmatprep.subr.mxu0 0.0
        %535 = vmatpush1.msra.mxu0 0.0
        %536 = vmatprep.subr.mxu0 0.0
        %537 = vmatpush1.msra.mxu0 0.0
        %538 = vmatprep.subr.mxu0 0.0
        %539 = vmatpush1.msra.mxu0 0.0
        %540 = vmatprep.subr.mxu0 0.0
        %541 = vmatpush1.msra.mxu0 0.0
        %542 = vmatprep.mubr.f32.mxu0 0.0
        %543 = vmatmul.mubr.f32.gmra.mrb[0].mxu0 %v476
        %v544 = vpop.f32.mrb[0].mxu0
        %v545 = vadd.f32 0.0, %v544
        %v546 = vpop.f32.mrb[0].mxu0
        %547 = vdwg.mxu0
        %548 = vrot.lane.b32.xlu0 %v380, 120
        %v549 = vpop.permute.xlu0 %548
        %550 = vrot.lane.b32.xlu0 %v380, 88
        %v551 = vpop.permute.xlu0 %550
        %v552 = vsel %vm386, %v549, 0
        %v554 = vsel %vm386, %v551, 0
        %556 = vmatprep.subr.mxu0 0.0
        %557 = vmatpush1.xpose.msra.mxu0 %v554
        %558 = vmatprep.subr.mxu0 0.0
        %559 = vmatpush1.xpose.msra.mxu0 0.0
        %560 = vmatprep.subr.mxu0 0.0
        %561 = vmatpush1.xpose.msra.mxu0 0.0
        %562 = vmatprep.subr.mxu0 0.0
        %563 = vmatpush1.xpose.msra.mxu0 0.0
        %564 = vmatprep.subr.mxu0 0.0
        %565 = vmatpush1.xpose.msra.mxu0 0.0
        %566 = vmatprep.subr.mxu0 0.0
        %567 = vmatpush1.xpose.msra.mxu0 0.0
        %568 = vmatprep.subr.mxu0 0.0
        %569 = vmatpush1.xpose.msra.mxu0 0.0
        %570 = vmatprep.subr.mxu0 0.0
        %571 = vmatpush1.xpose.msra.mxu0 0.0
        %572 = vmatprep.subr.mxu0 0.0
        %573 = vmatpush1.xpose.msra.mxu0 0.0
        %574 = vmatprep.subr.mxu0 0.0
        %575 = vmatpush1.xpose.msra.mxu0 0.0
        %576 = vmatprep.subr.mxu0 0.0
        %577 = vmatpush1.xpose.msra.mxu0 0.0
        %578 = vmatprep.subr.mxu0 0.0
        %579 = vmatpush1.xpose.msra.mxu0 0.0
        %580 = vmatprep.subr.mxu0 0.0
        %581 = vmatpush1.xpose.msra.mxu0 0.0
        %582 = vmatprep.subr.mxu0 0.0
        %583 = vmatpush1.xpose.msra.mxu0 0.0
        %584 = vmatprep.subr.mxu0 0.0
        %585 = vmatpush1.xpose.msra.mxu0 0.0
        %586 = vmatprep.subr.mxu0 0.0
        %587 = vmatpush1.xpose.msra.mxu0 0.0
        %588 = vmatprep.subr.mxu0 0.0
        %589 = vmatpush1.xpose.msra.mxu0 0.0
        %590 = vmatprep.subr.mxu0 0.0
        %591 = vmatpush1.xpose.msra.mxu0 0.0
        %592 = vmatprep.subr.mxu0 0.0
        %593 = vmatpush1.xpose.msra.mxu0 0.0
        %594 = vmatprep.subr.mxu0 0.0
        %595 = vmatpush1.xpose.msra.mxu0 0.0
        %596 = vmatprep.subr.mxu0 0.0
        %597 = vmatpush1.xpose.msra.mxu0 0.0
        %598 = vmatprep.subr.mxu0 0.0
        %599 = vmatpush1.xpose.msra.mxu0 0.0
        %600 = vmatprep.subr.mxu0 0.0
        %601 = vmatpush1.xpose.msra.mxu0 0.0
        %602 = vmatprep.subr.mxu0 0.0
        %603 = vmatpush1.xpose.msra.mxu0 0.0
        %604 = vmatprep.subr.mxu0 0.0
        %605 = vmatpush1.xpose.msra.mxu0 0.0
        %606 = vmatprep.subr.mxu0 0.0
        %607 = vmatpush1.xpose.msra.mxu0 0.0
        %608 = vmatprep.subr.mxu0 0.0
        %609 = vmatpush1.xpose.msra.mxu0 0.0
        %610 = vmatprep.subr.mxu0 0.0
        %611 = vmatpush1.xpose.msra.mxu0 0.0
        %612 = vmatprep.subr.mxu0 0.0
        %613 = vmatpush1.xpose.msra.mxu0 0.0
        %614 = vmatprep.subr.mxu0 0.0
        %615 = vmatpush1.xpose.msra.mxu0 0.0
        %616 = vmatprep.subr.mxu0 0.0
        %617 = vmatpush1.xpose.msra.mxu0 0.0
        %618 = vmatprep.subr.mxu0 0.0
        %619 = vmatpush1.xpose.msra.mxu0 0.0
        %620 = vmatprep.mubr.f32.mxu0 0.0
        %621 = vmatmul.mubr.f32.gmra.mrb[0].mxu0 %v552
        %v622 = vpop.f32.mrb[0].mxu0
        %v623 = vadd.f32 0.0, %v622
        %v624 = vpop.f32.mrb[0].mxu0
        %625 = vdwg.mxu0
        %v626 = vsel %vm386, %v623, -inf
        %627 = vmax.xlane.f32.xlu0 %v626
        %v628 = vpop.xlane.xlu0 %627
        %v629 = vsub.f32 %v623, %v628
        %v630 = vmul.f32 %v629, 1.442695
        %v631 = vpow.pop %v630
        %v632 = vsel %vm386, %v631, 0.0
        %633 = vadd.xlane.f32.xlu0 %v632
        %v634 = vpop.xlane.xlu0 %633
        %v635 = vrcp.pop %v634
        %v636 = vmul.f32 %v631, %v635
        %637 = vrot.lane.b32.xlu0 %v380, 56
        %v638 = vpop.permute.xlu0 %637
        %v641 = vsel %vm386, %v636, 0
        %643 = vmatprep.subr.mxu0 0.0
        %644 = vmatpush1.msra.mxu0 %v638
        %645 = vmatprep.subr.mxu0 0.0
        %646 = vmatpush1.msra.mxu0 0.0
        %647 = vmatprep.subr.mxu0 0.0
        %648 = vmatpush1.msra.mxu0 0.0
        %649 = vmatprep.subr.mxu0 0.0
        %650 = vmatpush1.msra.mxu0 0.0
        %651 = vmatprep.subr.mxu0 0.0
        %652 = vmatpush1.msra.mxu0 0.0
        %653 = vmatprep.subr.mxu0 0.0
        %654 = vmatpush1.msra.mxu0 0.0
        %655 = vmatprep.subr.mxu0 0.0
        %656 = vmatpush1.msra.mxu0 0.0
        %657 = vmatprep.subr.mxu0 0.0
        %658 = vmatpush1.msra.mxu0 0.0
        %659 = vmatprep.subr.mxu0 0.0
        %660 = vmatpush1.msra.mxu0 0.0
        %661 = vmatprep.subr.mxu0 0.0
        %662 = vmatpush1.msra.mxu0 0.0
        %663 = vmatprep.subr.mxu0 0.0
        %664 = vmatpush1.msra.mxu0 0.0
        %665 = vmatprep.subr.mxu0 0.0
        %666 = vmatpush1.msra.mxu0 0.0
        %667 = vmatprep.subr.mxu0 0.0
        %668 = vmatpush1.msra.mxu0 0.0
        %669 = vmatprep.subr.mxu0 0.0
        %670 = vmatpush1.msra.mxu0 0.0
        %671 = vmatprep.subr.mxu0 0.0
        %672 = vmatpush1.msra.mxu0 0.0
        %673 = vmatprep.subr.mxu0 0.0
        %674 = vmatpush1.msra.mxu0 0.0
        %675 = vmatprep.subr.mxu0 0.0
        %676 = vmatpush1.msra.mxu0 0.0
        %677 = vmatprep.subr.mxu0 0.0
        %678 = vmatpush1.msra.mxu0 0.0
        %679 = vmatprep.subr.mxu0 0.0
        %680 = vmatpush1.msra.mxu0 0.0
        %681 = vmatprep.subr.mxu0 0.0
        %682 = vmatpush1.msra.mxu0 0.0
        %683 = vmatprep.subr.mxu0 0.0
        %684 = vmatpush1.msra.mxu0 0.0
        %685 = vmatprep.subr.mxu0 0.0
        %686 = vmatpush1.msra.mxu0 0.0
        %687 = vmatprep.subr.mxu0 0.0
        %688 = vmatpush1.msra.mxu0 0.0
        %689 = vmatprep.subr.mxu0 0.0
        %690 = vmatpush1.msra.mxu0 0.0
        %691 = vmatprep.subr.mxu0 0.0
        %692 = vmatpush1.msra.mxu0 0.0
        %693 = vmatprep.subr.mxu0 0.0
        %694 = vmatpush1.msra.mxu0 0.0
        %695 = vmatprep.subr.mxu0 0.0
        %696 = vmatpush1.msra.mxu0 0.0
        %697 = vmatprep.subr.mxu0 0.0
        %698 = vmatpush1.msra.mxu0 0.0
        %699 = vmatprep.subr.mxu0 0.0
        %700 = vmatpush1.msra.mxu0 0.0
        %701 = vmatprep.subr.mxu0 0.0
        %702 = vmatpush1.msra.mxu0 0.0
        %703 = vmatprep.subr.mxu0 0.0
        %704 = vmatpush1.msra.mxu0 0.0
        %705 = vmatprep.subr.mxu0 0.0
        %706 = vmatpush1.msra.mxu0 0.0
        %707 = vmatprep.mubr.f32.mxu0 0.0
        %708 = vmatmul.mubr.f32.gmra.mrb[0].mxu0 %v641
        %v709 = vpop.f32.mrb[0].mxu0
        %v710 = vadd.f32 0.0, %v709
        %v711 = vpop.f32.mrb[0].mxu0
        %712 = vdwg.mxu0
        %713 = vrot.lane.b32.xlu0 %v380, 112
        %v714 = vpop.permute.xlu0 %713
        %715 = vrot.lane.b32.xlu0 %v380, 80
        %v716 = vpop.permute.xlu0 %715
        %v717 = vsel %vm386, %v714, 0
        %v719 = vsel %vm386, %v716, 0
        %721 = vmatprep.subr.mxu0 0.0
        %722 = vmatpush1.xpose.msra.mxu0 %v719
        %723 = vmatprep.subr.mxu0 0.0
        %724 = vmatpush1.xpose.msra.mxu0 0.0
        %725 = vmatprep.subr.mxu0 0.0
        %726 = vmatpush1.xpose.msra.mxu0 0.0
        %727 = vmatprep.subr.mxu0 0.0
        %728 = vmatpush1.xpose.msra.mxu0 0.0
        %729 = vmatprep.subr.mxu0 0.0
        %730 = vmatpush1.xpose.msra.mxu0 0.0
        %731 = vmatprep.subr.mxu0 0.0
        %732 = vmatpush1.xpose.msra.mxu0 0.0
        %733 = vmatprep.subr.mxu0 0.0
        %734 = vmatpush1.xpose.msra.mxu0 0.0
        %735 = vmatprep.subr.mxu0 0.0
        %736 = vmatpush1.xpose.msra.mxu0 0.0
        %737 = vmatprep.subr.mxu0 0.0
        %738 = vmatpush1.xpose.msra.mxu0 0.0
        %739 = vmatprep.subr.mxu0 0.0
        %740 = vmatpush1.xpose.msra.mxu0 0.0
        %741 = vmatprep.subr.mxu0 0.0
        %742 = vmatpush1.xpose.msra.mxu0 0.0
        %743 = vmatprep.subr.mxu0 0.0
        %744 = vmatpush1.xpose.msra.mxu0 0.0
        %745 = vmatprep.subr.mxu0 0.0
        %746 = vmatpush1.xpose.msra.mxu0 0.0
        %747 = vmatprep.subr.mxu0 0.0
        %748 = vmatpush1.xpose.msra.mxu0 0.0
        %749 = vmatprep.subr.mxu0 0.0
        %750 = vmatpush1.xpose.msra.mxu0 0.0
        %751 = vmatprep.subr.mxu0 0.0
        %752 = vmatpush1.xpose.msra.mxu0 0.0
        %753 = vmatprep.subr.mxu0 0.0
        %754 = vmatpush1.xpose.msra.mxu0 0.0
        %755 = vmatprep.subr.mxu0 0.0
        %756 = vmatpush1.xpose.msra.mxu0 0.0
        %757 = vmatprep.subr.mxu0 0.0
        %758 = vmatpush1.xpose.msra.mxu0 0.0
        %759 = vmatprep.subr.mxu0 0.0
        %760 = vmatpush1.xpose.msra.mxu0 0.0
        %761 = vmatprep.subr.mxu0 0.0
        %762 = vmatpush1.xpose.msra.mxu0 0.0
        %763 = vmatprep.subr.mxu0 0.0
        %764 = vmatpush1.xpose.msra.mxu0 0.0
        %765 = vmatprep.subr.mxu0 0.0
        %766 = vmatpush1.xpose.msra.mxu0 0.0
        %767 = vmatprep.subr.mxu0 0.0
        %768 = vmatpush1.xpose.msra.mxu0 0.0
        %769 = vmatprep.subr.mxu0 0.0
        %770 = vmatpush1.xpose.msra.mxu0 0.0
        %771 = vmatprep.subr.mxu0 0.0
        %772 = vmatpush1.xpose.msra.mxu0 0.0
        %773 = vmatprep.subr.mxu0 0.0
        %774 = vmatpush1.xpose.msra.mxu0 0.0
        %775 = vmatprep.subr.mxu0 0.0
        %776 = vmatpush1.xpose.msra.mxu0 0.0
        %777 = vmatprep.subr.mxu0 0.0
        %778 = vmatpush1.xpose.msra.mxu0 0.0
        %779 = vmatprep.subr.mxu0 0.0
        %780 = vmatpush1.xpose.msra.mxu0 0.0
        %781 = vmatprep.subr.mxu0 0.0
        %782 = vmatpush1.xpose.msra.mxu0 0.0
        %783 = vmatprep.subr.mxu0 0.0
        %784 = vmatpush1.xpose.msra.mxu0 0.0
        %785 = vmatprep.mubr.f32.mxu0 0.0
        %786 = vmatmul.mubr.f32.gmra.mrb[0].mxu0 %v717
        %v787 = vpop.f32.mrb[0].mxu0
        %v788 = vadd.f32 0.0, %v787
        %v789 = vpop.f32.mrb[0].mxu0
        %790 = vdwg.mxu0
        %v791 = vsel %vm386, %v788, -inf
        %792 = vmax.xlane.f32.xlu0 %v791
        %v793 = vpop.xlane.xlu0 %792
        %v794 = vsub.f32 %v788, %v793
        %v795 = vmul.f32 %v794, 1.442695
        %v796 = vpow.pop %v795
        %v797 = vsel %vm386, %v796, 0.0
        %798 = vadd.xlane.f32.xlu0 %v797
        %v799 = vpop.xlane.xlu0 %798
        %v800 = vrcp.pop %v799
        %v801 = vmul.f32 %v796, %v800
        %802 = vrot.lane.b32.xlu0 %v380, 48
        %v803 = vpop.permute.xlu0 %802
        %v806 = vsel %vm386, %v801, 0
        %808 = vmatprep.subr.mxu0 0.0
        %809 = vmatpush1.msra.mxu0 %v803
        %810 = vmatprep.subr.mxu0 0.0
        %811 = vmatpush1.msra.mxu0 0.0
        %812 = vmatprep.subr.mxu0 0.0
        %813 = vmatpush1.msra.mxu0 0.0
        %814 = vmatprep.subr.mxu0 0.0
        %815 = vmatpush1.msra.mxu0 0.0
        %816 = vmatprep.subr.mxu0 0.0
        %817 = vmatpush1.msra.mxu0 0.0
        %818 = vmatprep.subr.mxu0 0.0
        %819 = vmatpush1.msra.mxu0 0.0
        %820 = vmatprep.subr.mxu0 0.0
        %821 = vmatpush1.msra.mxu0 0.0
        %822 = vmatprep.subr.mxu0 0.0
        %823 = vmatpush1.msra.mxu0 0.0
        %824 = vmatprep.subr.mxu0 0.0
        %825 = vmatpush1.msra.mxu0 0.0
        %826 = vmatprep.subr.mxu0 0.0
        %827 = vmatpush1.msra.mxu0 0.0
        %828 = vmatprep.subr.mxu0 0.0
        %829 = vmatpush1.msra.mxu0 0.0
        %830 = vmatprep.subr.mxu0 0.0
        %831 = vmatpush1.msra.mxu0 0.0
        %832 = vmatprep.subr.mxu0 0.0
        %833 = vmatpush1.msra.mxu0 0.0
        %834 = vmatprep.subr.mxu0 0.0
        %835 = vmatpush1.msra.mxu0 0.0
        %836 = vmatprep.subr.mxu0 0.0
        %837 = vmatpush1.msra.mxu0 0.0
        %838 = vmatprep.subr.mxu0 0.0
        %839 = vmatpush1.msra.mxu0 0.0
        %840 = vmatprep.subr.mxu0 0.0
        %841 = vmatpush1.msra.mxu0 0.0
        %842 = vmatprep.subr.mxu0 0.0
        %843 = vmatpush1.msra.mxu0 0.0
        %844 = vmatprep.subr.mxu0 0.0
        %845 = vmatpush1.msra.mxu0 0.0
        %846 = vmatprep.subr.mxu0 0.0
        %847 = vmatpush1.msra.mxu0 0.0
        %848 = vmatprep.subr.mxu0 0.0
        %849 = vmatpush1.msra.mxu0 0.0
        %850 = vmatprep.subr.mxu0 0.0
        %851 = vmatpush1.msra.mxu0 0.0
        %852 = vmatprep.subr.mxu0 0.0
        %853 = vmatpush1.msra.mxu0 0.0
        %854 = vmatprep.subr.mxu0 0.0
        %855 = vmatpush1.msra.mxu0 0.0
        %856 = vmatprep.subr.mxu0 0.0
        %857 = vmatpush1.msra.mxu0 0.0
        %858 = vmatprep.subr.mxu0 0.0
        %859 = vmatpush1.msra.mxu0 0.0
        %860 = vmatprep.subr.mxu0 0.0
        %861 = vmatpush1.msra.mxu0 0.0
        %862 = vmatprep.subr.mxu0 0.0
        %863 = vmatpush1.msra.mxu0 0.0
        %864 = vmatprep.subr.mxu0 0.0
        %865 = vmatpush1.msra.mxu0 0.0
        %866 = vmatprep.subr.mxu0 0.0
        %867 = vmatpush1.msra.mxu0 0.0
        %868 = vmatprep.subr.mxu0 0.0
        %869 = vmatpush1.msra.mxu0 0.0
        %870 = vmatprep.subr.mxu0 0.0
        %871 = vmatpush1.msra.mxu0 0.0
        %872 = vmatprep.mubr.f32.mxu0 0.0
        %873 = vmatmul.mubr.f32.gmra.mrb[0].mxu0 %v806
        %v874 = vpop.f32.mrb[0].mxu0
        %v875 = vadd.f32 0.0, %v874
        %v876 = vpop.f32.mrb[0].mxu0
        %877 = vdwg.mxu0
        %878 = vrot.lane.b32.xlu0 %v380, 104
        %v879 = vpop.permute.xlu0 %878
        %880 = vrot.lane.b32.xlu0 %v380, 72
        %v881 = vpop.permute.xlu0 %880
        %v882 = vsel %vm386, %v879, 0
        %v884 = vsel %vm386, %v881, 0
        %886 = vmatprep.subr.mxu0 0.0
        %887 = vmatpush1.xpose.msra.mxu0 %v884
        %888 = vmatprep.subr.mxu0 0.0
        %889 = vmatpush1.xpose.msra.mxu0 0.0
        %890 = vmatprep.subr.mxu0 0.0
        %891 = vmatpush1.xpose.msra.mxu0 0.0
        %892 = vmatprep.subr.mxu0 0.0
        %893 = vmatpush1.xpose.msra.mxu0 0.0
        %894 = vmatprep.subr.mxu0 0.0
        %895 = vmatpush1.xpose.msra.mxu0 0.0
        %896 = vmatprep.subr.mxu0 0.0
        %897 = vmatpush1.xpose.msra.mxu0 0.0
        %898 = vmatprep.subr.mxu0 0.0
        %899 = vmatpush1.xpose.msra.mxu0 0.0
        %900 = vmatprep.subr.mxu0 0.0
        %901 = vmatpush1.xpose.msra.mxu0 0.0
        %902 = vmatprep.subr.mxu0 0.0
        %903 = vmatpush1.xpose.msra.mxu0 0.0
        %904 = vmatprep.subr.mxu0 0.0
        %905 = vmatpush1.xpose.msra.mxu0 0.0
        %906 = vmatprep.subr.mxu0 0.0
        %907 = vmatpush1.xpose.msra.mxu0 0.0
        %908 = vmatprep.subr.mxu0 0.0
        %909 = vmatpush1.xpose.msra.mxu0 0.0
        %910 = vmatprep.subr.mxu0 0.0
        %911 = vmatpush1.xpose.msra.mxu0 0.0
        %912 = vmatprep.subr.mxu0 0.0
        %913 = vmatpush1.xpose.msra.mxu0 0.0
        %914 = vmatprep.subr.mxu0 0.0
        %915 = vmatpush1.xpose.msra.mxu0 0.0
        %916 = vmatprep.subr.mxu0 0.0
        %917 = vmatpush1.xpose.msra.mxu0 0.0
        %918 = vmatprep.subr.mxu0 0.0
        %919 = vmatpush1.xpose.msra.mxu0 0.0
        %920 = vmatprep.subr.mxu0 0.0
        %921 = vmatpush1.xpose.msra.mxu0 0.0
        %922 = vmatprep.subr.mxu0 0.0
        %923 = vmatpush1.xpose.msra.mxu0 0.0
        %924 = vmatprep.subr.mxu0 0.0
        %925 = vmatpush1.xpose.msra.mxu0 0.0
        %926 = vmatprep.subr.mxu0 0.0
        %927 = vmatpush1.xpose.msra.mxu0 0.0
        %928 = vmatprep.subr.mxu0 0.0
        %929 = vmatpush1.xpose.msra.mxu0 0.0
        %930 = vmatprep.subr.mxu0 0.0
        %931 = vmatpush1.xpose.msra.mxu0 0.0
        %932 = vmatprep.subr.mxu0 0.0
        %933 = vmatpush1.xpose.msra.mxu0 0.0
        %934 = vmatprep.subr.mxu0 0.0
        %935 = vmatpush1.xpose.msra.mxu0 0.0
        %936 = vmatprep.subr.mxu0 0.0
        %937 = vmatpush1.xpose.msra.mxu0 0.0
        %938 = vmatprep.subr.mxu0 0.0
        %939 = vmatpush1.xpose.msra.mxu0 0.0
        %940 = vmatprep.subr.mxu0 0.0
        %941 = vmatpush1.xpose.msra.mxu0 0.0
        %942 = vmatprep.subr.mxu0 0.0
        %943 = vmatpush1.xpose.msra.mxu0 0.0
        %944 = vmatprep.subr.mxu0 0.0
        %945 = vmatpush1.xpose.msra.mxu0 0.0
        %946 = vmatprep.subr.mxu0 0.0
        %947 = vmatpush1.xpose.msra.mxu0 0.0
        %948 = vmatprep.subr.mxu0 0.0
        %949 = vmatpush1.xpose.msra.mxu0 0.0
        %950 = vmatprep.mubr.f32.mxu0 0.0
        %951 = vmatmul.mubr.f32.gmra.mrb[0].mxu0 %v882
        %v952 = vpop.f32.mrb[0].mxu0
        %v953 = vadd.f32 0.0, %v952
        %v954 = vpop.f32.mrb[0].mxu0
        %955 = vdwg.mxu0
        %v956 = vsel %vm386, %v953, -inf
        %957 = vmax.xlane.f32.xlu0 %v956
        %v958 = vpop.xlane.xlu0 %957
        %v959 = vsub.f32 %v953, %v958
        %v960 = vmul.f32 %v959, 1.442695
        %v961 = vpow.pop %v960
        %v962 = vsel %vm386, %v961, 0.0
        %963 = vadd.xlane.f32.xlu0 %v962
        %v964 = vpop.xlane.xlu0 %963
        %v965 = vrcp.pop %v964
        %v966 = vmul.f32 %v961, %v965
        %967 = vrot.lane.b32.xlu0 %v380, 40
        %v968 = vpop.permute.xlu0 %967
        %v971 = vsel %vm386, %v966, 0
        %973 = vmatprep.subr.mxu0 0.0
        %974 = vmatpush1.msra.mxu0 %v968
        %975 = vmatprep.subr.mxu0 0.0
        %976 = vmatpush1.msra.mxu0 0.0
        %977 = vmatprep.subr.mxu0 0.0
        %978 = vmatpush1.msra.mxu0 0.0
        %979 = vmatprep.subr.mxu0 0.0
        %980 = vmatpush1.msra.mxu0 0.0
        %981 = vmatprep.subr.mxu0 0.0
        %982 = vmatpush1.msra.mxu0 0.0
        %983 = vmatprep.subr.mxu0 0.0
        %984 = vmatpush1.msra.mxu0 0.0
        %985 = vmatprep.subr.mxu0 0.0
        %986 = vmatpush1.msra.mxu0 0.0
        %987 = vmatprep.subr.mxu0 0.0
        %988 = vmatpush1.msra.mxu0 0.0
        %989 = vmatprep.subr.mxu0 0.0
        %990 = vmatpush1.msra.mxu0 0.0
        %991 = vmatprep.subr.mxu0 0.0
        %992 = vmatpush1.msra.mxu0 0.0
        %993 = vmatprep.subr.mxu0 0.0
        %994 = vmatpush1.msra.mxu0 0.0
        %995 = vmatprep.subr.mxu0 0.0
        %996 = vmatpush1.msra.mxu0 0.0
        %997 = vmatprep.subr.mxu0 0.0
        %998 = vmatpush1.msra.mxu0 0.0
        %999 = vmatprep.subr.mxu0 0.0
        %1000 = vmatpush1.msra.mxu0 0.0
        %1001 = vmatprep.subr.mxu0 0.0
        %1002 = vmatpush1.msra.mxu0 0.0
        %1003 = vmatprep.subr.mxu0 0.0
        %1004 = vmatpush1.msra.mxu0 0.0
        %1005 = vmatprep.subr.mxu0 0.0
        %1006 = vmatpush1.msra.mxu0 0.0
        %1007 = vmatprep.subr.mxu0 0.0
        %1008 = vmatpush1.msra.mxu0 0.0
        %1009 = vmatprep.subr.mxu0 0.0
        %1010 = vmatpush1.msra.mxu0 0.0
        %1011 = vmatprep.subr.mxu0 0.0
        %1012 = vmatpush1.msra.mxu0 0.0
        %1013 = vmatprep.subr.mxu0 0.0
        %1014 = vmatpush1.msra.mxu0 0.0
        %1015 = vmatprep.subr.mxu0 0.0
        %1016 = vmatpush1.msra.mxu0 0.0
        %1017 = vmatprep.subr.mxu0 0.0
        %1018 = vmatpush1.msra.mxu0 0.0
        %1019 = vmatprep.subr.mxu0 0.0
        %1020 = vmatpush1.msra.mxu0 0.0
        %1021 = vmatprep.subr.mxu0 0.0
        %1022 = vmatpush1.msra.mxu0 0.0
        %1023 = vmatprep.subr.mxu0 0.0
        %1024 = vmatpush1.msra.mxu0 0.0
        %1025 = vmatprep.subr.mxu0 0.0
        %1026 = vmatpush1.msra.mxu0 0.0
        %1027 = vmatprep.subr.mxu0 0.0
        %1028 = vmatpush1.msra.mxu0 0.0
        %1029 = vmatprep.subr.mxu0 0.0
        %1030 = vmatpush1.msra.mxu0 0.0
        %1031 = vmatprep.subr.mxu0 0.0
        %1032 = vmatpush1.msra.mxu0 0.0
        %1033 = vmatprep.subr.mxu0 0.0
        %1034 = vmatpush1.msra.mxu0 0.0
        %1035 = vmatprep.subr.mxu0 0.0
        %1036 = vmatpush1.msra.mxu0 0.0
        %1037 = vmatprep.mubr.f32.mxu0 0.0
        %1038 = vmatmul.mubr.f32.gmra.mrb[0].mxu0 %v971
        %v1039 = vpop.f32.mrb[0].mxu0
        %v1040 = vadd.f32 0.0, %v1039
        %v1041 = vpop.f32.mrb[0].mxu0
        %1042 = vdwg.mxu0
        %1044 = vrot.lane.b32.xlu0 %v710, 8
        %v1045 = vpop.permute.xlu0 %1044
        %1048 = vrot.lane.b32.xlu0 %v875, 16
        %v1049 = vpop.permute.xlu0 %1048
        %1052 = vrot.lane.b32.xlu0 %v1040, 24
        %v1053 = vpop.permute.xlu0 %1052
        %v1055 = vsel %vm386, %v545, %v1045
        %vm1056 = vcmask 130048
        %v1057 = vsel %vm1056, %v1055, %v1049
        %vm1058 = vcmask 195584
        %v1059 = vsel %vm1058, %v1057, %v1053
        %1060 = vst.msk [vmem:[#allocation2] sm:$0xff] %vm281, %v1059
        %v1061 = vld [vmem:[#allocation2] sm:$0xff]
        %v1062 = vld [vmem:[%s2] sm:$0xff]
        %v1063 = vld [vmem:[%s2 + $0x8] sm:$0xff]
        %v1064 = vld [vmem:[%s2 + $0x10] sm:$0xff]
        %v1065 = vld [vmem:[%s2 + $0x18] sm:$0xff]
        %v1067 = vlaneseq
        %v1068 = vshrl.u32 %v1067, 7
        %v1069 = vsub.s32 0, %v1068
        %v1070 = vrot.slane %v276, %v1069
        %v1073 = vsel %vm281, %v1061, 0
        %1075 = vmatprep.subr.mxu0 0.0
        %1076 = vmatpush1.msra.mxu0 %v1062
        %1077 = vmatprep.subr.mxu0 0.0
        %1078 = vmatpush1.msra.mxu0 %v1063
        %1079 = vmatprep.subr.mxu0 0.0
        %1080 = vmatpush1.msra.mxu0 %v1064
        %1081 = vmatprep.subr.mxu0 0.0
        %1082 = vmatpush1.msra.mxu0 %v1065
        %1083 = vmatprep.subr.mxu0 0.0
        %1084 = vmatpush1.msra.mxu0 0.0
        %1085 = vmatprep.subr.mxu0 0.0
        %1086 = vmatpush1.msra.mxu0 0.0
        %1087 = vmatprep.subr.mxu0 0.0
        %1088 = vmatpush1.msra.mxu0 0.0
        %1089 = vmatprep.subr.mxu0 0.0
        %1090 = vmatpush1.msra.mxu0 0.0
        %1091 = vmatprep.subr.mxu0 0.0
        %1092 = vmatpush1.msra.mxu0 0.0
        %1093 = vmatprep.subr.mxu0 0.0
        %1094 = vmatpush1.msra.mxu0 0.0
        %1095 = vmatprep.subr.mxu0 0.0
        %1096 = vmatpush1.msra.mxu0 0.0
        %1097 = vmatprep.subr.mxu0 0.0
        %1098 = vmatpush1.msra.mxu0 0.0
        %1099 = vmatprep.subr.mxu0 0.0
        %1100 = vmatpush1.msra.mxu0 0.0
        %1101 = vmatprep.subr.mxu0 0.0
        %1102 = vmatpush1.msra.mxu0 0.0
        %1103 = vmatprep.subr.mxu0 0.0
        %1104 = vmatpush1.msra.mxu0 0.0
        %1105 = vmatprep.subr.mxu0 0.0
        %1106 = vmatpush1.msra.mxu0 0.0
        %1107 = vmatprep.subr.mxu0 0.0
        %1108 = vmatpush1.msra.mxu0 0.0
        %1109 = vmatprep.subr.mxu0 0.0
        %1110 = vmatpush1.msra.mxu0 0.0
        %1111 = vmatprep.subr.mxu0 0.0
        %1112 = vmatpush1.msra.mxu0 0.0
        %1113 = vmatprep.subr.mxu0 0.0
        %1114 = vmatpush1.msra.mxu0 0.0
        %1115 = vmatprep.subr.mxu0 0.0
        %1116 = vmatpush1.msra.mxu0 0.0
        %1117 = vmatprep.subr.mxu0 0.0
        %1118 = vmatpush1.msra.mxu0 0.0
        %1119 = vmatprep.subr.mxu0 0.0
        %1120 = vmatpush1.msra.mxu0 0.0
        %1121 = vmatprep.subr.mxu0 0.0
        %1122 = vmatpush1.msra.mxu0 0.0
        %1123 = vmatprep.subr.mxu0 0.0
        %1124 = vmatpush1.msra.mxu0 0.0
        %1125 = vmatprep.subr.mxu0 0.0
        %1126 = vmatpush1.msra.mxu0 0.0
        %1127 = vmatprep.subr.mxu0 0.0
        %1128 = vmatpush1.msra.mxu0 0.0
        %1129 = vmatprep.subr.mxu0 0.0
        %1130 = vmatpush1.msra.mxu0 0.0
        %1131 = vmatprep.subr.mxu0 0.0
        %1132 = vmatpush1.msra.mxu0 0.0
        %1133 = vmatprep.subr.mxu0 0.0
        %1134 = vmatpush1.msra.mxu0 0.0
        %1135 = vmatprep.subr.mxu0 0.0
        %1136 = vmatpush1.msra.mxu0 0.0
        %1137 = vmatprep.subr.mxu0 0.0
        %1138 = vmatpush1.msra.mxu0 0.0
        %1139 = vmatprep.mubr.f32.mxu0 0.0
        %1140 = vmatmul.mubr.f32.gmra.mrb[0].mxu0 %v1073
        %v1141 = vpop.f32.mrb[0].mxu0
        %v1142 = vadd.f32 %v1070, %v1141
        %v1143 = vpop.f32.mrb[0].mxu0
        %1144 = vdwg.mxu0
        %v1145 = vadd.f32 %v274, %v1142
        %v1146 = vsel %vm281, %v1145, 0.0
        %1147 = vadd.xlane.f32.xlu0 %v1146
        %v1148 = vpop.xlane.xlu0 %1147
        %v1149 = vmul.f32 %v1148, %v285
        %v1150 = vsub.f32 %v1145, %v1149
        %v1151 = vmul.f32 %v1150, %v1150
        %v1152 = vsel %vm281, %v1151, 0.0
        %1153 = vadd.xlane.f32.xlu0 %v1152
        %v1154 = vpop.xlane.xlu0 %1153
        %v1155 = vmul.f32 %v1154, %v285
        %v1156 = vadd.f32 %v1155, 1e-05
        %v1157 = vrsqrt.pop %v1156
        %v1158 = vmul.f32 %v1150, %v1157
        %v1159 = vlaneseq
        %v1160 = vshrl.u32 %v1159, 7
        %v1161 = vsub.s32 0, %v1160
        %v1162 = vrot.slane %v279, %v1161
        %v1163 = vmul.f32 %v1158, %v1162
        %v1164 = vlaneseq
        %v1165 = vshrl.u32 %v1164, 7
        %v1166 = vsub.s32 0, %v1165
        %v1167 = vrot.slane %v280, %v1166
        %v1168 = vadd.f32 %v1163, %v1167
        %v1169 = vld [vmem:[%s3] sm:$0xff]
        %v1170 = vld [vmem:[%s3 + $0x8] sm:$0xff]
        %v1171 = vld [vmem:[%s3 + $0x10] sm:$0xff]
        %v1172 = vld [vmem:[%s3 + $0x18] sm:$0xff]
        %v1174 = vlaneseq
        %v1175 = vshrl.u32 %v1174, 7
        %v1176 = vsub.s32 0, %v1175
        %v1177 = vrot.slane %v275, %v1176
        %v1180 = vsel %vm281, %v1168, 0
        %1182 = vmatprep.subr.mxu0 0.0
        %1183 = vmatpush1.msra.mxu0 %v1169
        %1184 = vmatprep.subr.mxu0 0.0
        %1185 = vmatpush1.msra.mxu0 %v1170
        %1186 = vmatprep.subr.mxu0 0.0
        %1187 = vmatpush1.msra.mxu0 %v1171
        %1188 = vmatprep.subr.mxu0 0.0
        %1189 = vmatpush1.msra.mxu0 %v1172
        %1190 = vmatprep.subr.mxu0 0.0
        %1191 = vmatpush1.msra.mxu0 0.0
        %1192 = vmatprep.subr.mxu0 0.0
        %1193 = vmatpush1.msra.mxu0 0.0
        %1194 = vmatprep.subr.mxu0 0.0
        %1195 = vmatpush1.msra.mxu0 0.0
        %1196 = vmatprep.subr.mxu0 0.0
        %1197 = vmatpush1.msra.mxu0 0.0
        %1198 = vmatprep.subr.mxu0 0.0
        %1199 = vmatpush1.msra.mxu0 0.0
        %1200 = vmatprep.subr.mxu0 0.0
        %1201 = vmatpush1.msra.mxu0 0.0
        %1202 = vmatprep.subr.mxu0 0.0
        %1203 = vmatpush1.msra.mxu0 0.0
        %1204 = vmatprep.subr.mxu0 0.0
        %1205 = vmatpush1.msra.mxu0 0.0
        %1206 = vmatprep.subr.mxu0 0.0
        %1207 = vmatpush1.msra.mxu0 0.0
        %1208 = vmatprep.subr.mxu0 0.0
        %1209 = vmatpush1.msra.mxu0 0.0
        %1210 = vmatprep.subr.mxu0 0.0
        %1211 = vmatpush1.msra.mxu0 0.0
        %1212 = vmatprep.subr.mxu0 0.0
        %1213 = vmatpush1.msra.mxu0 0.0
        %1214 = vmatprep.subr.mxu0 0.0
        %1215 = vmatpush1.msra.mxu0 0.0
        %1216 = vmatprep.subr.mxu0 0.0
        %1217 = vmatpush1.msra.mxu0 0.0
        %1218 = vmatprep.subr.mxu0 0.0
        %1219 = vmatpush1.msra.mxu0 0.0
        %1220 = vmatprep.subr.mxu0 0.0
        %1221 = vmatpush1.msra.mxu0 0.0
        %1222 = vmatprep.subr.mxu0 0.0
        %1223 = vmatpush1.msra.mxu0 0.0
        %1224 = vmatprep.subr.mxu0 0.0
        %1225 = vmatpush1.msra.mxu0 0.0
        %1226 = vmatprep.subr.mxu0 0.0
        %1227 = vmatpush1.msra.mxu0 0.0
        %1228 = vmatprep.subr.mxu0 0.0
        %1229 = vmatpush1.msra.mxu0 0.0
        %1230 = vmatprep.subr.mxu0 0.0
        %1231 = vmatpush1.msra.mxu0 0.0
        %1232 = vmatprep.subr.mxu0 0.0
        %1233 = vmatpush1.msra.mxu0 0.0
        %1234 = vmatprep.subr.mxu0 0.0
        %1235 = vmatpush1.msra.mxu0 0.0
        %1236 = vmatprep.subr.mxu0 0.0
        %1237 = vmatpush1.msra.mxu0 0.0
        %1238 = vmatprep.subr.mxu0 0.0
        %1239 = vmatpush1.msra.mxu0 0.0
        %1240 = vmatprep.subr.mxu0 0.0
        %1241 = vmatpush1.msra.mxu0 0.0
        %1242 = vmatprep.subr.mxu0 0.0
        %1243 = vmatpush1.msra.mxu0 0.0
        %1244 = vmatprep.subr.mxu0 0.0
        %1245 = vmatpush1.msra.mxu0 0.0
        %1246 = vmatprep.mubr.f32.mxu0 0.0
        %1247 = vmatmul.mubr.f32.gmra.mrb[0].mxu0 %v1180
        %v1248 = vpop.f32.mrb[0].mxu0
        %v1249 = vadd.f32 %v1177, %v1248
        %v1250 = vpop.f32.mrb[0].mxu0
        %1251 = vdwg.mxu0
        %v1252 = vmax.f32 %v1249, 0.0
        %v1253 = vld [vmem:[%s4] sm:$0xff]
        %v1254 = vld [vmem:[%s4 + $0x8] sm:$0xff]
        %v1255 = vld [vmem:[%s4 + $0x10] sm:$0xff]
        %v1256 = vld [vmem:[%s4 + $0x18] sm:$0xff]
        %v1257 = vld [vmem:[%s4 + $0x20] sm:$0xff]
        %v1258 = vld [vmem:[%s4 + $0x28] sm:$0xff]
        %v1259 = vld [vmem:[%s4 + $0x30] sm:$0xff]
        %v1260 = vld [vmem:[%s4 + $0x38] sm:$0xff]
        %v1261 = vld [vmem:[%s4 + $0x40] sm:$0xff]
        %v1262 = vld [vmem:[%s4 + $0x48] sm:$0xff]
        %v1263 = vld [vmem:[%s4 + $0x50] sm:$0xff]
        %v1264 = vld [vmem:[%s4 + $0x58] sm:$0xff]
        %v1265 = vld [vmem:[%s4 + $0x60] sm:$0xff]
        %v1266 = vld [vmem:[%s4 + $0x68] sm:$0xff]
        %v1267 = vld [vmem:[%s4 + $0x70] sm:$0xff]
        %v1268 = vld [vmem:[%s4 + $0x78] sm:$0xff]
        %1269 = vrot.lane.b32.xlu0 %v1070, 96
        %v1270 = vpop.permute.xlu0 %1269
        %1272 = vmatprep.subr.mxu0 0.0
        %1273 = vmatpush1.msra.mxu0 %v1253
        %1274 = vmatprep.subr.mxu0 0.0
        %1275 = vmatpush1.msra.mxu0 %v1254
        %1276 = vmatprep.subr.mxu0 0.0
        %1277 = vmatpush1.msra.mxu0 %v1255
        %1278 = vmatprep.subr.mxu0 0.0
        %1279 = vmatpush1.msra.mxu0 %v1256
        %1280 = vmatprep.subr.mxu0 0.0
        %1281 = vmatpush1.msra.mxu0 %v1257
        %1282 = vmatprep.subr.mxu0 0.0
        %1283 = vmatpush1.msra.mxu0 %v1258
        %1284 = vmatprep.subr.mxu0 0.0
        %1285 = vmatpush1.msra.mxu0 %v1259
        %1286 = vmatprep.subr.mxu0 0.0
        %1287 = vmatpush1.msra.mxu0 %v1260
        %1288 = vmatprep.subr.mxu0 0.0
        %1289 = vmatpush1.msra.mxu0 %v1261
        %1290 = vmatprep.subr.mxu0 0.0
        %1291 = vmatpush1.msra.mxu0 %v1262
        %1292 = vmatprep.subr.mxu0 0.0
        %1293 = vmatpush1.msra.mxu0 %v1263
        %1294 = vmatprep.subr.mxu0 0.0
        %1295 = vmatpush1.msra.mxu0 %v1264
        %1296 = vmatprep.subr.mxu0 0.0
        %1297 = vmatpush1.msra.mxu0 %v1265
        %1298 = vmatprep.subr.mxu0 0.0
        %1299 = vmatpush1.msra.mxu0 %v1266
        %1300 = vmatprep.subr.mxu0 0.0
        %1301 = vmatpush1.msra.mxu0 %v1267
        %1302 = vmatprep.subr.mxu0 0.0
        %1303 = vmatpush1.msra.mxu0 %v1268
        %1304 = vmatprep.subr.mxu0 0.0
        %1305 = vmatpush1.msra.mxu0 0.0
        %1306 = vmatprep.subr.mxu0 0.0
        %1307 = vmatpush1.msra.mxu0 0.0
        %1308 = vmatprep.subr.mxu0 0.0
        %1309 = vmatpush1.msra.mxu0 0.0
        %1310 = vmatprep.subr.mxu0 0.0
        %1311 = vmatpush1.msra.mxu0 0.0
        %1312 = vmatprep.subr.mxu0 0.0
        %1313 = vmatpush1.msra.mxu0 0.0
        %1314 = vmatprep.subr.mxu0 0.0
        %1315 = vmatpush1.msra.mxu0 0.0
        %1316 = vmatprep.subr.mxu0 0.0
        %1317 = vmatpush1.msra.mxu0 0.0
        %1318 = vmatprep.subr.mxu0 0.0
        %1319 = vmatpush1.msra.mxu0 0.0
        %1320 = vmatprep.subr.mxu0 0.0
        %1321 = vmatpush1.msra.mxu0 0.0
        %1322 = vmatprep.subr.mxu0 0.0
        %1323 = vmatpush1.msra.mxu0 0.0
        %1324 = vmatprep.subr.mxu0 0.0
        %1325 = vmatpush1.msra.mxu0 0.0
        %1326 = vmatprep.subr.mxu0 0.0
        %1327 = vmatpush1.msra.mxu0 0.0
        %1328 = vmatprep.subr.mxu0 0.0
        %1329 = vmatpush1.msra.mxu0 0.0
        %1330 = vmatprep.subr.mxu0 0.0
        %1331 = vmatpush1.msra.mxu0 0.0
        %1332 = vmatprep.subr.mxu0 0.0
        %1333 = vmatpush1.msra.mxu0 0.0
        %1334 = vmatprep.subr.mxu0 0.0
        %1335 = vmatpush1.msra.mxu0 0.0
        %1336 = vmatprep.mubr.f32.mxu0 0.0
        %1337 = vmatmul.mubr.f32.gmra.mrb[0].mxu0 %v1252
        %v1338 = vpop.f32.mrb[0].mxu0
        %v1339 = vadd.f32 %v1270, %v1338
        %v1340 = vpop.f32.mrb[0].mxu0
        %1341 = vdwg.mxu0
        %v1342 = vadd.f32 %v1145, %v1339
        %1343 = vst.msk [vmem:[%s269] sm:$0xff] %vm281, %v1342
        %s1344 = sand.u32 %s181, 1
        %s1345 = scalar_lea.sflag [#allocation4], %s1344
        %s1346 = sand.u32 %s181, 1
        %s1347 = smul.addr %s1346, 8
        %s1348 = scalar_lea.vmem [#allocation3], %s1347
        // Predicated region
        $region49: #{tpu_custom_call.1} parent=47 // pred_check
          %p1349 = pneg %p191
        $region50: #{tpu_custom_call.1} parent=47 // pred_check_branch
          %1351 = sbr.rel (%p1349) target = $region52
        $region51: #{tpu_custom_call.1} parent=47 // pred_region
          %s1353 = ssub.s32 128, 128
          %1354 = vsyncadd %s1345, %s1353
          %s1355 = smul.addr %s21, 128
          %s1356 = scalar_lea.hbm %s7, %s1355
          %s1358 = sshll.u32 %s1348, 4
          %s1359 = int_to_ptr.vmem [resolvable:$true] %s1358
          %1361 = dma.vmem_to_hbm [thread:$0]  %s1359, 128, %s1356, %s1345
        $region52: #{tpu_custom_call.1} parent=47 // pred_fallthru
          _
      $region48: #{tpu_custom_call.1} parent=5 // pred_fallthru
        _
      %p1362 = scmp.le.s32.totalorder 2, %s16
      // Predicated region
      $region53: #{tpu_custom_call.1} parent=5 // pred_check
        %p1363 = pneg %p1362
      $region54: #{tpu_custom_call.1} parent=5 // pred_check_branch
        %1365 = sbr.rel (%p1363) target = $region56
      $region55: #{tpu_custom_call.1} parent=5 // pred_region
        %s1366 = ssub.s32 %s16, 2
        // Predicated region
        $region57: #{tpu_custom_call.1} parent=55 // pred_check
          %p1367 = pneg %p197
        $region58: #{tpu_custom_call.1} parent=55 // pred_check_branch
          %1369 = sbr.rel (%p1367) target = $region60
        $region59: #{tpu_custom_call.1} parent=55 // pred_region
          %s1370 = sand.u32 %s182, 1
          %s1371 = scalar_lea.sflag [#allocation4], %s1370
          %s1372 = sand.u32 %s182, 1
          %s1373 = smul.addr %s1372, 8
          %s1374 = scalar_lea.vmem [#allocation3], %s1373
          %1375 = dma.done %s1371, 128
        $region60: #{tpu_custom_call.1} parent=55 // pred_fallthru
          _
      $region56: #{tpu_custom_call.1} parent=5 // pred_fallthru
        _
    $region6: #{tpu_custom_call.1} parent=1 // loop_footer
      %s20 = sadd.s32 1, %s16
    $region7: #{tpu_custom_call.1} parent=1 // loop_footer_branch
      %15 = sbr.rel target = $region3
    $region8: #{tpu_custom_call.1} parent=1 // loop_exit
      _
    %1376 = vsyncpa [#allocation4], 1
    %s1377 = scalar_lea.sflag [#allocation4], 1
    %1378 = vsyncpa %s1377, 1

// kernel: tpu_custom_call.1
$region0: #{tpu_custom_call.1}
  #allocation0 [shape = 'u32[]', space=smem, size = 0x4, offset = 0x4, fixed_abs, tag = 'smem constant byte address 0x4 - core index']
  #allocation1 [shape = 'u32[144,128]{1,0:T(1,128)}', space=vmem, size = 0x12000, scoped, tag = 'internal scratch']
  #allocation2 [shape = 'f32[8,32]{1,0:T(8,128)}', space=vmem, size = 0x1000, scoped, tag = 'scratch operand']
  %s0 = inlined_call_operand.vmem [shape: f32[2,8,32], index: 0, kind: input, shape index: {}]
  %s1 = inlined_call_operand.vmem [shape: f32[32,96], index: 1, kind: input, shape index: {}]
  %s2 = inlined_call_operand.vmem [shape: f32[32,32], index: 2, kind: input, shape index: {}]
  %s3 = inlined_call_operand.vmem [shape: f32[32,128], index: 3, kind: input, shape index: {}]
  %s4 = inlined_call_operand.vmem [shape: f32[128,32], index: 4, kind: input, shape index: {}]
  %s5 = inlined_call_operand.vmem [shape: f32[1,192], index: 5, kind: input, shape index: {}]
  %s6 = inlined_call_operand.vmem [shape: f32[4,32], index: 6, kind: input, shape index: {}]
  %s7 = inlined_call_operand.hbm [shape: f32[2,8,32], index: 7, kind: output, shape index: {}]
  %s8 = sld [smem:[#allocation0]]
  $region61: #{tpu_custom_call.1} parent=0
    _
  %s10 = ssub.s32 1, %s8
  %s11 = scalar_select 0, %s10, %s8
  $region1: #{tpu_custom_call.1} parent=0
    #allocation3 [shape = 'u8[8192]{0}', space=vmem, size = 0x2000, scoped, tag = 'output window, operand 0']
    #allocation4 [shape = 's32[2]{0}', space=sflag, size = 0x8, scoped, tag = 'scoped memory for tpu_custom_call.1']
    %12 = vsyncpa [#allocation4], 0
    %s13 = scalar_lea.sflag [#allocation4], 1
    %14 = vsyncpa %s13, 0
    loop: start=0, step=1, limit=4
    $region2: #{tpu_custom_call.1} parent=1 // loop_pre_header
      _
    $region3: #{tpu_custom_call.1} parent=1 // loop_header
      %s16 = sphi 0, %s20
      %p17 = scmp.ge.s32.totalorder %s16, 4
      %s26 = sphi 0, %s28
      %s29 = sphi 0, %s26
      %s30 = sphi 0, %s29
      %s46 = sphi 0, %s30
      %s50 = sphi 0, %s50
      %s52 = sphi 0, %s50
      %s53 = sphi 0, %s52
      %s67 = sphi 0, %s53
      %s71 = sphi 0, %s71
      %s73 = sphi 0, %s71
      %s74 = sphi 0, %s73
      %s88 = sphi 0, %s74
      %s92 = sphi 0, %s92
      %s94 = sphi 0, %s92
      %s95 = sphi 0, %s94
      %s109 = sphi 0, %s95
      %s113 = sphi 0, %s113
      %s115 = sphi 0, %s113
      %s116 = sphi 0, %s115
      %s130 = sphi 0, %s116
      %s134 = sphi 0, %s134
      %s136 = sphi 0, %s134
      %s137 = sphi 0, %s136
      %s151 = sphi 0, %s137
      %s155 = sphi 0, %s155
      %s157 = sphi 0, %s155
      %s158 = sphi 0, %s157
      %s172 = sphi 0, %s158
      %s178 = sphi 0, %s180
      %s181 = sphi 0, %s178
      %s182 = sphi 0, %s181
      %s198 = sphi 0, %s182
    $region4: #{tpu_custom_call.1} parent=1 // loop_header_branch
      %19 = sbr.rel (%p17) target = $region8
    $region5: #{tpu_custom_call.1} parent=1 // loop_body
      %s21 = ssub.s32 %s16, 1
      %s22 = ssub.s32 %s16, 2
      %s23 = sadd.s32 %s16, 1
      %s24 = ssub.s32 %s16, %s23
      %p25 = scmp.eq.s32.totalorder %s24, 0
      %s27 = sadd.s32 %s26, 1
      %s28 = scalar_select %p25, %s26, %s27
      %p31 = pneg %p25
      %p32 = scmp.eq.s32.totalorder %s16, 1
      %p33 = por %p31, %p32
      %p34 = scmp.ne.s32.totalorder %s26, %s29
      %p35 = scmp.eq.s32.totalorder %s16, 0
      %p36 = por %p34, %p35
      %p37 = scmp.ne.s32.totalorder %s26, %s29
      %p38 = scmp.eq.s32.totalorder %s21, 1
      %p39 = por %p37, %p38
      %p40 = scmp.ne.s32.totalorder %s29, %s30
      %p41 = scmp.eq.s32.totalorder %s21, 0
      %p42 = por %p40, %p41
      %p43 = scmp.ne.s32.totalorder %s29, %s30
      %p44 = scmp.eq.s32.totalorder %s22, 1
      %p45 = por %p43, %p44
      %p47 = scmp.ne.s32.totalorder %s30, %s46
      %p48 = scmp.eq.s32.totalorder %s22, 0
      %p49 = por %p47, %p48
      %s51 = sadd.s32 %s50, 1
      %p54 = scmp.eq.s32.totalorder %s16, 1
      %p55 = scmp.ne.s32.totalorder %s50, %s52
      %p56 = scmp.eq.s32.totalorder %s16, 0
      %p57 = por %p55, %p56
      %p58 = scmp.ne.s32.totalorder %s50, %s52
      %p59 = scmp.eq.s32.totalorder %s21, 1
      %p60 = por %p58, %p59
      %p61 = scmp.ne.s32.totalorder %s52, %s53
      %p62 = scmp.eq.s32.totalorder %s21, 0
      %p63 = por %p61, %p62
      %p64 = scmp.ne.s32.totalorder %s52, %s53
      %p65 = scmp.eq.s32.totalorder %s22, 1
      %p66 = por %p64, %p65
      %p68 = scmp.ne.s32.totalorder %s53, %s67
      %p69 = scmp.eq.s32.totalorder %s22, 0
      %p70 = por %p68, %p69
      %s72 = sadd.s32 %s71, 1
      %p75 = scmp.eq.s32.totalorder %s16, 1
      %p76 = scmp.ne.s32.totalorder %s71, %s73
      %p77 = scmp.eq.s32.totalorder %s16, 0
      %p78 = por %p76, %p77
      %p79 = scmp.ne.s32.totalorder %s71, %s73
      %p80 = scmp.eq.s32.totalorder %s21, 1
      %p81 = por %p79, %p80
      %p82 = scmp.ne.s32.totalorder %s73, %s74
      %p83 = scmp.eq.s32.totalorder %s21, 0
      %p84 = por %p82, %p83
      %p85 = scmp.ne.s32.totalorder %s73, %s74
      %p86 = scmp.eq.s32.totalorder %s22, 1
      %p87 = por %p85, %p86
      %p89 = scmp.ne.s32.totalorder %s74, %s88
      %p90 = scmp.eq.s32.totalorder %s22, 0
      %p91 = por %p89, %p90
      %s93 = sadd.s32 %s92, 1
      %p96 = scmp.eq.s32.totalorder %s16, 1
      %p97 = scmp.ne.s32.totalorder %s92, %s94
      %p98 = scmp.eq.s32.totalorder %s16, 0
      %p99 = por %p97, %p98
      %p100 = scmp.ne.s32.totalorder %s92, %s94
      %p101 = scmp.eq.s32.totalorder %s21, 1
      %p102 = por %p100, %p101
      %p103 = scmp.ne.s32.totalorder %s94, %s95
      %p104 = scmp.eq.s32.totalorder %s21, 0
      %p105 = por %p103, %p104
      %p106 = scmp.ne.s32.totalorder %s94, %s95
      %p107 = scmp.eq.s32.totalorder %s22, 1
      %p108 = por %p106, %p107
      %p110 = scmp.ne.s32.totalorder %s95, %s109
      %p111 = scmp.eq.s32.totalorder %s22, 0
      %p112 = por %p110, %p111
      %s114 = sadd.s32 %s113, 1
      %p117 = scmp.eq.s32.totalorder %s16, 1
      %p118 = scmp.ne.s32.totalorder %s113, %s115
      %p119 = scmp.eq.s32.totalorder %s16, 0
      %p120 = por %p118, %p119
      %p121 = scmp.ne.s32.totalorder %s113, %s115
      %p122 = scmp.eq.s32.totalorder %s21, 1
      %p123 = por %p121, %p122
      %p124 = scmp.ne.s32.totalorder %s115, %s116
      %p125 = scmp.eq.s32.totalorder %s21, 0
      %p126 = por %p124, %p125
      %p127 = scmp.ne.s32.totalorder %s115, %s116
      %p128 = scmp.eq.s32.totalorder %s22, 1
      %p129 = por %p127, %p128
      %p131 = scmp.ne.s32.totalorder %s116, %s130
      %p132 = scmp.eq.s32.totalorder %s22, 0
      %p133 = por %p131, %p132
      %s135 = sadd.s32 %s134, 1
      %p138 = scmp.eq.s32.totalorder %s16, 1
      %p139 = scmp.ne.s32.totalorder %s134, %s136
      %p140 = scmp.eq.s32.totalorder %s16, 0
      %p141 = por %p139, %p140
      %p142 = scmp.ne.s32.totalorder %s134, %s136
      %p143 = scmp.eq.s32.totalorder %s21, 1
      %p144 = por %p142, %p143
      %p145 = scmp.ne.s32.totalorder %s136, %s137
      %p146 = scmp.eq.s32.totalorder %s21, 0
      %p147 = por %p145, %p146
      %p148 = scmp.ne.s32.totalorder %s136, %s137
      %p149 = scmp.eq.s32.totalorder %s22, 1
      %p150 = por %p148, %p149
      %p152 = scmp.ne.s32.totalorder %s137, %s151
      %p153 = scmp.eq.s32.totalorder %s22, 0
      %p154 = por %p152, %p153
      %s156 = sadd.s32 %s155, 1
      %p159 = scmp.eq.s32.totalorder %s16, 1
      %p160 = scmp.ne.s32.totalorder %s155, %s157
      %p161 = scmp.eq.s32.totalorder %s16, 0
      %p162 = por %p160, %p161
      %p163 = scmp.ne.s32.totalorder %s155, %s157
      %p164 = scmp.eq.s32.totalorder %s21, 1
      %p165 = por %p163, %p164
      %p166 = scmp.ne.s32.totalorder %s157, %s158
      %p167 = scmp.eq.s32.totalorder %s21, 0
      %p168 = por %p166, %p167
      %p169 = scmp.ne.s32.totalorder %s157, %s158
      %p170 = scmp.eq.s32.totalorder %s22, 1
      %p171 = por %p169, %p170
      %p173 = scmp.ne.s32.totalorder %s158, %s172
      %p174 = scmp.eq.s32.totalorder %s22, 0
      %p175 = por %p173, %p174
      %s176 = ssub.s32 %s16, %s23
      %p177 = scmp.eq.s32.totalorder %s176, 0
      %s179 = sadd.s32 %s178, 1
      %s180 = scalar_select %p177, %s178, %s179
      %p183 = pneg %p177
      %p184 = scmp.eq.s32.totalorder %s16, 1
      %p185 = por %p183, %p184
      %p186 = scmp.ne.s32.totalorder %s178, %s181
      %p187 = scmp.eq.s32.totalorder %s16, 0
      %p188 = por %p186, %p187
      %p189 = scmp.ne.s32.totalorder %s178, %s181
      %p190 = scmp.eq.s32.totalorder %s21, 1
      %p191 = por %p189, %p190
      %p192 = scmp.ne.s32.totalorder %s181, %s182
      %p193 = scmp.eq.s32.totalorder %s21, 0
      %p194 = por %p192, %p193
      %p195 = scmp.ne.s32.totalorder %s181, %s182
      %p196 = scmp.eq.s32.totalorder %s22, 1
      %p197 = por %p195, %p196
      %p199 = scmp.ne.s32.totalorder %s182, %s198
      %p200 = scmp.eq.s32.totalorder %s22, 0
      %p201 = por %p199, %p200
      %p202 = scmp.le.s32.totalorder 1, %s16
      %p203 = scmp.lt.s32.totalorder %s16, 3
      %p204 = pnand %p202, %p203
      %p205 = pneg %p204
      // Predicated region
      $region9: #{tpu_custom_call.1} parent=5 // pred_check
        _
      $region10: #{tpu_custom_call.1} parent=5 // pred_check_branch
        %207 = sbr.rel (%p204) target = $region12
      $region11: #{tpu_custom_call.1} parent=5 // pred_region
        %s208 = ssub.s32 %s16, 1
        // Predicated region
        $region13: #{tpu_custom_call.1} parent=11 // pred_check
          %p209 = pneg %p63
        $region14: #{tpu_custom_call.1} parent=11 // pred_check_branch
          %211 = sbr.rel (%p209) target = $region16
        $region15: #{tpu_custom_call.1} parent=11 // pred_region
          _
        $region16: #{tpu_custom_call.1} parent=11 // pred_fallthru
          _
        // Predicated region
        $region17: #{tpu_custom_call.1} parent=11 // pred_check
          %p212 = pneg %p84
        $region18: #{tpu_custom_call.1} parent=11 // pred_check_branch
          %214 = sbr.rel (%p212) target = $region20
        $region19: #{tpu_custom_call.1} parent=11 // pred_region
          _
        $region20: #{tpu_custom_call.1} parent=11 // pred_fallthru
          _
        // Predicated region
        $region21: #{tpu_custom_call.1} parent=11 // pred_check
          %p215 = pneg %p105
        $region22: #{tpu_custom_call.1} parent=11 // pred_check_branch
          %217 = sbr.rel (%p215) target = $region24
        $region23: #{tpu_custom_call.1} parent=11 // pred_region
          _
        $region24: #{tpu_custom_call.1} parent=11 // pred_fallthru
          _
        // Predicated region
        $region25: #{tpu_custom_call.1} parent=11 // pred_check
          %p218 = pneg %p126
        $region26: #{tpu_custom_call.1} parent=11 // pred_check_branch
          %220 = sbr.rel (%p218) target = $region28
        $region27: #{tpu_custom_call.1} parent=11 // pred_region
          _
        $region28: #{tpu_custom_call.1} parent=11 // pred_fallthru
          _
        // Predicated region
        $region29: #{tpu_custom_call.1} parent=11 // pred_check
          %p221 = pneg %p147
        $region30: #{tpu_custom_call.1} parent=11 // pred_check_branch
          %223 = sbr.rel (%p221) target = $region32
        $region31: #{tpu_custom_call.1} parent=11 // pred_region
          _
        $region32: #{tpu_custom_call.1} parent=11 // pred_fallthru
          _
        // Predicated region
        $region33: #{tpu_custom_call.1} parent=11 // pred_check
          %p224 = pneg %p168
        $region34: #{tpu_custom_call.1} parent=11 // pred_check_branch
          %226 = sbr.rel (%p224) target = $region36
        $region35: #{tpu_custom_call.1} parent=11 // pred_region
          _
        $region36: #{tpu_custom_call.1} parent=11 // pred_fallthru
          _
      $region12: #{tpu_custom_call.1} parent=5 // pred_fallthru
        _
      %p227 = scmp.lt.s32.totalorder %s16, 2
      // Predicated region
      $region37: #{tpu_custom_call.1} parent=5 // pred_check
        %p228 = pneg %p227
      $region38: #{tpu_custom_call.1} parent=5 // pred_check_branch
        %230 = sbr.rel (%p228) target = $region40
      $region39: #{tpu_custom_call.1} parent=5 // pred_region
        // Predicated region
        $region41: #{tpu_custom_call.1} parent=39 // pred_check
          %p231 = pneg %p36
        $region42: #{tpu_custom_call.1} parent=39 // pred_check_branch
          %233 = sbr.rel (%p231) target = $region44
        $region43: #{tpu_custom_call.1} parent=39 // pred_region
          %p234 = scmp.lt.s32.totalorder %s16, 1
          %s235 = scalar_select %p234, %s16, 1
          %s236 = smul.addr %s235, 8
          %s237 = scalar_lea.vmem %s0, %s236
        $region44: #{tpu_custom_call.1} parent=39 // pred_fallthru
          _
      $region40: #{tpu_custom_call.1} parent=5 // pred_fallthru
        _
      %p238 = scmp.le.s32.totalorder 1, %s16
      %p239 = scmp.lt.s32.totalorder %s16, 3
      %p240 = pnand %p238, %p239
      %p241 = pneg %p240
      // Predicated region
      $region45: #{tpu_custom_call.1} parent=5 // pred_check
        _
      $region46: #{tpu_custom_call.1} parent=5 // pred_check_branch
        %243 = sbr.rel (%p240) target = $region48
      $region47: #{tpu_custom_call.1} parent=5 // pred_region
        %s244 = ssub.s32 %s16, 1
        %p245 = scmp.lt.s32.totalorder %s21, 1
        %s246 = scalar_select %p245, %s21, 1
        %s247 = smul.addr %s246, 8
        %s248 = scalar_lea.vmem %s0, %s247
        %p249 = pneg %p42
        %p250 = pneg %p39
        %p251 = pneg %p63
        %p252 = pneg %p60
        %p253 = pneg %p84
        %p254 = pneg %p81
        %p255 = pneg %p105
        %p256 = pneg %p102
        %p257 = pneg %p126
        %p258 = pneg %p123
        %p259 = pneg %p147
        %p260 = pneg %p144
        %p261 = pneg %p168
        %p262 = pneg %p165
        %p263 = pneg %p194
        %p264 = pneg %p191
        %s265 = sand.u32 %s181, 1
        %s266 = scalar_lea.sflag [#allocation4], %s265
        %s267 = sand.u32 %s181, 1
        %s268 = smul.addr %s267, 8
        %s269 = scalar_lea.vmem [#allocation3], %s268
        %p270 = scmp.lt.s32.totalorder %s21, 1
        %s271 = scalar_select %p270, %s21, 1
        %s272 = smul.addr %s271, 8
        %s273 = scalar_lea.vmem %s0, %s272
        %v274 = vld [vmem:[%s273] sm:$0xff]
        %v275 = vld [vmem:[%s5] sm:$0x1]
        %v276 = vld [vmem:[%s5 + $0x1] sm:$0x1]
        %v277 = vld [vmem:[%s6] sm:$0x1]
        %v278 = vld [vmem:[%s6 + $0x1] sm:$0x1]
        %v279 = vld [vmem:[%s6 + $0x2] sm:$0x1]
        %v280 = vld [vmem:[%s6 + $0x3] sm:$0x1]
        %vm281 = vcmask 261120
        %v282 = vsel %vm281, %v274, 0.0
        %283 = vadd.xlane.f32.xlu0 %v282
        %v284 = vpop.xlane.xlu0 %283
        %v285 = vrcp.pop 32.0
        %v286 = vmul.f32 %v284, %v285
        %v287 = vsub.f32 %v274, %v286
        %v288 = vmul.f32 %v287, %v287
        %v289 = vsel %vm281, %v288, 0.0
        %290 = vadd.xlane.f32.xlu0 %v289
        %v291 = vpop.xlane.xlu0 %290
        %v292 = vmul.f32 %v291, %v285
        %v293 = vadd.f32 %v292, 1e-05
        %v294 = vrsqrt.pop %v293
        %v295 = vmul.f32 %v287, %v294
        %v296 = vlaneseq
        %v297 = vshrl.u32 %v296, 7
        %v298 = vsub.s32 0, %v297
        %v299 = vrot.slane %v277, %v298
        %v300 = vmul.f32 %v295, %v299
        %v301 = vlaneseq
        %v302 = vshrl.u32 %v301, 7
        %v303 = vsub.s32 0, %v302
        %v304 = vrot.slane %v278, %v303
        %v305 = vadd.f32 %v300, %v304
        %v306 = vld [vmem:[%s1] sm:$0xff]
        %v307 = vld [vmem:[%s1 + $0x8] sm:$0xff]
        %v308 = vld [vmem:[%s1 + $0x10] sm:$0xff]
        %v309 = vld [vmem:[%s1 + $0x18] sm:$0xff]
        %v311 = vsel %vm281, %v305, 0
        %313 = vmatprep.subr.mxu0 0.0
        %314 = vmatpush1.msra.mxu0 %v306
        %315 = vmatprep.subr.mxu0 0.0
        %316 = vmatpush1.msra.mxu0 %v307
        %317 = vmatprep.subr.mxu0 0.0
        %318 = vmatpush1.msra.mxu0 %v308
        %319 = vmatprep.subr.mxu0 0.0
        %320 = vmatpush1.msra.mxu0 %v309
        %321 = vmatprep.subr.mxu0 0.0
        %322 = vmatpush1.msra.mxu0 0.0
        %323 = vmatprep.subr.mxu0 0.0
        %324 = vmatpush1.msra.mxu0 0.0
        %325 = vmatprep.subr.mxu0 0.0
        %326 = vmatpush1.msra.mxu0 0.0
        %327 = vmatprep.subr.mxu0 0.0
        %328 = vmatpush1.msra.mxu0 0.0
        %329 = vmatprep.subr.mxu0 0.0
        %330 = vmatpush1.msra.mxu0 0.0
        %331 = vmatprep.subr.mxu0 0.0
        %332 = vmatpush1.msra.mxu0 0.0
        %333 = vmatprep.subr.mxu0 0.0
        %334 = vmatpush1.msra.mxu0 0.0
        %335 = vmatprep.subr.mxu0 0.0
        %336 = vmatpush1.msra.mxu0 0.0
        %337 = vmatprep.subr.mxu0 0.0
        %338 = vmatpush1.msra.mxu0 0.0
        %339 = vmatprep.subr.mxu0 0.0
        %340 = vmatpush1.msra.mxu0 0.0
        %341 = vmatprep.subr.mxu0 0.0
        %342 = vmatpush1.msra.mxu0 0.0
        %343 = vmatprep.subr.mxu0 0.0
        %344 = vmatpush1.msra.mxu0 0.0
        %345 = vmatprep.subr.mxu0 0.0
        %346 = vmatpush1.msra.mxu0 0.0
        %347 = vmatprep.subr.mxu0 0.0
        %348 = vmatpush1.msra.mxu0 0.0
        %349 = vmatprep.subr.mxu0 0.0
        %350 = vmatpush1.msra.mxu0 0.0
        %351 = vmatprep.subr.mxu0 0.0
        %352 = vmatpush1.msra.mxu0 0.0
        %353 = vmatprep.subr.mxu0 0.0
        %354 = vmatpush1.msra.mxu0 0.0
        %355 = vmatprep.subr.mxu0 0.0
        %356 = vmatpush1.msra.mxu0 0.0
        %357 = vmatprep.subr.mxu0 0.0
        %358 = vmatpush1.msra.mxu0 0.0
        %359 = vmatprep.subr.mxu0 0.0
        %360 = vmatpush1.msra.mxu0 0.0
        %361 = vmatprep.subr.mxu0 0.0
        %362 = vmatpush1.msra.mxu0 0.0
        %363 = vmatprep.subr.mxu0 0.0
        %364 = vmatpush1.msra.mxu0 0.0
        %365 = vmatprep.subr.mxu0 0.0
        %366 = vmatpush1.msra.mxu0 0.0
        %367 = vmatprep.subr.mxu0 0.0
        %368 = vmatpush1.msra.mxu0 0.0
        %369 = vmatprep.subr.mxu0 0.0
        %370 = vmatpush1.msra.mxu0 0.0
        %371 = vmatprep.subr.mxu0 0.0
        %372 = vmatpush1.msra.mxu0 0.0
        %373 = vmatprep.subr.mxu0 0.0
        %374 = vmatpush1.msra.mxu0 0.0
        %375 = vmatprep.subr.mxu0 0.0
        %376 = vmatpush1.msra.mxu0 0.0
        %377 = vmatprep.mubr.f32.mxu0 0.0
        %378 = vmatmul.mubr.f32.gmra.mrb[0].mxu0 %v311
        %v379 = vpop.f32.mrb[0].mxu0
        %v380 = vadd.f32 0.0, %v379
        %v381 = vpop.f32.mrb[0].mxu0
        %382 = vdwg.mxu0
        %384 = vrot.lane.b32.xlu0 %v380, 96
        %v385 = vpop.permute.xlu0 %384
        %vm386 = vcmask 64512
        %v387 = vsel %vm386, %v380, 0
        %v389 = vsel %vm386, %v385, 0
        %391 = vmatprep.subr.mxu0 0.0
        %392 = vmatpush1.xpose.msra.mxu0 %v389
        %393 = vmatprep.subr.mxu0 0.0
        %394 = vmatpush1.xpose.msra.mxu0 0.0
        %395 = vmatprep.subr.mxu0 0.0
        %396 = vmatpush1.xpose.msra.mxu0 0.0
        %397 = vmatprep.subr.mxu0 0.0
        %398 = vmatpush1.xpose.msra.mxu0 0.0
        %399 = vmatprep.subr.mxu0 0.0
        %400 = vmatpush1.xpose.msra.mxu0 0.0
        %401 = vmatprep.subr.mxu0 0.0
        %402 = vmatpush1.xpose.msra.mxu0 0.0
        %403 = vmatprep.subr.mxu0 0.0
        %404 = vmatpush1.xpose.msra.mxu0 0.0
        %405 = vmatprep.subr.mxu0 0.0
        %406 = vmatpush1.xpose.msra.mxu0 0.0
        %407 = vmatprep.subr.mxu0 0.0
        %408 = vmatpush1.xpose.msra.mxu0 0.0
        %409 = vmatprep.subr.mxu0 0.0
        %410 = vmatpush1.xpose.msra.mxu0 0.0
        %411 = vmatprep.subr.mxu0 0.0
        %412 = vmatpush1.xpose.msra.mxu0 0.0
        %413 = vmatprep.subr.mxu0 0.0
        %414 = vmatpush1.xpose.msra.mxu0 0.0
        %415 = vmatprep.subr.mxu0 0.0
        %416 = vmatpush1.xpose.msra.mxu0 0.0
        %417 = vmatprep.subr.mxu0 0.0
        %418 = vmatpush1.xpose.msra.mxu0 0.0
        %419 = vmatprep.subr.mxu0 0.0
        %420 = vmatpush1.xpose.msra.mxu0 0.0
        %421 = vmatprep.subr.mxu0 0.0
        %422 = vmatpush1.xpose.msra.mxu0 0.0
        %423 = vmatprep.subr.mxu0 0.0
        %424 = vmatpush1.xpose.msra.mxu0 0.0
        %425 = vmatprep.subr.mxu0 0.0
        %426 = vmatpush1.xpose.msra.mxu0 0.0
        %427 = vmatprep.subr.mxu0 0.0
        %428 = vmatpush1.xpose.msra.mxu0 0.0
        %429 = vmatprep.subr.mxu0 0.0
        %430 = vmatpush1.xpose.msra.mxu0 0.0
        %431 = vmatprep.subr.mxu0 0.0
        %432 = vmatpush1.xpose.msra.mxu0 0.0
        %433 = vmatprep.subr.mxu0 0.0
        %434 = vmatpush1.xpose.msra.mxu0 0.0
        %435 = vmatprep.subr.mxu0 0.0
        %436 = vmatpush1.xpose.msra.mxu0 0.0
        %437 = vmatprep.subr.mxu0 0.0
        %438 = vmatpush1.xpose.msra.mxu0 0.0
        %439 = vmatprep.subr.mxu0 0.0
        %440 = vmatpush1.xpose.msra.mxu0 0.0
        %441 = vmatprep.subr.mxu0 0.0
        %442 = vmatpush1.xpose.msra.mxu0 0.0
        %443 = vmatprep.subr.mxu0 0.0
        %444 = vmatpush1.xpose.msra.mxu0 0.0
        %445 = vmatprep.subr.mxu0 0.0
        %446 = vmatpush1.xpose.msra.mxu0 0.0
        %447 = vmatprep.subr.mxu0 0.0
        %448 = vmatpush1.xpose.msra.mxu0 0.0
        %449 = vmatprep.subr.mxu0 0.0
        %450 = vmatpush1.xpose.msra.mxu0 0.0
        %451 = vmatprep.subr.mxu0 0.0
        %452 = vmatpush1.xpose.msra.mxu0 0.0
        %453 = vmatprep.subr.mxu0 0.0
        %454 = vmatpush1.xpose.msra.mxu0 0.0
        %455 = vmatprep.mubr.f32.mxu0 0.0
        %456 = vmatmul.mubr.f32.gmra.mrb[0].mxu0 %v387
        %v457 = vpop.f32.mrb[0].mxu0
        %v458 = vadd.f32 0.0, %v457
        %v459 = vpop.f32.mrb[0].mxu0
        %460 = vdwg.mxu0
        %v461 = vsel %vm386, %v458, -inf
        %462 = vmax.xlane.f32.xlu0 %v461
        %v463 = vpop.xlane.xlu0 %462
        %v464 = vsub.f32 %v458, %v463
        %v465 = vmul.f32 %v464, 1.442695
        %v466 = vpow.pop %v465
        %v467 = vsel %vm386, %v466, 0.0
        %468 = vadd.xlane.f32.xlu0 %v467
        %v469 = vpop.xlane.xlu0 %468
        %v470 = vrcp.pop %v469
        %v471 = vmul.f32 %v466, %v470
        %472 = vrot.lane.b32.xlu0 %v380, 64
        %v473 = vpop.permute.xlu0 %472
        %v476 = vsel %vm386, %v471, 0
        %478 = vmatprep.subr.mxu0 0.0
        %479 = vmatpush1.msra.mxu0 %v473
        %480 = vmatprep.subr.mxu0 0.0
        %481 = vmatpush1.msra.mxu0 0.0
        %482 = vmatprep.subr.mxu0 0.0
        %483 = vmatpush1.msra.mxu0 0.0
        %484 = vmatprep.subr.mxu0 0.0
        %485 = vmatpush1.msra.mxu0 0.0
        %486 = vmatprep.subr.mxu0 0.0
        %487 = vmatpush1.msra.mxu0 0.0
        %488 = vmatprep.subr.mxu0 0.0
        %489 = vmatpush1.msra.mxu0 0.0
        %490 = vmatprep.subr.mxu0 0.0
        %491 = vmatpush1.msra.mxu0 0.0
        %492 = vmatprep.subr.mxu0 0.0
        %493 = vmatpush1.msra.mxu0 0.0
        %494 = vmatprep.subr.mxu0 0.0
        %495 = vmatpush1.msra.mxu0 0.0
        %496 = vmatprep.subr.mxu0 0.0
        %497 = vmatpush1.msra.mxu0 0.0
        %498 = vmatprep.subr.mxu0 0.0
        %499 = vmatpush1.msra.mxu0 0.0
        %500 = vmatprep.subr.mxu0 0.0
        %501 = vmatpush1.msra.mxu0 0.0
        %502 = vmatprep.subr.mxu0 0.0
        %503 = vmatpush1.msra.mxu0 0.0
        %504 = vmatprep.subr.mxu0 0.0
        %505 = vmatpush1.msra.mxu0 0.0
        %506 = vmatprep.subr.mxu0 0.0
        %507 = vmatpush1.msra.mxu0 0.0
        %508 = vmatprep.subr.mxu0 0.0
        %509 = vmatpush1.msra.mxu0 0.0
        %510 = vmatprep.subr.mxu0 0.0
        %511 = vmatpush1.msra.mxu0 0.0
        %512 = vmatprep.subr.mxu0 0.0
        %513 = vmatpush1.msra.mxu0 0.0
        %514 = vmatprep.subr.mxu0 0.0
        %515 = vmatpush1.msra.mxu0 0.0
        %516 = vmatprep.subr.mxu0 0.0
        %517 = vmatpush1.msra.mxu0 0.0
        %518 = vmatprep.subr.mxu0 0.0
        %519 = vmatpush1.msra.mxu0 0.0
        %520 = vmatprep.subr.mxu0 0.0
        %521 = vmatpush1.msra.mxu0 0.0
        %522 = vmatprep.subr.mxu0 0.0
        %523 = vmatpush1.msra.mxu0 0.0
        %524 = vmatprep.subr.mxu0 0.0
        %525 = vmatpush1.msra.mxu0 0.0
        %526 = vmatprep.subr.mxu0 0.0
        %527 = vmatpush1.msra.mxu0 0.0
        %528 = vmatprep.subr.mxu0 0.0
        %529 = vmatpush1.msra.mxu0 0.0
        %530 = vmatprep.subr.mxu0 0.0
        %531 = vmatpush1.msra.mxu0 0.0
        %532 = vmatprep.subr.mxu0 0.0
        %533 = vmatpush1.msra.mxu0 0.0
        %534 = vmatprep.subr.mxu0 0.0
        %535 = vmatpush1.msra.mxu0 0.0
        %536 = vmatprep.subr.mxu0 0.0
        %537 = vmatpush1.msra.mxu0 0.0
        %538 = vmatprep.subr.mxu0 0.0
        %539 = vmatpush1.msra.mxu0 0.0
        %540 = vmatprep.subr.mxu0 0.0
        %541 = vmatpush1.msra.mxu0 0.0
        %542 = vmatprep.mubr.f32.mxu0 0.0
        %543 = vmatmul.mubr.f32.gmra.mrb[0].mxu0 %v476
        %v544 = vpop.f32.mrb[0].mxu0
        %v545 = vadd.f32 0.0, %v544
        %v546 = vpop.f32.mrb[0].mxu0
        %547 = vdwg.mxu0
        %548 = vrot.lane.b32.xlu0 %v380, 120
        %v549 = vpop.permute.xlu0 %548
        %550 = vrot.lane.b32.xlu0 %v380, 88
        %v551 = vpop.permute.xlu0 %550
        %v552 = vsel %vm386, %v549, 0
        %v554 = vsel %vm386, %v551, 0
        %556 = vmatprep.subr.mxu0 0.0
        %557 = vmatpush1.xpose.msra.mxu0 %v554
        %558 = vmatprep.subr.mxu0 0.0
        %559 = vmatpush1.xpose.msra.mxu0 0.0
        %560 = vmatprep.subr.mxu0 0.0
        %561 = vmatpush1.xpose.msra.mxu0 0.0
        %562 = vmatprep.subr.mxu0 0.0
        %563 = vmatpush1.xpose.msra.mxu0 0.0
        %564 = vmatprep.subr.mxu0 0.0
        %565 = vmatpush1.xpose.msra.mxu0 0.0
        %566 = vmatprep.subr.mxu0 0.0
        %567 = vmatpush1.xpose.msra.mxu0 0.0
        %568 = vmatprep.subr.mxu0 0.0
        %569 = vmatpush1.xpose.msra.mxu0 0.0
        %570 = vmatprep.subr.mxu0 0.0
        %571 = vmatpush1.xpose.msra.mxu0 0.0
        %572 = vmatprep.subr.mxu0 0.0
        %573 = vmatpush1.xpose.msra.mxu0 0.0
        %574 = vmatprep.subr.mxu0 0.0
        %575 = vmatpush1.xpose.msra.mxu0 0.0
        %576 = vmatprep.subr.mxu0 0.0
        %577 = vmatpush1.xpose.msra.mxu0 0.0
        %578 = vmatprep.subr.mxu0 0.0
        %579 = vmatpush1.xpose.msra.mxu0 0.0
        %580 = vmatprep.subr.mxu0 0.0
        %581 = vmatpush1.xpose.msra.mxu0 0.0
        %582 = vmatprep.subr.mxu0 0.0
        %583 = vmatpush1.xpose.msra.mxu0 0.0
        %584 = vmatprep.subr.mxu0 0.0
        %585 = vmatpush1.xpose.msra.mxu0 0.0
        %586 = vmatprep.subr.mxu0 0.0
        %587 = vmatpush1.xpose.msra.mxu0 0.0
        %588 = vmatprep.subr.mxu0 0.0
        %589 = vmatpush1.xpose.msra.mxu0 0.0
        %590 = vmatprep.subr.mxu0 0.0
        %591 = vmatpush1.xpose.msra.mxu0 0.0
        %592 = vmatprep.subr.mxu0 0.0
        %593 = vmatpush1.xpose.msra.mxu0 0.0
        %594 = vmatprep.subr.mxu0 0.0
        %595 = vmatpush1.xpose.msra.mxu0 0.0
        %596 = vmatprep.subr.mxu0 0.0
        %597 = vmatpush1.xpose.msra.mxu0 0.0
        %598 = vmatprep.subr.mxu0 0.0
        %599 = vmatpush1.xpose.msra.mxu0 0.0
        %600 = vmatprep.subr.mxu0 0.0
        %601 = vmatpush1.xpose.msra.mxu0 0.0
        %602 = vmatprep.subr.mxu0 0.0
        %603 = vmatpush1.xpose.msra.mxu0 0.0
        %604 = vmatprep.subr.mxu0 0.0
        %605 = vmatpush1.xpose.msra.mxu0 0.0
        %606 = vmatprep.subr.mxu0 0.0
        %607 = vmatpush1.xpose.msra.mxu0 0.0
        %608 = vmatprep.subr.mxu0 0.0
        %609 = vmatpush1.xpose.msra.mxu0 0.0
        %610 = vmatprep.subr.mxu0 0.0
        %611 = vmatpush1.xpose.msra.mxu0 0.0
        %612 = vmatprep.subr.mxu0 0.0
        %613 = vmatpush1.xpose.msra.mxu0 0.0
        %614 = vmatprep.subr.mxu0 0.0
        %615 = vmatpush1.xpose.msra.mxu0 0.0
        %616 = vmatprep.subr.mxu0 0.0
        %617 = vmatpush1.xpose.msra.mxu0 0.0
        %618 = vmatprep.subr.mxu0 0.0
        %619 = vmatpush1.xpose.msra.mxu0 0.0
        %620 = vmatprep.mubr.f32.mxu0 0.0
        %621 = vmatmul.mubr.f32.gmra.mrb[0].mxu0 %v552
        %v622 = vpop.f32.mrb[0].mxu0
        %v623 = vadd.f32 0.0, %v622
        %v624 = vpop.f32.mrb[0].mxu0
        %625 = vdwg.mxu0
        %v626 = vsel %vm386, %v623, -inf
        %627 = vmax.xlane.f32.xlu0 %v626
        %v628 = vpop.xlane.xlu0 %627
        %v629 = vsub.f32 %v623, %v628
        %v630 = vmul.f32 %v629, 1.442695
        %v631 = vpow.pop %v630
        %v632 = vsel %vm386, %v631, 0.0
        %633 = vadd.xlane.f32.xlu0 %v632
        %v634 = vpop.xlane.xlu0 %633
        %v635 = vrcp.pop %v634
        %v636 = vmul.f32 %v631, %v635
        %637 = vrot.lane.b32.xlu0 %v380, 56
        %v638 = vpop.permute.xlu0 %637
        %v641 = vsel %vm386, %v636, 0
        %643 = vmatprep.subr.mxu0 0.0
        %644 = vmatpush1.msra.mxu0 %v638
        %645 = vmatprep.subr.mxu0 0.0
        %646 = vmatpush1.msra.mxu0 0.0
        %647 = vmatprep.subr.mxu0 0.0
        %648 = vmatpush1.msra.mxu0 0.0
        %649 = vmatprep.subr.mxu0 0.0
        %650 = vmatpush1.msra.mxu0 0.0
        %651 = vmatprep.subr.mxu0 0.0
        %652 = vmatpush1.msra.mxu0 0.0
        %653 = vmatprep.subr.mxu0 0.0
        %654 = vmatpush1.msra.mxu0 0.0
        %655 = vmatprep.subr.mxu0 0.0
        %656 = vmatpush1.msra.mxu0 0.0
        %657 = vmatprep.subr.mxu0 0.0
        %658 = vmatpush1.msra.mxu0 0.0
        %659 = vmatprep.subr.mxu0 0.0
        %660 = vmatpush1.msra.mxu0 0.0
        %661 = vmatprep.subr.mxu0 0.0
        %662 = vmatpush1.msra.mxu0 0.0
        %663 = vmatprep.subr.mxu0 0.0
        %664 = vmatpush1.msra.mxu0 0.0
        %665 = vmatprep.subr.mxu0 0.0
        %666 = vmatpush1.msra.mxu0 0.0
        %667 = vmatprep.subr.mxu0 0.0
        %668 = vmatpush1.msra.mxu0 0.0
        %669 = vmatprep.subr.mxu0 0.0
        %670 = vmatpush1.msra.mxu0 0.0
        %671 = vmatprep.subr.mxu0 0.0
        %672 = vmatpush1.msra.mxu0 0.0
        %673 = vmatprep.subr.mxu0 0.0
        %674 = vmatpush1.msra.mxu0 0.0
        %675 = vmatprep.subr.mxu0 0.0
        %676 = vmatpush1.msra.mxu0 0.0
        %677 = vmatprep.subr.mxu0 0.0
        %678 = vmatpush1.msra.mxu0 0.0
        %679 = vmatprep.subr.mxu0 0.0
        %680 = vmatpush1.msra.mxu0 0.0
        %681 = vmatprep.subr.mxu0 0.0
        %682 = vmatpush1.msra.mxu0 0.0
        %683 = vmatprep.subr.mxu0 0.0
        %684 = vmatpush1.msra.mxu0 0.0
        %685 = vmatprep.subr.mxu0 0.0
        %686 = vmatpush1.msra.mxu0 0.0
        %687 = vmatprep.subr.mxu0 0.0
        %688 = vmatpush1.msra.mxu0 0.0
        %689 = vmatprep.subr.mxu0 0.0
        %690 = vmatpush1.msra.mxu0 0.0
        %691 = vmatprep.subr.mxu0 0.0
        %692 = vmatpush1.msra.mxu0 0.0
        %693 = vmatprep.subr.mxu0 0.0
        %694 = vmatpush1.msra.mxu0 0.0
        %695 = vmatprep.subr.mxu0 0.0
        %696 = vmatpush1.msra.mxu0 0.0
        %697 = vmatprep.subr.mxu0 0.0
        %698 = vmatpush1.msra.mxu0 0.0
        %699 = vmatprep.subr.mxu0 0.0
        %700 = vmatpush1.msra.mxu0 0.0
        %701 = vmatprep.subr.mxu0 0.0
        %702 = vmatpush1.msra.mxu0 0.0
        %703 = vmatprep.subr.mxu0 0.0
        %704 = vmatpush1.msra.mxu0 0.0
        %705 = vmatprep.subr.mxu0 0.0
        %706 = vmatpush1.msra.mxu0 0.0
        %707 = vmatprep.mubr.f32.mxu0 0.0
        %708 = vmatmul.mubr.f32.gmra.mrb[0].mxu0 %v641
        %v709 = vpop.f32.mrb[0].mxu0
        %v710 = vadd.f32 0.0, %v709
        %v711 = vpop.f32.mrb[0].mxu0
        %712 = vdwg.mxu0
        %713 = vrot.lane.b32.xlu0 %v380, 112
        %v714 = vpop.permute.xlu0 %713
        %715 = vrot.lane.b32.xlu0 %v380, 80
        %v716 = vpop.permute.xlu0 %715
        %v717 = vsel %vm386, %v714, 0
        %v719 = vsel %vm386, %v716, 0
        %721 = vmatprep.subr.mxu0 0.0
        %722 = vmatpush1.xpose.msra.mxu0 %v719
        %723 = vmatprep.subr.mxu0 0.0
        %724 = vmatpush1.xpose.msra.mxu0 0.0
        %725 = vmatprep.subr.mxu0 0.0
        %726 = vmatpush1.xpose.msra.mxu0 0.0
        %727 = vmatprep.subr.mxu0 0.0
        %728 = vmatpush1.xpose.msra.mxu0 0.0
        %729 = vmatprep.subr.mxu0 0.0
        %730 = vmatpush1.xpose.msra.mxu0 0.0
        %731 = vmatprep.subr.mxu0 0.0
        %732 = vmatpush1.xpose.msra.mxu0 0.0
        %733 = vmatprep.subr.mxu0 0.0
        %734 = vmatpush1.xpose.msra.mxu0 0.0
        %735 = vmatprep.subr.mxu0 0.0
        %736 = vmatpush1.xpose.msra.mxu0 0.0
        %737 = vmatprep.subr.mxu0 0.0
        %738 = vmatpush1.xpose.msra.mxu0 0.0
        %739 = vmatprep.subr.mxu0 0.0
        %740 = vmatpush1.xpose.msra.mxu0 0.0
        %741 = vmatprep.subr.mxu0 0.0
        %742 = vmatpush1.xpose.msra.mxu0 0.0
        %743 = vmatprep.subr.mxu0 0.0
        %744 = vmatpush1.xpose.msra.mxu0 0.0
        %745 = vmatprep.subr.mxu0 0.0
        %746 = vmatpush1.xpose.msra.mxu0 0.0
        %747 = vmatprep.subr.mxu0 0.0
        %748 = vmatpush1.xpose.msra.mxu0 0.0
        %749 = vmatprep.subr.mxu0 0.0
        %750 = vmatpush1.xpose.msra.mxu0 0.0
        %751 = vmatprep.subr.mxu0 0.0
        %752 = vmatpush1.xpose.msra.mxu0 0.0
        %753 = vmatprep.subr.mxu0 0.0
        %754 = vmatpush1.xpose.msra.mxu0 0.0
        %755 = vmatprep.subr.mxu0 0.0
        %756 = vmatpush1.xpose.msra.mxu0 0.0
        %757 = vmatprep.subr.mxu0 0.0
        %758 = vmatpush1.xpose.msra.mxu0 0.0
        %759 = vmatprep.subr.mxu0 0.0
        %760 = vmatpush1.xpose.msra.mxu0 0.0
        %761 = vmatprep.subr.mxu0 0.0
        %762 = vmatpush1.xpose.msra.mxu0 0.0
        %763 = vmatprep.subr.mxu0 0.0
        %764 = vmatpush1.xpose.msra.mxu0 0.0
        %765 = vmatprep.subr.mxu0 0.0
        %766 = vmatpush1.xpose.msra.mxu0 0.0
        %767 = vmatprep.subr.mxu0 0.0
        %768 = vmatpush1.xpose.msra.mxu0 0.0
        %769 = vmatprep.subr.mxu0 0.0
        %770 = vmatpush1.xpose.msra.mxu0 0.0
        %771 = vmatprep.subr.mxu0 0.0
        %772 = vmatpush1.xpose.msra.mxu0 0.0
        %773 = vmatprep.subr.mxu0 0.0
        %774 = vmatpush1.xpose.msra.mxu0 0.0
        %775 = vmatprep.subr.mxu0 0.0
        %776 = vmatpush1.xpose.msra.mxu0 0.0
        %777 = vmatprep.subr.mxu0 0.0
        %778 = vmatpush1.xpose.msra.mxu0 0.0
        %779 = vmatprep.subr.mxu0 0.0
        %780 = vmatpush1.xpose.msra.mxu0 0.0
        %781 = vmatprep.subr.mxu0 0.0
        %782 = vmatpush1.xpose.msra.mxu0 0.0
        %783 = vmatprep.subr.mxu0 0.0
        %784 = vmatpush1.xpose.msra.mxu0 0.0
        %785 = vmatprep.mubr.f32.mxu0 0.0
        %786 = vmatmul.mubr.f32.gmra.mrb[0].mxu0 %v717
        %v787 = vpop.f32.mrb[0].mxu0
        %v788 = vadd.f32 0.0, %v787
        %v789 = vpop.f32.mrb[0].mxu0
        %790 = vdwg.mxu0
        %v791 = vsel %vm386, %v788, -inf
        %792 = vmax.xlane.f32.xlu0 %v791
        %v793 = vpop.xlane.xlu0 %792
        %v794 = vsub.f32 %v788, %v793
        %v795 = vmul.f32 %v794, 1.442695
        %v796 = vpow.pop %v795
        %v797 = vsel %vm386, %v796, 0.0
        %798 = vadd.xlane.f32.xlu0 %v797
        %v799 = vpop.xlane.xlu0 %798
        %v800 = vrcp.pop %v799
        %v801 = vmul.f32 %v796, %v800
        %802 = vrot.lane.b32.xlu0 %v380, 48
        %v803 = vpop.permute.xlu0 %802
        %v806 = vsel %vm386, %v801, 0
        %808 = vmatprep.subr.mxu0 0.0
        %809 = vmatpush1.msra.mxu0 %v803
        %810 = vmatprep.subr.mxu0 0.0
        %811 = vmatpush1.msra.mxu0 0.0
        %812 = vmatprep.subr.mxu0 0.0
        %813 = vmatpush1.msra.mxu0 0.0
        %814 = vmatprep.subr.mxu0 0.0
        %815 = vmatpush1.msra.mxu0 0.0
        %816 = vmatprep.subr.mxu0 0.0
        %817 = vmatpush1.msra.mxu0 0.0
        %818 = vmatprep.subr.mxu0 0.0
        %819 = vmatpush1.msra.mxu0 0.0
        %820 = vmatprep.subr.mxu0 0.0
        %821 = vmatpush1.msra.mxu0 0.0
        %822 = vmatprep.subr.mxu0 0.0
        %823 = vmatpush1.msra.mxu0 0.0
        %824 = vmatprep.subr.mxu0 0.0
        %825 = vmatpush1.msra.mxu0 0.0
        %826 = vmatprep.subr.mxu0 0.0
        %827 = vmatpush1.msra.mxu0 0.0
        %828 = vmatprep.subr.mxu0 0.0
        %829 = vmatpush1.msra.mxu0 0.0
        %830 = vmatprep.subr.mxu0 0.0
        %831 = vmatpush1.msra.mxu0 0.0
        %832 = vmatprep.subr.mxu0 0.0
        %833 = vmatpush1.msra.mxu0 0.0
        %834 = vmatprep.subr.mxu0 0.0
        %835 = vmatpush1.msra.mxu0 0.0
        %836 = vmatprep.subr.mxu0 0.0
        %837 = vmatpush1.msra.mxu0 0.0
        %838 = vmatprep.subr.mxu0 0.0
        %839 = vmatpush1.msra.mxu0 0.0
        %840 = vmatprep.subr.mxu0 0.0
        %841 = vmatpush1.msra.mxu0 0.0
        %842 = vmatprep.subr.mxu0 0.0
        %843 = vmatpush1.msra.mxu0 0.0
        %844 = vmatprep.subr.mxu0 0.0
        %845 = vmatpush1.msra.mxu0 0.0
        %846 = vmatprep.subr.mxu0 0.0
        %847 = vmatpush1.msra.mxu0 0.0
        %848 = vmatprep.subr.mxu0 0.0
        %849 = vmatpush1.msra.mxu0 0.0
        %850 = vmatprep.subr.mxu0 0.0
        %851 = vmatpush1.msra.mxu0 0.0
        %852 = vmatprep.subr.mxu0 0.0
        %853 = vmatpush1.msra.mxu0 0.0
        %854 = vmatprep.subr.mxu0 0.0
        %855 = vmatpush1.msra.mxu0 0.0
        %856 = vmatprep.subr.mxu0 0.0
        %857 = vmatpush1.msra.mxu0 0.0
        %858 = vmatprep.subr.mxu0 0.0
        %859 = vmatpush1.msra.mxu0 0.0
        %860 = vmatprep.subr.mxu0 0.0
        %861 = vmatpush1.msra.mxu0 0.0
        %862 = vmatprep.subr.mxu0 0.0
        %863 = vmatpush1.msra.mxu0 0.0
        %864 = vmatprep.subr.mxu0 0.0
        %865 = vmatpush1.msra.mxu0 0.0
        %866 = vmatprep.subr.mxu0 0.0
        %867 = vmatpush1.msra.mxu0 0.0
        %868 = vmatprep.subr.mxu0 0.0
        %869 = vmatpush1.msra.mxu0 0.0
        %870 = vmatprep.subr.mxu0 0.0
        %871 = vmatpush1.msra.mxu0 0.0
        %872 = vmatprep.mubr.f32.mxu0 0.0
        %873 = vmatmul.mubr.f32.gmra.mrb[0].mxu0 %v806
        %v874 = vpop.f32.mrb[0].mxu0
        %v875 = vadd.f32 0.0, %v874
        %v876 = vpop.f32.mrb[0].mxu0
        %877 = vdwg.mxu0
        %878 = vrot.lane.b32.xlu0 %v380, 104
        %v879 = vpop.permute.xlu0 %878
        %880 = vrot.lane.b32.xlu0 %v380, 72
        %v881 = vpop.permute.xlu0 %880
        %v882 = vsel %vm386, %v879, 0
        %v884 = vsel %vm386, %v881, 0
        %886 = vmatprep.subr.mxu0 0.0
        %887 = vmatpush1.xpose.msra.mxu0 %v884
        %888 = vmatprep.subr.mxu0 0.0
        %889 = vmatpush1.xpose.msra.mxu0 0.0
        %890 = vmatprep.subr.mxu0 0.0
        %891 = vmatpush1.xpose.msra.mxu0 0.0
        %892 = vmatprep.subr.mxu0 0.0
        %893 = vmatpush1.xpose.msra.mxu0 0.0
        %894 = vmatprep.subr.mxu0 0.0
        %895 = vmatpush1.xpose.msra.mxu0 0.0
        %896 = vmatprep.subr.mxu0 0.0
        %897 = vmatpush1.xpose.msra.mxu0 0.0
        %898 = vmatprep.subr.mxu0 0.0
        %899 = vmatpush1.xpose.msra.mxu0 0.0
        %900 = vmatprep.subr.mxu0 0.0
        %901 = vmatpush1.xpose.msra.mxu0 0.0
        %902 = vmatprep.subr.mxu0 0.0
        %903 = vmatpush1.xpose.msra.mxu0 0.0
        %904 = vmatprep.subr.mxu0 0.0
        %905 = vmatpush1.xpose.msra.mxu0 0.0
        %906 = vmatprep.subr.mxu0 0.0
        %907 = vmatpush1.xpose.msra.mxu0 0.0
        %908 = vmatprep.subr.mxu0 0.0
        %909 = vmatpush1.xpose.msra.mxu0 0.0
        %910 = vmatprep.subr.mxu0 0.0
        %911 = vmatpush1.xpose.msra.mxu0 0.0
        %912 = vmatprep.subr.mxu0 0.0
        %913 = vmatpush1.xpose.msra.mxu0 0.0
        %914 = vmatprep.subr.mxu0 0.0
        %915 = vmatpush1.xpose.msra.mxu0 0.0
        %916 = vmatprep.subr.mxu0 0.0
        %917 = vmatpush1.xpose.msra.mxu0 0.0
        %918 = vmatprep.subr.mxu0 0.0
        %919 = vmatpush1.xpose.msra.mxu0 0.0
        %920 = vmatprep.subr.mxu0 0.0
        %921 = vmatpush1.xpose.msra.mxu0 0.0
        %922 = vmatprep.subr.mxu0 0.0
        %923 = vmatpush1.xpose.msra.mxu0 0.0
        %924 = vmatprep.subr.mxu0 0.0
        %925 = vmatpush1.xpose.msra.mxu0 0.0
        %926 = vmatprep.subr.mxu0 0.0
        %927 = vmatpush1.xpose.msra.mxu0 0.0
        %928 = vmatprep.subr.mxu0 0.0
        %929 = vmatpush1.xpose.msra.mxu0 0.0
        %930 = vmatprep.subr.mxu0 0.0
        %931 = vmatpush1.xpose.msra.mxu0 0.0
        %932 = vmatprep.subr.mxu0 0.0
        %933 = vmatpush1.xpose.msra.mxu0 0.0
        %934 = vmatprep.subr.mxu0 0.0
        %935 = vmatpush1.xpose.msra.mxu0 0.0
        %936 = vmatprep.subr.mxu0 0.0
        %937 = vmatpush1.xpose.msra.mxu0 0.0
        %938 = vmatprep.subr.mxu0 0.0
        %939 = vmatpush1.xpose.msra.mxu0 0.0
        %940 = vmatprep.subr.mxu0 0.0
        %941 = vmatpush1.xpose.msra.mxu0 0.0
        %942 = vmatprep.subr.mxu0 0.0
        %943 = vmatpush1.xpose.msra.mxu0 0.0
        %944 = vmatprep.subr.mxu0 0.0
        %945 = vmatpush1.xpose.msra.mxu0 0.0
        %946 = vmatprep.subr.mxu0 0.0
        %947 = vmatpush1.xpose.msra.mxu0 0.0
        %948 = vmatprep.subr.mxu0 0.0
        %949 = vmatpush1.xpose.msra.mxu0 0.0
        %950 = vmatprep.mubr.f32.mxu0 0.0
        %951 = vmatmul.mubr.f32.gmra.mrb[0].mxu0 %v882
        %v952 = vpop.f32.mrb[0].mxu0
        %v953 = vadd.f32 0.0, %v952
        %v954 = vpop.f32.mrb[0].mxu0
        %955 = vdwg.mxu0
        %v956 = vsel %vm386, %v953, -inf
        %957 = vmax.xlane.f32.xlu0 %v956
        %v958 = vpop.xlane.xlu0 %957
        %v959 = vsub.f32 %v953, %v958
        %v960 = vmul.f32 %v959, 1.442695
        %v961 = vpow.pop %v960
        %v962 = vsel %vm386, %v961, 0.0
        %963 = vadd.xlane.f32.xlu0 %v962
        %v964 = vpop.xlane.xlu0 %963
        %v965 = vrcp.pop %v964
        %v966 = vmul.f32 %v961, %v965
        %967 = vrot.lane.b32.xlu0 %v380, 40
        %v968 = vpop.permute.xlu0 %967
        %v971 = vsel %vm386, %v966, 0
        %973 = vmatprep.subr.mxu0 0.0
        %974 = vmatpush1.msra.mxu0 %v968
        %975 = vmatprep.subr.mxu0 0.0
        %976 = vmatpush1.msra.mxu0 0.0
        %977 = vmatprep.subr.mxu0 0.0
        %978 = vmatpush1.msra.mxu0 0.0
        %979 = vmatprep.subr.mxu0 0.0
        %980 = vmatpush1.msra.mxu0 0.0
        %981 = vmatprep.subr.mxu0 0.0
        %982 = vmatpush1.msra.mxu0 0.0
        %983 = vmatprep.subr.mxu0 0.0
        %984 = vmatpush1.msra.mxu0 0.0
        %985 = vmatprep.subr.mxu0 0.0
        %986 = vmatpush1.msra.mxu0 0.0
        %987 = vmatprep.subr.mxu0 0.0
        %988 = vmatpush1.msra.mxu0 0.0
        %989 = vmatprep.subr.mxu0 0.0
        %990 = vmatpush1.msra.mxu0 0.0
        %991 = vmatprep.subr.mxu0 0.0
        %992 = vmatpush1.msra.mxu0 0.0
        %993 = vmatprep.subr.mxu0 0.0
        %994 = vmatpush1.msra.mxu0 0.0
        %995 = vmatprep.subr.mxu0 0.0
        %996 = vmatpush1.msra.mxu0 0.0
        %997 = vmatprep.subr.mxu0 0.0
        %998 = vmatpush1.msra.mxu0 0.0
        %999 = vmatprep.subr.mxu0 0.0
        %1000 = vmatpush1.msra.mxu0 0.0
        %1001 = vmatprep.subr.mxu0 0.0
        %1002 = vmatpush1.msra.mxu0 0.0
        %1003 = vmatprep.subr.mxu0 0.0
        %1004 = vmatpush1.msra.mxu0 0.0
        %1005 = vmatprep.subr.mxu0 0.0
        %1006 = vmatpush1.msra.mxu0 0.0
        %1007 = vmatprep.subr.mxu0 0.0
        %1008 = vmatpush1.msra.mxu0 0.0
        %1009 = vmatprep.subr.mxu0 0.0
        %1010 = vmatpush1.msra.mxu0 0.0
        %1011 = vmatprep.subr.mxu0 0.0
        %1012 = vmatpush1.msra.mxu0 0.0
        %1013 = vmatprep.subr.mxu0 0.0
        %1014 = vmatpush1.msra.mxu0 0.0
        %1015 = vmatprep.subr.mxu0 0.0
        %1016 = vmatpush1.msra.mxu0 0.0
        %1017 = vmatprep.subr.mxu0 0.0
        %1018 = vmatpush1.msra.mxu0 0.0
        %1019 = vmatprep.subr.mxu0 0.0
        %1020 = vmatpush1.msra.mxu0 0.0
        %1021 = vmatprep.subr.mxu0 0.0
        %1022 = vmatpush1.msra.mxu0 0.0
        %1023 = vmatprep.subr.mxu0 0.0
        %1024 = vmatpush1.msra.mxu0 0.0
        %1025 = vmatprep.subr.mxu0 0.0
        %1026 = vmatpush1.msra.mxu0 0.0
        %1027 = vmatprep.subr.mxu0 0.0
        %1028 = vmatpush1.msra.mxu0 0.0
        %1029 = vmatprep.subr.mxu0 0.0
        %1030 = vmatpush1.msra.mxu0 0.0
        %1031 = vmatprep.subr.mxu0 0.0
        %1032 = vmatpush1.msra.mxu0 0.0
        %1033 = vmatprep.subr.mxu0 0.0
        %1034 = vmatpush1.msra.mxu0 0.0
        %1035 = vmatprep.subr.mxu0 0.0
        %1036 = vmatpush1.msra.mxu0 0.0
        %1037 = vmatprep.mubr.f32.mxu0 0.0
        %1038 = vmatmul.mubr.f32.gmra.mrb[0].mxu0 %v971
        %v1039 = vpop.f32.mrb[0].mxu0
        %v1040 = vadd.f32 0.0, %v1039
        %v1041 = vpop.f32.mrb[0].mxu0
        %1042 = vdwg.mxu0
        %1044 = vrot.lane.b32.xlu0 %v710, 8
        %v1045 = vpop.permute.xlu0 %1044
        %1048 = vrot.lane.b32.xlu0 %v875, 16
        %v1049 = vpop.permute.xlu0 %1048
        %1052 = vrot.lane.b32.xlu0 %v1040, 24
        %v1053 = vpop.permute.xlu0 %1052
        %v1055 = vsel %vm386, %v545, %v1045
        %vm1056 = vcmask 130048
        %v1057 = vsel %vm1056, %v1055, %v1049
        %vm1058 = vcmask 195584
        %v1059 = vsel %vm1058, %v1057, %v1053
        %1060 = vst.msk [vmem:[#allocation2] sm:$0xff] %vm281, %v1059
        %v1061 = vld [vmem:[#allocation2] sm:$0xff]
        %v1062 = vld [vmem:[%s2] sm:$0xff]
        %v1063 = vld [vmem:[%s2 + $0x8] sm:$0xff]
        %v1064 = vld [vmem:[%s2 + $0x10] sm:$0xff]
        %v1065 = vld [vmem:[%s2 + $0x18] sm:$0xff]
        %v1067 = vlaneseq
        %v1068 = vshrl.u32 %v1067, 7
        %v1069 = vsub.s32 0, %v1068
        %v1070 = vrot.slane %v276, %v1069
        %v1073 = vsel %vm281, %v1061, 0
        %1075 = vmatprep.subr.mxu0 0.0
        %1076 = vmatpush1.msra.mxu0 %v1062
        %1077 = vmatprep.subr.mxu0 0.0
        %1078 = vmatpush1.msra.mxu0 %v1063
        %1079 = vmatprep.subr.mxu0 0.0
        %1080 = vmatpush1.msra.mxu0 %v1064
        %1081 = vmatprep.subr.mxu0 0.0
        %1082 = vmatpush1.msra.mxu0 %v1065
        %1083 = vmatprep.subr.mxu0 0.0
        %1084 = vmatpush1.msra.mxu0 0.0
        %1085 = vmatprep.subr.mxu0 0.0
        %1086 = vmatpush1.msra.mxu0 0.0
        %1087 = vmatprep.subr.mxu0 0.0
        %1088 = vmatpush1.msra.mxu0 0.0
        %1089 = vmatprep.subr.mxu0 0.0
        %1090 = vmatpush1.msra.mxu0 0.0
        %1091 = vmatprep.subr.mxu0 0.0
        %1092 = vmatpush1.msra.mxu0 0.0
        %1093 = vmatprep.subr.mxu0 0.0
        %1094 = vmatpush1.msra.mxu0 0.0
        %1095 = vmatprep.subr.mxu0 0.0
        %1096 = vmatpush1.msra.mxu0 0.0
        %1097 = vmatprep.subr.mxu0 0.0
        %1098 = vmatpush1.msra.mxu0 0.0
        %1099 = vmatprep.subr.mxu0 0.0
        %1100 = vmatpush1.msra.mxu0 0.0
        %1101 = vmatprep.subr.mxu0 0.0
        %1102 = vmatpush1.msra.mxu0 0.0
        %1103 = vmatprep.subr.mxu0 0.0
        %1104 = vmatpush1.msra.mxu0 0.0
        %1105 = vmatprep.subr.mxu0 0.0
        %1106 = vmatpush1.msra.mxu0 0.0
        %1107 = vmatprep.subr.mxu0 0.0
        %1108 = vmatpush1.msra.mxu0 0.0
        %1109 = vmatprep.subr.mxu0 0.0
        %1110 = vmatpush1.msra.mxu0 0.0
        %1111 = vmatprep.subr.mxu0 0.0
        %1112 = vmatpush1.msra.mxu0 0.0
        %1113 = vmatprep.subr.mxu0 0.0
        %1114 = vmatpush1.msra.mxu0 0.0
        %1115 = vmatprep.subr.mxu0 0.0
        %1116 = vmatpush1.msra.mxu0 0.0
        %1117 = vmatprep.subr.mxu0 0.0
        %1118 = vmatpush1.msra.mxu0 0.0
        %1119 = vmatprep.subr.mxu0 0.0
        %1120 = vmatpush1.msra.mxu0 0.0
        %1121 = vmatprep.subr.mxu0 0.0
        %1122 = vmatpush1.msra.mxu0 0.0
        %1123 = vmatprep.subr.mxu0 0.0
        %1124 = vmatpush1.msra.mxu0 0.0
        %1125 = vmatprep.subr.mxu0 0.0
        %1126 = vmatpush1.msra.mxu0 0.0
        %1127 = vmatprep.subr.mxu0 0.0
        %1128 = vmatpush1.msra.mxu0 0.0
        %1129 = vmatprep.subr.mxu0 0.0
        %1130 = vmatpush1.msra.mxu0 0.0
        %1131 = vmatprep.subr.mxu0 0.0
        %1132 = vmatpush1.msra.mxu0 0.0
        %1133 = vmatprep.subr.mxu0 0.0
        %1134 = vmatpush1.msra.mxu0 0.0
        %1135 = vmatprep.subr.mxu0 0.0
        %1136 = vmatpush1.msra.mxu0 0.0
        %1137 = vmatprep.subr.mxu0 0.0
        %1138 = vmatpush1.msra.mxu0 0.0
        %1139 = vmatprep.mubr.f32.mxu0 0.0
        %1140 = vmatmul.mubr.f32.gmra.mrb[0].mxu0 %v1073
        %v1141 = vpop.f32.mrb[0].mxu0
        %v1142 = vadd.f32 %v1070, %v1141
        %v1143 = vpop.f32.mrb[0].mxu0
        %1144 = vdwg.mxu0
        %v1145 = vadd.f32 %v274, %v1142
        %v1146 = vsel %vm281, %v1145, 0.0
        %1147 = vadd.xlane.f32.xlu0 %v1146
        %v1148 = vpop.xlane.xlu0 %1147
        %v1149 = vmul.f32 %v1148, %v285
        %v1150 = vsub.f32 %v1145, %v1149
        %v1151 = vmul.f32 %v1150, %v1150
        %v1152 = vsel %vm281, %v1151, 0.0
        %1153 = vadd.xlane.f32.xlu0 %v1152
        %v1154 = vpop.xlane.xlu0 %1153
        %v1155 = vmul.f32 %v1154, %v285
        %v1156 = vadd.f32 %v1155, 1e-05
        %v1157 = vrsqrt.pop %v1156
        %v1158 = vmul.f32 %v1150, %v1157
        %v1159 = vlaneseq
        %v1160 = vshrl.u32 %v1159, 7
        %v1161 = vsub.s32 0, %v1160
        %v1162 = vrot.slane %v279, %v1161
        %v1163 = vmul.f32 %v1158, %v1162
        %v1164 = vlaneseq
        %v1165 = vshrl.u32 %v1164, 7
        %v1166 = vsub.s32 0, %v1165
        %v1167 = vrot.slane %v280, %v1166
        %v1168 = vadd.f32 %v1163, %v1167
        %v1169 = vld [vmem:[%s3] sm:$0xff]
        %v1170 = vld [vmem:[%s3 + $0x8] sm:$0xff]
        %v1171 = vld [vmem:[%s3 + $0x10] sm:$0xff]
        %v1172 = vld [vmem:[%s3 + $0x18] sm:$0xff]
        %v1174 = vlaneseq
        %v1175 = vshrl.u32 %v1174, 7
        %v1176 = vsub.s32 0, %v1175
        %v1177 = vrot.slane %v275, %v1176
        %v1180 = vsel %vm281, %v1168, 0
        %1182 = vmatprep.subr.mxu0 0.0
        %1183 = vmatpush1.msra.mxu0 %v1169
        %1184 = vmatprep.subr.mxu0 0.0
        %1185 = vmatpush1.msra.mxu0 %v1170
        %1186 = vmatprep.subr.mxu0 0.0
        %1187 = vmatpush1.msra.mxu0 %v1171
        %1188 = vmatprep.subr.mxu0 0.0
        %1189 = vmatpush1.msra.mxu0 %v1172
        %1190 = vmatprep.subr.mxu0 0.0
        %1191 = vmatpush1.msra.mxu0 0.0
        %1192 = vmatprep.subr.mxu0 0.0
        %1193 = vmatpush1.msra.mxu0 0.0
        %1194 = vmatprep.subr.mxu0 0.0
        %1195 = vmatpush1.msra.mxu0 0.0
        %1196 = vmatprep.subr.mxu0 0.0
        %1197 = vmatpush1.msra.mxu0 0.0
        %1198 = vmatprep.subr.mxu0 0.0
        %1199 = vmatpush1.msra.mxu0 0.0
        %1200 = vmatprep.subr.mxu0 0.0
        %1201 = vmatpush1.msra.mxu0 0.0
        %1202 = vmatprep.subr.mxu0 0.0
        %1203 = vmatpush1.msra.mxu0 0.0
        %1204 = vmatprep.subr.mxu0 0.0
        %1205 = vmatpush1.msra.mxu0 0.0
        %1206 = vmatprep.subr.mxu0 0.0
        %1207 = vmatpush1.msra.mxu0 0.0
        %1208 = vmatprep.subr.mxu0 0.0
        %1209 = vmatpush1.msra.mxu0 0.0
        %1210 = vmatprep.subr.mxu0 0.0
        %1211 = vmatpush1.msra.mxu0 0.0
        %1212 = vmatprep.subr.mxu0 0.0
        %1213 = vmatpush1.msra.mxu0 0.0
        %1214 = vmatprep.subr.mxu0 0.0
        %1215 = vmatpush1.msra.mxu0 0.0
        %1216 = vmatprep.subr.mxu0 0.0
        %1217 = vmatpush1.msra.mxu0 0.0
        %1218 = vmatprep.subr.mxu0 0.0
        %1219 = vmatpush1.msra.mxu0 0.0
        %1220 = vmatprep.subr.mxu0 0.0
        %1221 = vmatpush1.msra.mxu0 0.0
        %1222 = vmatprep.subr.mxu0 0.0
        %1223 = vmatpush1.msra.mxu0 0.0
        %1224 = vmatprep.subr.mxu0 0.0
        %1225 = vmatpush1.msra.mxu0 0.0
        %1226 = vmatprep.subr.mxu0 0.0
        %1227 = vmatpush1.msra.mxu0 0.0
        %1228 = vmatprep.subr.mxu0 0.0
        %1229 = vmatpush1.msra.mxu0 0.0
        %1230 = vmatprep.subr.mxu0 0.0
        %1231 = vmatpush1.msra.mxu0 0.0
        %1232 = vmatprep.subr.mxu0 0.0
        %1233 = vmatpush1.msra.mxu0 0.0
        %1234 = vmatprep.subr.mxu0 0.0
        %1235 = vmatpush1.msra.mxu0 0.0
        %1236 = vmatprep.subr.mxu0 0.0
        %1237 = vmatpush1.msra.mxu0 0.0
        %1238 = vmatprep.subr.mxu0 0.0
        %1239 = vmatpush1.msra.mxu0 0.0
        %1240 = vmatprep.subr.mxu0 0.0
        %1241 = vmatpush1.msra.mxu0 0.0
        %1242 = vmatprep.subr.mxu0 0.0
        %1243 = vmatpush1.msra.mxu0 0.0
        %1244 = vmatprep.subr.mxu0 0.0
        %1245 = vmatpush1.msra.mxu0 0.0
        %1246 = vmatprep.mubr.f32.mxu0 0.0
        %1247 = vmatmul.mubr.f32.gmra.mrb[0].mxu0 %v1180
        %v1248 = vpop.f32.mrb[0].mxu0
        %v1249 = vadd.f32 %v1177, %v1248
        %v1250 = vpop.f32.mrb[0].mxu0
        %1251 = vdwg.mxu0
        %v1252 = vmax.f32 %v1249, 0.0
        %v1253 = vld [vmem:[%s4] sm:$0xff]
        %v1254 = vld [vmem:[%s4 + $0x8] sm:$0xff]
        %v1255 = vld [vmem:[%s4 + $0x10] sm:$0xff]
        %v1256 = vld [vmem:[%s4 + $0x18] sm:$0xff]
        %v1257 = vld [vmem:[%s4 + $0x20] sm:$0xff]
        %v1258 = vld [vmem:[%s4 + $0x28] sm:$0xff]
        %v1259 = vld [vmem:[%s4 + $0x30] sm:$0xff]
        %v1260 = vld [vmem:[%s4 + $0x38] sm:$0xff]
        %v1261 = vld [vmem:[%s4 + $0x40] sm:$0xff]
        %v1262 = vld [vmem:[%s4 + $0x48] sm:$0xff]
        %v1263 = vld [vmem:[%s4 + $0x50] sm:$0xff]
        %v1264 = vld [vmem:[%s4 + $0x58] sm:$0xff]
        %v1265 = vld [vmem:[%s4 + $0x60] sm:$0xff]
        %v1266 = vld [vmem:[%s4 + $0x68] sm:$0xff]
        %v1267 = vld [vmem:[%s4 + $0x70] sm:$0xff]
        %v1268 = vld [vmem:[%s4 + $0x78] sm:$0xff]
        %1269 = vrot.lane.b32.xlu0 %v1070, 96
        %v1270 = vpop.permute.xlu0 %1269
        %1272 = vmatprep.subr.mxu0 0.0
        %1273 = vmatpush1.msra.mxu0 %v1253
        %1274 = vmatprep.subr.mxu0 0.0
        %1275 = vmatpush1.msra.mxu0 %v1254
        %1276 = vmatprep.subr.mxu0 0.0
        %1277 = vmatpush1.msra.mxu0 %v1255
        %1278 = vmatprep.subr.mxu0 0.0
        %1279 = vmatpush1.msra.mxu0 %v1256
        %1280 = vmatprep.subr.mxu0 0.0
        %1281 = vmatpush1.msra.mxu0 %v1257
        %1282 = vmatprep.subr.mxu0 0.0
        %1283 = vmatpush1.msra.mxu0 %v1258
        %1284 = vmatprep.subr.mxu0 0.0
        %1285 = vmatpush1.msra.mxu0 %v1259
        %1286 = vmatprep.subr.mxu0 0.0
        %1287 = vmatpush1.msra.mxu0 %v1260
        %1288 = vmatprep.subr.mxu0 0.0
        %1289 = vmatpush1.msra.mxu0 %v1261
        %1290 = vmatprep.subr.mxu0 0.0
        %1291 = vmatpush1.msra.mxu0 %v1262
        %1292 = vmatprep.subr.mxu0 0.0
        %1293 = vmatpush1.msra.mxu0 %v1263
        %1294 = vmatprep.subr.mxu0 0.0
        %1295 = vmatpush1.msra.mxu0 %v1264
        %1296 = vmatprep.subr.mxu0 0.0
        %1297 = vmatpush1.msra.mxu0 %v1265
        %1298 = vmatprep.subr.mxu0 0.0
        %1299 = vmatpush1.msra.mxu0 %v1266
        %1300 = vmatprep.subr.mxu0 0.0
        %1301 = vmatpush1.msra.mxu0 %v1267
        %1302 = vmatprep.subr.mxu0 0.0
        %1303 = vmatpush1.msra.mxu0 %v1268
        %1304 = vmatprep.subr.mxu0 0.0
        %1305 = vmatpush1.msra.mxu0 0.0
        %1306 = vmatprep.subr.mxu0 0.0
        %1307 = vmatpush1.msra.mxu0 0.0
        %1308 = vmatprep.subr.mxu0 0.0
        %1309 = vmatpush1.msra.mxu0 0.0
        %1310 = vmatprep.subr.mxu0 0.0
        %1311 = vmatpush1.msra.mxu0 0.0
        %1312 = vmatprep.subr.mxu0 0.0
        %1313 = vmatpush1.msra.mxu0 0.0
        %1314 = vmatprep.subr.mxu0 0.0
        %1315 = vmatpush1.msra.mxu0 0.0
        %1316 = vmatprep.subr.mxu0 0.0
        %1317 = vmatpush1.msra.mxu0 0.0
        %1318 = vmatprep.subr.mxu0 0.0
        %1319 = vmatpush1.msra.mxu0 0.0
        %1320 = vmatprep.subr.mxu0 0.0
        %1321 = vmatpush1.msra.mxu0 0.0
        %1322 = vmatprep.subr.mxu0 0.0
        %1323 = vmatpush1.msra.mxu0 0.0
        %1324 = vmatprep.subr.mxu0 0.0
        %1325 = vmatpush1.msra.mxu0 0.0
        %1326 = vmatprep.subr.mxu0 0.0
        %1327 = vmatpush1.msra.mxu0 0.0
        %1328 = vmatprep.subr.mxu0 0.0
        %1329 = vmatpush1.msra.mxu0 0.0
        %1330 = vmatprep.subr.mxu0 0.0
        %1331 = vmatpush1.msra.mxu0 0.0
        %1332 = vmatprep.subr.mxu0 0.0
        %1333 = vmatpush1.msra.mxu0 0.0
        %1334 = vmatprep.subr.mxu0 0.0
        %1335 = vmatpush1.msra.mxu0 0.0
        %1336 = vmatprep.mubr.f32.mxu0 0.0
        %1337 = vmatmul.mubr.f32.gmra.mrb[0].mxu0 %v1252
        %v1338 = vpop.f32.mrb[0].mxu0
        %v1339 = vadd.f32 %v1270, %v1338
        %v1340 = vpop.f32.mrb[0].mxu0
        %1341 = vdwg.mxu0
        %v1342 = vadd.f32 %v1145, %v1339
        %1343 = vst.msk [vmem:[%s269] sm:$0xff] %vm281, %v1342
        %s1344 = sand.u32 %s181, 1
        %s1345 = scalar_lea.sflag [#allocation4], %s1344
        %s1346 = sand.u32 %s181, 1
        %s1347 = smul.addr %s1346, 8
        %s1348 = scalar_lea.vmem [#allocation3], %s1347
        // Predicated region
        $region49: #{tpu_custom_call.1} parent=47 // pred_check
          %p1349 = pneg %p191
        $region50: #{tpu_custom_call.1} parent=47 // pred_check_branch
          %1351 = sbr.rel (%p1349) target = $region52
        $region51: #{tpu_custom_call.1} parent=47 // pred_region
          %s1353 = ssub.s32 128, 128
          %1354 = vsyncadd %s1345, %s1353
          %s1355 = smul.addr %s21, 128
          %s1356 = scalar_lea.hbm %s7, %s1355
          %s1358 = sshll.u32 %s1348, 4
          %s1359 = int_to_ptr.vmem [resolvable:$true] %s1358
          %1361 = dma.vmem_to_hbm [thread:$0]  %s1359, 128, %s1356, %s1345
        $region52: #{tpu_custom_call.1} parent=47 // pred_fallthru
          _
      $region48: #{tpu_custom_call.1} parent=5 // pred_fallthru
        _
      %p1362 = scmp.le.s32.totalorder 2, %s16
      // Predicated region
      $region53: #{tpu_custom_call.1} parent=5 // pred_check
        %p1363 = pneg %p1362
      $region54: #{tpu_custom_call.1} parent=5 // pred_check_branch
        %1365 = sbr.rel (%p1363) target = $region56
      $region55: #{tpu_custom_call.1} parent=5 // pred_region
        %s1366 = ssub.s32 %s16, 2
        // Predicated region
        $region57: #{tpu_custom_call.1} parent=55 // pred_check
          %p1367 = pneg %p197
        $region58: #{tpu_custom_call.1} parent=55 // pred_check_branch
          %1369 = sbr.rel (%p1367) target = $region60
        $region59: #{tpu_custom_call.1} parent=55 // pred_region
          %s1370 = sand.u32 %s182, 1
          %s1371 = scalar_lea.sflag [#allocation4], %s1370
          %s1372 = sand.u32 %s182, 1
          %s1373 = smul.addr %s1372, 8
          %s1374 = scalar_lea.vmem [#allocation3], %s1373
          %1375 = dma.done %s1371, 128
        $region60: #{tpu_custom_call.1} parent=55 // pred_fallthru
          _
      $region56: #{tpu_custom_call.1} parent=5 // pred_fallthru
        _
    $region6: #{tpu_custom_call.1} parent=1 // loop_footer
      %s20 = sadd.s32 1, %s16
    $region7: #{tpu_custom_call.1} parent=1 // loop_footer_branch
      %15 = sbr.rel target = $region3
    $region8: #{tpu_custom_call.1} parent=1 // loop_exit
      _
    %1376 = vsyncpa [#allocation4], 1
    %s1377 = scalar_lea.sflag [#allocation4], 1
    %1378 = vsyncpa %s1377, 1

</llo_original>
